<compile_context>
chip_gen: v7x
topology: tpu7x:2x2x1
jax: 0.10.0
libtpu: 0.0.40
codegen_flags: <defaults>
</compile_context>

<pallas_src>
import jax
import jax.numpy as jnp
from jax import lax
from jax.experimental import pallas as pl
from jax.experimental.pallas import tpu as pltpu

BN_EPS = 1e-5
_VMEM_LIMIT = 48 * 1024 * 1024   # > 16/32 MiB scoped defaults, < 64 MiB v7x physical


def _round_up(v, m):
    return ((v + m - 1) // m) * m


def _pick_channel_tile(c):
    # Lane-dense channel tile when possible; whole channel dim for small c.
    for t in (256, 128):
        if c % t == 0:
            return t
    return c


# ----------------------------------------------------------------------------
# Kernel 1: cv1 = 1x1 conv (bf16 MXU matmul) + BatchNorm (f32 epilogue) + SiLU
# ----------------------------------------------------------------------------
def _conv1x1_kernel(x_ref, w_ref, s_ref, b_ref, o_ref):
    y = jnp.dot(x_ref[...], w_ref[...], preferred_element_type=jnp.float32)
    y = y * s_ref[...] + b_ref[...]          # BN scale + shift, f32
    y = y * jax.nn.sigmoid(y)                # SiLU
    o_ref[...] = y.astype(o_ref.dtype)


def conv1x1_bn_silu(x2d, w, scale, shift, out_dtype=jnp.bfloat16, tm=1024):
    """x2d: (M, K); w: (K, Cout) raw conv weight; scale/shift: (1, Cout) BN."""
    M, K = x2d.shape
    Cout = w.shape[1]
    tm = min(tm, _round_up(M, 8))
    out_bytes = 2 if out_dtype == jnp.bfloat16 else 4
    cost = pl.CostEstimate(
        flops=2 * M * K * Cout,
        transcendentals=M * Cout,
        bytes_accessed=M * K * 2 + K * Cout * 2 + M * Cout * out_bytes)
    return pl.pallas_call(
        _conv1x1_kernel,
        out_shape=jax.ShapeDtypeStruct((M, Cout), out_dtype),
        grid=(pl.cdiv(M, tm),),
        in_specs=[
            pl.BlockSpec((tm, K), lambda i: (i, 0)),
            pl.BlockSpec((K, Cout), lambda i: (0, 0)),
            pl.BlockSpec((1, Cout), lambda i: (0, 0)),
            pl.BlockSpec((1, Cout), lambda i: (0, 0)),
        ],
        out_specs=pl.BlockSpec((tm, Cout), lambda i: (i, 0)),
        compiler_params=pltpu.CompilerParams(
            dimension_semantics=("parallel",),
            vmem_limit_bytes=_VMEM_LIMIT),
        cost_estimate=cost,
    )(x2d.astype(jnp.bfloat16), w.astype(jnp.bfloat16),
      scale.astype(jnp.float32), shift.astype(jnp.float32))


# ----------------------------------------------------------------------------
# Kernel 2: fused (maxpool5 x 3) + channel concat + cv2 1x1 conv + BN + SiLU
#   cat([x, y1, y2, y3], C) @ W2  ==  x@W2a + y1@W2b + y2@W2c + y3@W2d
# ----------------------------------------------------------------------------
def _sppf_pool_cv2_kernel(h_ref, w_ref, s_ref, b_ref, o_ref, acc_ref, pad_ref):
    ct = pl.program_id(1)
    n_ct = pl.num_programs(1)

    x_bf = h_ref[0]                           # (H, W, TC) bf16
    H, W, TC = x_bf.shape
    HW = H * W
    neg = jnp.float32(-jnp.inf)

    @pl.when(ct == 0)
    def _():
        acc_ref[...] = jnp.zeros_like(acc_ref)

    # -inf border rows of the H-padded VMEM scratch (replaces host-side jnp.pad)
    border = jnp.full((2, W, TC), neg, jnp.float32)
    pad_ref[0:2, :, :] = border
    pad_ref[H + 2:H + 4, :, :] = border

    # One-sided validity masks for the W taps; computed once, shared by 3 pools.
    col = lax.broadcasted_iota(jnp.int32, (H, W, TC), 1)
    w_taps = ((1, col >= 1), (2, col >= 2),
              (W - 2, col < W - 2), (W - 1, col < W - 1))

    def pool5(v):                             # f32 (H, W, TC) -> f32 (H, W, TC)
        # W-direction taps: XLU rolls, edge columns masked to -inf.
        r = v
        for sft, valid in w_taps:
            r = jnp.maximum(
                r, jnp.where(valid, pltpu.roll(v, shift=sft, axis=1), neg))
        # H-direction taps: static leading-dim slices of the -inf bordered scratch.
        pad_ref[2:2 + H, :, :] = r
        out = pad_ref[0:H, :, :]
        for dh in range(1, 5):
            out = jnp.maximum(out, pad_ref[dh:dh + H, :, :])
        return out

    xf = x_bf.astype(jnp.float32)
    y1 = pool5(xf)
    y2 = pool5(y1)
    y3 = pool5(y2)

    def mm(v_bf16, k):                        # partial matmul for one concat section
        return jnp.dot(v_bf16.reshape(HW, TC), w_ref[k],
                       preferred_element_type=jnp.float32)

    acc_ref[...] += (mm(x_bf, 0)
                     + mm(y1.astype(jnp.bfloat16), 1)
                     + mm(y2.astype(jnp.bfloat16), 2)
                     + mm(y3.astype(jnp.bfloat16), 3))

    @pl.when(ct == n_ct - 1)
    def _():
        y = acc_ref[...] * s_ref[...] + b_ref[...]    # BN in f32
        o_ref[0] = (y * jax.nn.sigmoid(y)).astype(o_ref.dtype)


def sppf_pool_cv2_fused(h_nhwc, w_stack, scale, shift, out_dtype=jnp.float32):
    """h_nhwc: (N, H, W, c_) bf16; w_stack: (4, c_, c2) raw cv2 weight sections
    ordered [x, y1, y2, y3]; scale/shift: (1, c2). Returns (N, H*W, c2)."""
    N, H, W, c_ = h_nhwc.shape
    assert W > 4, "W-direction roll+mask scheme assumes W > 4"
    assert w_stack.shape[0] == 4 and w_stack.shape[1] == c_
    c2 = w_stack.shape[2]
    tc = _pick_channel_tile(c_)
    n_ct = c_ // tc
    HW = H * W
    M = N * HW
    cost = pl.CostEstimate(
        flops=2 * M * (4 * c_) * c2 + 13 * 3 * M * c_,
        transcendentals=M * c2,
        bytes_accessed=M * c_ * 2 + 4 * c_ * c2 * 2 + M * c2 * 4)
    return pl.pallas_call(
        _sppf_pool_cv2_kernel,
        out_shape=jax.ShapeDtypeStruct((N, HW, c2), out_dtype),
        grid=(N, n_ct),
        in_specs=[
            pl.BlockSpec((1, H, W, tc), lambda n, ct: (n, 0, 0, ct)),
            pl.BlockSpec((4, tc, c2), lambda n, ct: (0, ct, 0)),
            pl.BlockSpec((1, c2), lambda n, ct: (0, 0)),
            pl.BlockSpec((1, c2), lambda n, ct: (0, 0)),
        ],
        out_specs=pl.BlockSpec((1, HW, c2), lambda n, ct: (n, 0, 0)),
        scratch_shapes=[
            pltpu.VMEM((HW, c2), jnp.float32),        # cv2 f32 accumulator
            pltpu.VMEM((H + 4, W, tc), jnp.float32),  # -inf bordered H-pad scratch
        ],
        compiler_params=pltpu.CompilerParams(
            dimension_semantics=("parallel", "arbitrary"),
            vmem_limit_bytes=_VMEM_LIMIT),
        cost_estimate=cost,
    )(h_nhwc.astype(jnp.bfloat16), w_stack.astype(jnp.bfloat16),
      scale.astype(jnp.float32), shift.astype(jnp.float32))


# ----------------------------------------------------------------------------
# Parameter plumbing and SPPF forward
# ----------------------------------------------------------------------------
def _split_conv_bn(p):
    """1x1 conv weight as (Cin, Cout) + BN scale/shift rows (applied in-kernel)."""
    w = p["w"]                               # torch layout (Cout, Cin, 1, 1)
    cout, cin = w.shape[0], w.shape[1]
    wm = w.reshape(cout, cin).T              # (Cin, Cout)
    scale = p["gamma"] / jnp.sqrt(p["var"] + BN_EPS)
    shift = p["beta"] - p["mean"] * scale
    return wm, scale.reshape(1, -1), shift.reshape(1, -1)


def sppf_forward(x_nchw, params):
    N, C1, H, W = x_nchw.shape
    x = jnp.transpose(x_nchw, (0, 2, 3, 1))               # NCHW -> NHWC

    w1, s1, b1 = _split_conv_bn(params["cv1"])
    c_ = w1.shape[1]
    h2d = conv1x1_bn_silu(x.reshape(-1, C1), w1, s1, b1,
                          out_dtype=jnp.bfloat16)          # (M, c_)
    h = h2d.reshape(N, H, W, c_)

    w2, s2, b2 = _split_conv_bn(params["cv2"])
    c2 = w2.shape[1]
    w2_stack = w2.reshape(4, c_, c2)                       # [x | y1 | y2 | y3]
    out3d = sppf_pool_cv2_fused(h, w2_stack, s2, b2,
                                out_dtype=jnp.float32)      # (N, H*W, c2)
    out = out3d.reshape(N, H, W, c2)
    return jnp.transpose(out, (0, 3, 1, 2))                # NHWC -> NCHW


# ----------------------------------------------------------------------------
# Pure-JAX reference (f32 everywhere) for a correctness check
# ----------------------------------------------------------------------------
def sppf_reference(x_nchw, params):
    def conv_bn_silu(x_nhwc, p):
        w = p["w"]
        cout, cin = w.shape[0], w.shape[1]
        y = jnp.einsum("nhwc,oc->nhwo", x_nhwc, w.reshape(cout, cin))
        scale = p["gamma"] / jnp.sqrt(p["var"] + BN_EPS)
        y = y * scale + (p["beta"] - p["mean"] * scale)
        return y * jax.nn.sigmoid(y)

    def pool(x):
        return lax.reduce_window(x, -jnp.inf, lax.max, (1, 5, 5, 1),
                                 (1, 1, 1, 1),
                                 [(0, 0), (2, 2), (2, 2), (0, 0)])

    x = jnp.transpose(x_nchw, (0, 2, 3, 1))
    h = conv_bn_silu(x, params["cv1"])
    y1 = pool(h)
    y2 = pool(y1)
    y3 = pool(y2)
    cat = jnp.concatenate([h, y1, y2, y3], axis=-1)
    out = conv_bn_silu(cat, params["cv2"])
    return jnp.transpose(out, (0, 3, 1, 2))


# ----------------------------------------------------------------------------
# Deterministic parameter construction (matches torch module shapes)
# ----------------------------------------------------------------------------
def make_conv_params(key, c_in, c_out, k):
    kw, kg, kb, km, kv = jax.random.split(key, 5)
    return {
        "w": jax.random.normal(kw, (c_out, c_in, k, k), jnp.float32) * 0.1,
        "gamma": 1.0 + 0.1 * jax.random.normal(kg, (c_out,), jnp.float32),
        "beta": 0.05 * jax.random.normal(kb, (c_out,), jnp.float32),
        "mean": 0.05 * jax.random.normal(km, (c_out,), jnp.float32),
        "var": 1.0 + 0.1 * jax.random.uniform(kv, (c_out,), jnp.float32),
    }


def make_sppf_params(key, c1, c2):
    c_ = c1 // 2
    k1, k2 = jax.random.split(key)
    return {
        "cv1": make_conv_params(k1, c1, c_, 1),
        "cv2": make_conv_params(k2, 4 * c_, c2, 1),
    }


if __name__ == "__main__":
    key = jax.random.PRNGKey(0)
    kx, kp = jax.random.split(key)

    # Small shapes: batch=2, c1=4, c2=8, spatial 16x16  (SPPF: c_ = c1//2 = 2)
    N, C1, C2, H, W = 2, 4, 8, 16, 16
    x = jax.random.normal(kx, (N, C1, H, W), jnp.float32)
    params = make_sppf_params(kp, C1, C2)

    fwd = jax.jit(sppf_forward)
    out = fwd(x, params)
    jax.block_until_ready(out)

    assert out.shape == (N, C2, H, W), out.shape
    assert bool(jnp.all(jnp.isfinite(out)))

    ref = sppf_reference(x, params)
    assert bool(jnp.allclose(out, ref, atol=2e-2, rtol=2e-2)), (
        float(jnp.max(jnp.abs(out - ref))))
    print("KERNEL_OK")
</pallas_src>

<mosaic_0001>
module attributes {stable_mosaic.version = 11 : i64} {
  func.func @_conv1x1_kernel(%arg0: i32, %arg1: memref<512x4xbf16, #tpu.memory_space<vmem>>, %arg2: memref<4x2xbf16, #tpu.memory_space<vmem>>, %arg3: memref<1x2xf32, #tpu.memory_space<vmem>>, %arg4: memref<1x2xf32, #tpu.memory_space<vmem>>, %arg5: memref<512x2xbf16, #tpu.memory_space<vmem>>) attributes {dimension_semantics = [#tpu.dimension_semantics<parallel>], iteration_bounds = array<i64: 1>, scalar_prefetch = 0 : i64, scratch_operands = 0 : i64, tpu.core_type = #tpu.core_type<tc>, window_params = [{transform_indices = @transform_0, window_bounds = array<i64: 512, 4>}, {pipeline_mode = #tpu.pipeline_mode<synchronous>, transform_indices = @transform_1, window_bounds = array<i64: 4, 2>}, {pipeline_mode = #tpu.pipeline_mode<synchronous>, transform_indices = @transform_2, window_bounds = array<i64: 1, 2>}, {pipeline_mode = #tpu.pipeline_mode<synchronous>, transform_indices = @transform_3, window_bounds = array<i64: 1, 2>}, {transform_indices = @transform_4, window_bounds = array<i64: 512, 2>}]} {
    %c0 = arith.constant 0 : index
    %c0_0 = arith.constant 0 : index
    %0 = vector.load %arg1[%c0, %c0_0] : memref<512x4xbf16, #tpu.memory_space<vmem>>, vector<512x4xbf16>
    %c0_1 = arith.constant 0 : index
    %c0_2 = arith.constant 0 : index
    %1 = vector.load %arg2[%c0_1, %c0_2] : memref<4x2xbf16, #tpu.memory_space<vmem>>, vector<4x2xbf16>
    %cst = arith.constant dense<0.000000e+00> : vector<512x2xf32>
    %2 = tpu.matmul %0, %1, %cst {dimension_numbers = #tpu.dot_dimension_numbers<[1], [0], [0], [1], [0, 0, 1, 1], [], []>} : vector<512x4xbf16>, vector<4x2xbf16>, vector<512x2xf32> -> vector<512x2xf32>
    %c0_3 = arith.constant 0 : index
    %c0_4 = arith.constant 0 : index
    %3 = vector.load %arg3[%c0_3, %c0_4] : memref<1x2xf32, #tpu.memory_space<vmem>>, vector<1x2xf32>
    %4 = vector.broadcast %3 : vector<1x2xf32> to vector<512x2xf32>
    %5 = arith.mulf %2, %4 : vector<512x2xf32>
    %c0_5 = arith.constant 0 : index
    %c0_6 = arith.constant 0 : index
    %6 = vector.load %arg4[%c0_5, %c0_6] : memref<1x2xf32, #tpu.memory_space<vmem>>, vector<1x2xf32>
    %7 = vector.broadcast %6 : vector<1x2xf32> to vector<512x2xf32>
    %8 = arith.addf %5, %7 : vector<512x2xf32>
    %9 = arith.negf %8 : vector<512x2xf32>
    %10 = math.exp %9 : vector<512x2xf32>
    %cst_7 = arith.constant 1.000000e+00 : f32
    %11 = vector.broadcast %cst_7 : f32 to vector<512x2xf32>
    %12 = arith.addf %11, %10 : vector<512x2xf32>
    %13 = arith.divf %11, %12 : vector<512x2xf32>
    %14 = arith.mulf %8, %13 : vector<512x2xf32>
    %15 = arith.truncf %14 : vector<512x2xf32> to vector<512x2xbf16>
    %c0_8 = arith.constant 0 : index
    %c0_9 = arith.constant 0 : index
    %16 = vector.load %arg5[%c0_8, %c0_9] : memref<512x2xbf16, #tpu.memory_space<vmem>>, vector<512x2xbf16>
    tpu.vector_store %arg5[%c0_8, %c0_9], %15 {strides = array<i32>} : memref<512x2xbf16, #tpu.memory_space<vmem>>, vector<512x2xbf16>,
    return
  }
  func.func @transform_0(%arg0: i32) -> (i32, i32) {
    %c0_i32 = arith.constant 0 : i32
    %c0_i32_0 = arith.constant 0 : i32
    return %arg0, %c0_i32 : i32, i32
  }
  func.func @transform_1(%arg0: i32) -> (i32, i32) {
    %c0_i32 = arith.constant 0 : i32
    %c0_i32_0 = arith.constant 0 : i32
    %c0_i32_1 = arith.constant 0 : i32
    return %c0_i32, %c0_i32_0 : i32, i32
  }
  func.func @transform_2(%arg0: i32) -> (i32, i32) {
    %c0_i32 = arith.constant 0 : i32
    %c0_i32_0 = arith.constant 0 : i32
    %c0_i32_1 = arith.constant 0 : i32
    return %c0_i32, %c0_i32_0 : i32, i32
  }
  func.func @transform_3(%arg0: i32) -> (i32, i32) {
    %c0_i32 = arith.constant 0 : i32
    %c0_i32_0 = arith.constant 0 : i32
    %c0_i32_1 = arith.constant 0 : i32
    return %c0_i32, %c0_i32_0 : i32, i32
  }
  func.func @transform_4(%arg0: i32) -> (i32, i32) {
    %c0_i32 = arith.constant 0 : i32
    %c0_i32_0 = arith.constant 0 : i32
    return %arg0, %c0_i32 : i32, i32
  }
}

module attributes {stable_mosaic.version = 11 : i64} {
  func.func @_sppf_pool_cv2_kernel(%arg0: i32, %arg1: i32, %arg2: memref<1x16x16x2xbf16, #tpu.memory_space<vmem>>, %arg3: memref<4x2x8xbf16, #tpu.memory_space<vmem>>, %arg4: memref<1x8xf32, #tpu.memory_space<vmem>>, %arg5: memref<1x8xf32, #tpu.memory_space<vmem>>, %arg6: memref<1x256x8xf32, #tpu.memory_space<vmem>>, %arg7: memref<256x8xf32, #tpu.memory_space<vmem>>, %arg8: memref<20x16x2xf32, #tpu.memory_space<vmem>>) attributes {dimension_semantics = [#tpu.dimension_semantics<parallel>, #tpu.dimension_semantics<arbitrary>], iteration_bounds = array<i64: 2, 1>, scalar_prefetch = 0 : i64, scratch_operands = 2 : i64, tpu.core_type = #tpu.core_type<tc>, window_params = [{transform_indices = @transform_0, window_bounds = array<i64: 1, 16, 16, 2>}, {transform_indices = @transform_1, window_bounds = array<i64: 4, 2, 8>}, {pipeline_mode = #tpu.pipeline_mode<synchronous>, transform_indices = @transform_2, window_bounds = array<i64: 1, 8>}, {pipeline_mode = #tpu.pipeline_mode<synchronous>, transform_indices = @transform_3, window_bounds = array<i64: 1, 8>}, {transform_indices = @transform_4, window_bounds = array<i64: 1, 256, 8>}]} {
    %c0 = arith.constant 0 : index
    %c0_0 = arith.constant 0 : index
    %c0_1 = arith.constant 0 : index
    %c0_2 = arith.constant 0 : index
    %0 = vector.load %arg2[%c0, %c0_0, %c0_1, %c0_2] : memref<1x16x16x2xbf16, #tpu.memory_space<vmem>>, vector<1x16x16x2xbf16>
    %1 = vector.shape_cast %0 : vector<1x16x16x2xbf16> to vector<16x16x2xbf16>
    %c0_i32 = arith.constant 0 : i32
    %2 = arith.cmpi eq, %arg1, %c0_i32 : i32
    %3 = arith.extui %2 : i1 to i32
    %c0_i32_3 = arith.constant 0 : i32
    %4 = arith.cmpi ne, %3, %c0_i32_3 : i32
    scf.if %4 {
      %cst_105 = arith.constant 0.000000e+00 : f32
      %124 = vector.broadcast %cst_105 : f32 to vector<256x8xf32>
      %c0_106 = arith.constant 0 : index
      %c0_107 = arith.constant 0 : index
      %125 = vector.load %arg7[%c0_106, %c0_107] : memref<256x8xf32, #tpu.memory_space<vmem>>, vector<256x8xf32>
      tpu.vector_store %arg7[%c0_106, %c0_107], %124 {strides = array<i32>} : memref<256x8xf32, #tpu.memory_space<vmem>>, vector<256x8xf32>,
    } else {
    }
    %cst = arith.constant 0xFF800000 : f32
    %5 = vector.broadcast %cst : f32 to vector<2x16x2xf32>
    %c0_4 = arith.constant 0 : index
    %c0_5 = arith.constant 0 : index
    %c0_6 = arith.constant 0 : index
    %6 = vector.load %arg8[%c0_4, %c0_5, %c0_6] : memref<20x16x2xf32, #tpu.memory_space<vmem>>, vector<2x16x2xf32>
    tpu.vector_store %arg8[%c0_4, %c0_5, %c0_6], %5 {strides = array<i32>} : memref<20x16x2xf32, #tpu.memory_space<vmem>>, vector<2x16x2xf32>,
    %c18 = arith.constant 18 : index
    %c0_7 = arith.constant 0 : index
    %c0_8 = arith.constant 0 : index
    %7 = vector.load %arg8[%c18, %c0_7, %c0_8] : memref<20x16x2xf32, #tpu.memory_space<vmem>>, vector<2x16x2xf32>
    tpu.vector_store %arg8[%c18, %c0_7, %c0_8], %5 {strides = array<i32>} : memref<20x16x2xf32, #tpu.memory_space<vmem>>, vector<2x16x2xf32>,
    %8 = tpu.iota {dimensions = array<i32: 1>} : vector<16x16x2xi32>
    %c1_i32 = arith.constant 1 : i32
    %9 = vector.broadcast %c1_i32 : i32 to vector<16x16x2xi32>
    %10 = arith.cmpi sge, %8, %9 : vector<16x16x2xi32>
    %c2_i32 = arith.constant 2 : i32
    %11 = vector.broadcast %c2_i32 : i32 to vector<16x16x2xi32>
    %12 = arith.cmpi sge, %8, %11 : vector<16x16x2xi32>
    %c14_i32 = arith.constant 14 : i32
    %13 = vector.broadcast %c14_i32 : i32 to vector<16x16x2xi32>
    %14 = arith.cmpi slt, %8, %13 : vector<16x16x2xi32>
    %c15_i32 = arith.constant 15 : i32
    %15 = vector.broadcast %c15_i32 : i32 to vector<16x16x2xi32>
    %16 = arith.cmpi slt, %8, %15 : vector<16x16x2xi32>
    %17 = arith.extf %1 : vector<16x16x2xbf16> to vector<16x16x2xf32>
    %c1_i32_9 = arith.constant 1 : i32
    %18 = tpu.dynamic_rotate %17 by %c1_i32_9 dim 1 : vector<16x16x2xf32>, i32 -> vector<16x16x2xf32>
    %cst_10 = arith.constant 0xFF800000 : f32
    %19 = vector.broadcast %cst_10 : f32 to vector<16x16x2xf32>
    %20 = arith.select %10, %18, %19 : vector<16x16x2xi1>, vector<16x16x2xf32>
    %21 = arith.maximumf %17, %20 : vector<16x16x2xf32>
    %c2_i32_11 = arith.constant 2 : i32
    %22 = tpu.dynamic_rotate %17 by %c2_i32_11 dim 1 : vector<16x16x2xf32>, i32 -> vector<16x16x2xf32>
    %cst_12 = arith.constant 0xFF800000 : f32
    %23 = vector.broadcast %cst_12 : f32 to vector<16x16x2xf32>
    %24 = arith.select %12, %22, %23 : vector<16x16x2xi1>, vector<16x16x2xf32>
    %25 = arith.maximumf %21, %24 : vector<16x16x2xf32>
    %c14_i32_13 = arith.constant 14 : i32
    %26 = tpu.dynamic_rotate %17 by %c14_i32_13 dim 1 : vector<16x16x2xf32>, i32 -> vector<16x16x2xf32>
    %cst_14 = arith.constant 0xFF800000 : f32
    %27 = vector.broadcast %cst_14 : f32 to vector<16x16x2xf32>
    %28 = arith.select %14, %26, %27 : vector<16x16x2xi1>, vector<16x16x2xf32>
    %29 = arith.maximumf %25, %28 : vector<16x16x2xf32>
    %c15_i32_15 = arith.constant 15 : i32
    %30 = tpu.dynamic_rotate %17 by %c15_i32_15 dim 1 : vector<16x16x2xf32>, i32 -> vector<16x16x2xf32>
    %cst_16 = arith.constant 0xFF800000 : f32
    %31 = vector.broadcast %cst_16 : f32 to vector<16x16x2xf32>
    %32 = arith.select %16, %30, %31 : vector<16x16x2xi1>, vector<16x16x2xf32>
    %33 = arith.maximumf %29, %32 : vector<16x16x2xf32>
    %c2 = arith.constant 2 : index
    %c0_17 = arith.constant 0 : index
    %c0_18 = arith.constant 0 : index
    %34 = vector.load %arg8[%c2, %c0_17, %c0_18] : memref<20x16x2xf32, #tpu.memory_space<vmem>>, vector<16x16x2xf32>
    tpu.vector_store %arg8[%c2, %c0_17, %c0_18], %33 {strides = array<i32>} : memref<20x16x2xf32, #tpu.memory_space<vmem>>, vector<16x16x2xf32>,
    %c0_19 = arith.constant 0 : index
    %c0_20 = arith.constant 0 : index
    %c0_21 = arith.constant 0 : index
    %35 = vector.load %arg8[%c0_19, %c0_20, %c0_21] : memref<20x16x2xf32, #tpu.memory_space<vmem>>, vector<16x16x2xf32>
    %c1 = arith.constant 1 : index
    %c0_22 = arith.constant 0 : index
    %c0_23 = arith.constant 0 : index
    %36 = vector.load %arg8[%c1, %c0_22, %c0_23] : memref<20x16x2xf32, #tpu.memory_space<vmem>>, vector<16x16x2xf32>
    %37 = arith.maximumf %35, %36 : vector<16x16x2xf32>
    %c2_24 = arith.constant 2 : index
    %c0_25 = arith.constant 0 : index
    %c0_26 = arith.constant 0 : index
    %38 = vector.load %arg8[%c2_24, %c0_25, %c0_26] : memref<20x16x2xf32, #tpu.memory_space<vmem>>, vector<16x16x2xf32>
    %39 = arith.maximumf %37, %38 : vector<16x16x2xf32>
    %c3 = arith.constant 3 : index
    %c0_27 = arith.constant 0 : index
    %c0_28 = arith.constant 0 : index
    %40 = vector.load %arg8[%c3, %c0_27, %c0_28] : memref<20x16x2xf32, #tpu.memory_space<vmem>>, vector<16x16x2xf32>
    %41 = arith.maximumf %39, %40 : vector<16x16x2xf32>
    %c4 = arith.constant 4 : index
    %c0_29 = arith.constant 0 : index
    %c0_30 = arith.constant 0 : index
    %42 = vector.load %arg8[%c4, %c0_29, %c0_30] : memref<20x16x2xf32, #tpu.memory_space<vmem>>, vector<16x16x2xf32>
    %43 = arith.maximumf %41, %42 : vector<16x16x2xf32>
    %c1_i32_31 = arith.constant 1 : i32
    %44 = tpu.dynamic_rotate %43 by %c1_i32_31 dim 1 : vector<16x16x2xf32>, i32 -> vector<16x16x2xf32>
    %cst_32 = arith.constant 0xFF800000 : f32
    %45 = vector.broadcast %cst_32 : f32 to vector<16x16x2xf32>
    %46 = arith.select %10, %44, %45 : vector<16x16x2xi1>, vector<16x16x2xf32>
    %47 = arith.maximumf %43, %46 : vector<16x16x2xf32>
    %c2_i32_33 = arith.constant 2 : i32
    %48 = tpu.dynamic_rotate %43 by %c2_i32_33 dim 1 : vector<16x16x2xf32>, i32 -> vector<16x16x2xf32>
    %cst_34 = arith.constant 0xFF800000 : f32
    %49 = vector.broadcast %cst_34 : f32 to vector<16x16x2xf32>
    %50 = arith.select %12, %48, %49 : vector<16x16x2xi1>, vector<16x16x2xf32>
    %51 = arith.maximumf %47, %50 : vector<16x16x2xf32>
    %c14_i32_35 = arith.constant 14 : i32
    %52 = tpu.dynamic_rotate %43 by %c14_i32_35 dim 1 : vector<16x16x2xf32>, i32 -> vector<16x16x2xf32>
    %cst_36 = arith.constant 0xFF800000 : f32
    %53 = vector.broadcast %cst_36 : f32 to vector<16x16x2xf32>
    %54 = arith.select %14, %52, %53 : vector<16x16x2xi1>, vector<16x16x2xf32>
    %55 = arith.maximumf %51, %54 : vector<16x16x2xf32>
    %c15_i32_37 = arith.constant 15 : i32
    %56 = tpu.dynamic_rotate %43 by %c15_i32_37 dim 1 : vector<16x16x2xf32>, i32 -> vector<16x16x2xf32>
    %cst_38 = arith.constant 0xFF800000 : f32
    %57 = vector.broadcast %cst_38 : f32 to vector<16x16x2xf32>
    %58 = arith.select %16, %56, %57 : vector<16x16x2xi1>, vector<16x16x2xf32>
    %59 = arith.maximumf %55, %58 : vector<16x16x2xf32>
    %c2_39 = arith.constant 2 : index
    %c0_40 = arith.constant 0 : index
    %c0_41 = arith.constant 0 : index
    %60 = vector.load %arg8[%c2_39, %c0_40, %c0_41] : memref<20x16x2xf32, #tpu.memory_space<vmem>>, vector<16x16x2xf32>
    tpu.vector_store %arg8[%c2_39, %c0_40, %c0_41], %59 {strides = array<i32>} : memref<20x16x2xf32, #tpu.memory_space<vmem>>, vector<16x16x2xf32>,
    %c0_42 = arith.constant 0 : index
    %c0_43 = arith.constant 0 : index
    %c0_44 = arith.constant 0 : index
    %61 = vector.load %arg8[%c0_42, %c0_43, %c0_44] : memref<20x16x2xf32, #tpu.memory_space<vmem>>, vector<16x16x2xf32>
    %c1_45 = arith.constant 1 : index
    %c0_46 = arith.constant 0 : index
    %c0_47 = arith.constant 0 : index
    %62 = vector.load %arg8[%c1_45, %c0_46, %c0_47] : memref<20x16x2xf32, #tpu.memory_space<vmem>>, vector<16x16x2xf32>
    %63 = arith.maximumf %61, %62 : vector<16x16x2xf32>
    %c2_48 = arith.constant 2 : index
    %c0_49 = arith.constant 0 : index
    %c0_50 = arith.constant 0 : index
    %64 = vector.load %arg8[%c2_48, %c0_49, %c0_50] : memref<20x16x2xf32, #tpu.memory_space<vmem>>, vector<16x16x2xf32>
    %65 = arith.maximumf %63, %64 : vector<16x16x2xf32>
    %c3_51 = arith.constant 3 : index
    %c0_52 = arith.constant 0 : index
    %c0_53 = arith.constant 0 : index
    %66 = vector.load %arg8[%c3_51, %c0_52, %c0_53] : memref<20x16x2xf32, #tpu.memory_space<vmem>>, vector<16x16x2xf32>
    %67 = arith.maximumf %65, %66 : vector<16x16x2xf32>
    %c4_54 = arith.constant 4 : index
    %c0_55 = arith.constant 0 : index
    %c0_56 = arith.constant 0 : index
    %68 = vector.load %arg8[%c4_54, %c0_55, %c0_56] : memref<20x16x2xf32, #tpu.memory_space<vmem>>, vector<16x16x2xf32>
    %69 = arith.maximumf %67, %68 : vector<16x16x2xf32>
    %c1_i32_57 = arith.constant 1 : i32
    %70 = tpu.dynamic_rotate %69 by %c1_i32_57 dim 1 : vector<16x16x2xf32>, i32 -> vector<16x16x2xf32>
    %cst_58 = arith.constant 0xFF800000 : f32
    %71 = vector.broadcast %cst_58 : f32 to vector<16x16x2xf32>
    %72 = arith.select %10, %70, %71 : vector<16x16x2xi1>, vector<16x16x2xf32>
    %73 = arith.maximumf %69, %72 : vector<16x16x2xf32>
    %c2_i32_59 = arith.constant 2 : i32
    %74 = tpu.dynamic_rotate %69 by %c2_i32_59 dim 1 : vector<16x16x2xf32>, i32 -> vector<16x16x2xf32>
    %cst_60 = arith.constant 0xFF800000 : f32
    %75 = vector.broadcast %cst_60 : f32 to vector<16x16x2xf32>
    %76 = arith.select %12, %74, %75 : vector<16x16x2xi1>, vector<16x16x2xf32>
    %77 = arith.maximumf %73, %76 : vector<16x16x2xf32>
    %c14_i32_61 = arith.constant 14 : i32
    %78 = tpu.dynamic_rotate %69 by %c14_i32_61 dim 1 : vector<16x16x2xf32>, i32 -> vector<16x16x2xf32>
    %cst_62 = arith.constant 0xFF800000 : f32
    %79 = vector.broadcast %cst_62 : f32 to vector<16x16x2xf32>
    %80 = arith.select %14, %78, %79 : vector<16x16x2xi1>, vector<16x16x2xf32>
    %81 = arith.maximumf %77, %80 : vector<16x16x2xf32>
    %c15_i32_63 = arith.constant 15 : i32
    %82 = tpu.dynamic_rotate %69 by %c15_i32_63 dim 1 : vector<16x16x2xf32>, i32 -> vector<16x16x2xf32>
    %cst_64 = arith.constant 0xFF800000 : f32
    %83 = vector.broadcast %cst_64 : f32 to vector<16x16x2xf32>
    %84 = arith.select %16, %82, %83 : vector<16x16x2xi1>, vector<16x16x2xf32>
    %85 = arith.maximumf %81, %84 : vector<16x16x2xf32>
    %c2_65 = arith.constant 2 : index
    %c0_66 = arith.constant 0 : index
    %c0_67 = arith.constant 0 : index
    %86 = vector.load %arg8[%c2_65, %c0_66, %c0_67] : memref<20x16x2xf32, #tpu.memory_space<vmem>>, vector<16x16x2xf32>
    tpu.vector_store %arg8[%c2_65, %c0_66, %c0_67], %85 {strides = array<i32>} : memref<20x16x2xf32, #tpu.memory_space<vmem>>, vector<16x16x2xf32>,
    %c0_68 = arith.constant 0 : index
    %c0_69 = arith.constant 0 : index
    %c0_70 = arith.constant 0 : index
    %87 = vector.load %arg8[%c0_68, %c0_69, %c0_70] : memref<20x16x2xf32, #tpu.memory_space<vmem>>, vector<16x16x2xf32>
    %c1_71 = arith.constant 1 : index
    %c0_72 = arith.constant 0 : index
    %c0_73 = arith.constant 0 : index
    %88 = vector.load %arg8[%c1_71, %c0_72, %c0_73] : memref<20x16x2xf32, #tpu.memory_space<vmem>>, vector<16x16x2xf32>
    %89 = arith.maximumf %87, %88 : vector<16x16x2xf32>
    %c2_74 = arith.constant 2 : index
    %c0_75 = arith.constant 0 : index
    %c0_76 = arith.constant 0 : index
    %90 = vector.load %arg8[%c2_74, %c0_75, %c0_76] : memref<20x16x2xf32, #tpu.memory_space<vmem>>, vector<16x16x2xf32>
    %91 = arith.maximumf %89, %90 : vector<16x16x2xf32>
    %c3_77 = arith.constant 3 : index
    %c0_78 = arith.constant 0 : index
    %c0_79 = arith.constant 0 : index
    %92 = vector.load %arg8[%c3_77, %c0_78, %c0_79] : memref<20x16x2xf32, #tpu.memory_space<vmem>>, vector<16x16x2xf32>
    %93 = arith.maximumf %91, %92 : vector<16x16x2xf32>
    %c4_80 = arith.constant 4 : index
    %c0_81 = arith.constant 0 : index
    %c0_82 = arith.constant 0 : index
    %94 = vector.load %arg8[%c4_80, %c0_81, %c0_82] : memref<20x16x2xf32, #tpu.memory_space<vmem>>, vector<16x16x2xf32>
    %95 = arith.maximumf %93, %94 : vector<16x16x2xf32>
    %c0_83 = arith.constant 0 : index
    %c0_84 = arith.constant 0 : index
    %96 = vector.load %arg7[%c0_83, %c0_84] : memref<256x8xf32, #tpu.memory_space<vmem>>, vector<256x8xf32>
    %97 = vector.shape_cast %1 : vector<16x16x2xbf16> to vector<256x2xbf16>
    %c0_85 = arith.constant 0 : index
    %c0_86 = arith.constant 0 : index
    %c0_87 = arith.constant 0 : index
    %98 = vector.load %arg3[%c0_85, %c0_86, %c0_87] : memref<4x2x8xbf16, #tpu.memory_space<vmem>>, vector<1x2x8xbf16>
    %99 = vector.shape_cast %98 : vector<1x2x8xbf16> to vector<2x8xbf16>
    %cst_88 = arith.constant dense<0.000000e+00> : vector<256x8xf32>
    %100 = tpu.matmul %97, %99, %cst_88 {dimension_numbers = #tpu.dot_dimension_numbers<[1], [0], [0], [1], [0, 0, 1, 1], [], []>} : vector<256x2xbf16>, vector<2x8xbf16>, vector<256x8xf32> -> vector<256x8xf32>
    %101 = arith.truncf %43 : vector<16x16x2xf32> to vector<16x16x2xbf16>
    %102 = vector.shape_cast %101 : vector<16x16x2xbf16> to vector<256x2xbf16>
    %c1_89 = arith.constant 1 : index
    %c0_90 = arith.constant 0 : index
    %c0_91 = arith.constant 0 : index
    %103 = vector.load %arg3[%c1_89, %c0_90, %c0_91] : memref<4x2x8xbf16, #tpu.memory_space<vmem>>, vector<1x2x8xbf16>
    %104 = vector.shape_cast %103 : vector<1x2x8xbf16> to vector<2x8xbf16>
    %cst_92 = arith.constant dense<0.000000e+00> : vector<256x8xf32>
    %105 = tpu.matmul %102, %104, %cst_92 {dimension_numbers = #tpu.dot_dimension_numbers<[1], [0], [0], [1], [0, 0, 1, 1], [], []>} : vector<256x2xbf16>, vector<2x8xbf16>, vector<256x8xf32> -> vector<256x8xf32>
    %106 = arith.addf %100, %105 : vector<256x8xf32>
    %107 = arith.truncf %69 : vector<16x16x2xf32> to vector<16x16x2xbf16>
    %108 = vector.shape_cast %107 : vector<16x16x2xbf16> to vector<256x2xbf16>
    %c2_93 = arith.constant 2 : index
    %c0_94 = arith.constant 0 : index
    %c0_95 = arith.constant 0 : index
    %109 = vector.load %arg3[%c2_93, %c0_94, %c0_95] : memref<4x2x8xbf16, #tpu.memory_space<vmem>>, vector<1x2x8xbf16>
    %110 = vector.shape_cast %109 : vector<1x2x8xbf16> to vector<2x8xbf16>
    %cst_96 = arith.constant dense<0.000000e+00> : vector<256x8xf32>
    %111 = tpu.matmul %108, %110, %cst_96 {dimension_numbers = #tpu.dot_dimension_numbers<[1], [0], [0], [1], [0, 0, 1, 1], [], []>} : vector<256x2xbf16>, vector<2x8xbf16>, vector<256x8xf32> -> vector<256x8xf32>
    %112 = arith.addf %106, %111 : vector<256x8xf32>
    %113 = arith.truncf %95 : vector<16x16x2xf32> to vector<16x16x2xbf16>
    %114 = vector.shape_cast %113 : vector<16x16x2xbf16> to vector<256x2xbf16>
    %c3_97 = arith.constant 3 : index
    %c0_98 = arith.constant 0 : index
    %c0_99 = arith.constant 0 : index
    %115 = vector.load %arg3[%c3_97, %c0_98, %c0_99] : memref<4x2x8xbf16, #tpu.memory_space<vmem>>, vector<1x2x8xbf16>
    %116 = vector.shape_cast %115 : vector<1x2x8xbf16> to vector<2x8xbf16>
    %cst_100 = arith.constant dense<0.000000e+00> : vector<256x8xf32>
    %117 = tpu.matmul %114, %116, %cst_100 {dimension_numbers = #tpu.dot_dimension_numbers<[1], [0], [0], [1], [0, 0, 1, 1], [], []>} : vector<256x2xbf16>, vector<2x8xbf16>, vector<256x8xf32> -> vector<256x8xf32>
    %118 = arith.addf %112, %117 : vector<256x8xf32>
    %119 = arith.addf %96, %118 : vector<256x8xf32>
    %c0_101 = arith.constant 0 : index
    %c0_102 = arith.constant 0 : index
    %120 = vector.load %arg7[%c0_101, %c0_102] : memref<256x8xf32, #tpu.memory_space<vmem>>, vector<256x8xf32>
    tpu.vector_store %arg7[%c0_101, %c0_102], %119 {strides = array<i32>} : memref<256x8xf32, #tpu.memory_space<vmem>>, vector<256x8xf32>,
    %c0_i32_103 = arith.constant 0 : i32
    %121 = arith.cmpi eq, %arg1, %c0_i32_103 : i32
    %122 = arith.extui %121 : i1 to i32
    %c0_i32_104 = arith.constant 0 : i32
    %123 = arith.cmpi ne, %122, %c0_i32_104 : i32
    scf.if %123 {
      %c0_105 = arith.constant 0 : index
      %c0_106 = arith.constant 0 : index
      %124 = vector.load %arg7[%c0_105, %c0_106] : memref<256x8xf32, #tpu.memory_space<vmem>>, vector<256x8xf32>
      %c0_107 = arith.constant 0 : index
      %c0_108 = arith.constant 0 : index
      %125 = vector.load %arg4[%c0_107, %c0_108] : memref<1x8xf32, #tpu.memory_space<vmem>>, vector<1x8xf32>
      %126 = vector.broadcast %125 : vector<1x8xf32> to vector<256x8xf32>
      %127 = arith.mulf %124, %126 : vector<256x8xf32>
      %c0_109 = arith.constant 0 : index
      %c0_110 = arith.constant 0 : index
      %128 = vector.load %arg5[%c0_109, %c0_110] : memref<1x8xf32, #tpu.memory_space<vmem>>, vector<1x8xf32>
      %129 = vector.broadcast %128 : vector<1x8xf32> to vector<256x8xf32>
      %130 = arith.addf %127, %129 : vector<256x8xf32>
      %131 = arith.negf %130 : vector<256x8xf32>
      %132 = math.exp %131 : vector<256x8xf32>
      %cst_111 = arith.constant 1.000000e+00 : f32
      %133 = vector.broadcast %cst_111 : f32 to vector<256x8xf32>
      %134 = arith.addf %133, %132 : vector<256x8xf32>
      %135 = arith.divf %133, %134 : vector<256x8xf32>
      %136 = arith.mulf %130, %135 : vector<256x8xf32>
      %c0_112 = arith.constant 0 : index
      %c0_113 = arith.constant 0 : index
      %c0_114 = arith.constant 0 : index
      %137 = vector.load %arg6[%c0_112, %c0_113, %c0_114] : memref<1x256x8xf32, #tpu.memory_space<vmem>>, vector<1x256x8xf32>
      %138 = vector.shape_cast %137 : vector<1x256x8xf32> to vector<256x8xf32>
      %139 = vector.shape_cast %136 : vector<256x8xf32> to vector<1x256x8xf32>
      tpu.vector_store %arg6[%c0_112, %c0_113, %c0_114], %139 {strides = array<i32>} : memref<1x256x8xf32, #tpu.memory_space<vmem>>, vector<1x256x8xf32>,
    } else {
    }
    return
  }
  func.func @transform_0(%arg0: i32, %arg1: i32) -> (i32, i32, i32, i32) {
    %c0_i32 = arith.constant 0 : i32
    %c0_i32_0 = arith.constant 0 : i32
    %c0_i32_1 = arith.constant 0 : i32
    return %arg0, %c0_i32, %c0_i32_0, %arg1 : i32, i32, i32, i32
  }
  func.func @transform_1(%arg0: i32, %arg1: i32) -> (i32, i32, i32) {
    %c0_i32 = arith.constant 0 : i32
    %c0_i32_0 = arith.constant 0 : i32
    %c0_i32_1 = arith.constant 0 : i32
    return %c0_i32, %arg1, %c0_i32_0 : i32, i32, i32
  }
  func.func @transform_2(%arg0: i32, %arg1: i32) -> (i32, i32) {
    %c0_i32 = arith.constant 0 : i32
    %c0_i32_0 = arith.constant 0 : i32
    %c0_i32_1 = arith.constant 0 : i32
    return %c0_i32, %c0_i32_0 : i32, i32
  }
  func.func @transform_3(%arg0: i32, %arg1: i32) -> (i32, i32) {
    %c0_i32 = arith.constant 0 : i32
    %c0_i32_0 = arith.constant 0 : i32
    %c0_i32_1 = arith.constant 0 : i32
    return %c0_i32, %c0_i32_0 : i32, i32
  }
  func.func @transform_4(%arg0: i32, %arg1: i32) -> (i32, i32, i32) {
    %c0_i32 = arith.constant 0 : i32
    %c0_i32_0 = arith.constant 0 : i32
    %c0_i32_1 = arith.constant 0 : i32
    return %arg0, %c0_i32, %c0_i32_0 : i32, i32, i32
  }
}

</mosaic_0001>

<llo_original>
// kernel: sppf_forward.2
$region0: #{sppf_forward.2}
  #allocation0 [shape = 'u32[]', space=smem, size = 0x4, offset = 0x4, fixed_abs, tag = 'smem constant byte address 0x4 - core index']
  #allocation1 [shape = 'u32[144,128]{1,0:T(1,128)}', space=vmem, size = 0x12000, scoped, tag = 'internal scratch']
  %s0 = inlined_call_operand.vmem [shape: bf16[512,4], index: 0, kind: input, shape index: {}]
  %s1 = inlined_call_operand.vmem [shape: bf16[4,2], index: 1, kind: input, shape index: {}]
  %s2 = inlined_call_operand.vmem [shape: f32[1,2], index: 2, kind: input, shape index: {}]
  %s3 = inlined_call_operand.vmem [shape: f32[1,2], index: 3, kind: input, shape index: {}]
  %s4 = inlined_call_operand.vmem [shape: bf16[512,2], index: 4, kind: output, shape index: {}]
  %s5 = sld [smem:[#allocation0]]
  $region26: #{sppf_forward.2} parent=0
    _
  %s7 = ssub.s32 1, %s5
  %s8 = scalar_select 0, %s7, %s5
  // Predicated region
  $region2: #{sppf_forward.2} parent=0 // pred_check
    _
  $region3: #{sppf_forward.2} parent=0 // pred_check_branch
    %10 = sbr.rel (0) target = $region5
  $region4: #{sppf_forward.2} parent=0 // pred_region
    _
  $region5: #{sppf_forward.2} parent=0 // pred_fallthru
    _
  // Predicated region
  $region6: #{sppf_forward.2} parent=0 // pred_check
    _
  $region7: #{sppf_forward.2} parent=0 // pred_check_branch
    %12 = sbr.rel (0) target = $region9
  $region8: #{sppf_forward.2} parent=0 // pred_region
    _
  $region9: #{sppf_forward.2} parent=0 // pred_fallthru
    _
  // Predicated region
  $region10: #{sppf_forward.2} parent=0 // pred_check
    _
  $region11: #{sppf_forward.2} parent=0 // pred_check_branch
    %14 = sbr.rel (0) target = $region13
  $region12: #{sppf_forward.2} parent=0 // pred_region
    _
  $region13: #{sppf_forward.2} parent=0 // pred_fallthru
    _
  // Predicated region
  $region14: #{sppf_forward.2} parent=0 // pred_check
    _
  $region15: #{sppf_forward.2} parent=0 // pred_check_branch
    %16 = sbr.rel (0) target = $region17
  $region16: #{sppf_forward.2} parent=0 // pred_region
    _
  $region17: #{sppf_forward.2} parent=0 // pred_fallthru
    _
  %v18 = vld [vmem:[%s0] sm:$0xf]
  %v19 = vld [vmem:[%s0 + $0x4] sm:$0xf]
  %v20 = vld [vmem:[%s0 + $0x8] sm:$0xf]
  %v21 = vld [vmem:[%s0 + $0xc] sm:$0xf]
  %v22 = vld [vmem:[%s0 + $0x10] sm:$0xf]
  %v23 = vld [vmem:[%s0 + $0x14] sm:$0xf]
  %v24 = vld [vmem:[%s0 + $0x18] sm:$0xf]
  %v25 = vld [vmem:[%s0 + $0x1c] sm:$0xf]
  %v26 = vld [vmem:[%s0 + $0x20] sm:$0xf]
  %v27 = vld [vmem:[%s0 + $0x24] sm:$0xf]
  %v28 = vld [vmem:[%s0 + $0x28] sm:$0xf]
  %v29 = vld [vmem:[%s0 + $0x2c] sm:$0xf]
  %v30 = vld [vmem:[%s0 + $0x30] sm:$0xf]
  %v31 = vld [vmem:[%s0 + $0x34] sm:$0xf]
  %v32 = vld [vmem:[%s0 + $0x38] sm:$0xf]
  %v33 = vld [vmem:[%s0 + $0x3c] sm:$0xf]
  %v34 = vld [vmem:[%s0 + $0x40] sm:$0xf]
  %v35 = vld [vmem:[%s0 + $0x44] sm:$0xf]
  %v36 = vld [vmem:[%s0 + $0x48] sm:$0xf]
  %v37 = vld [vmem:[%s0 + $0x4c] sm:$0xf]
  %v38 = vld [vmem:[%s0 + $0x50] sm:$0xf]
  %v39 = vld [vmem:[%s0 + $0x54] sm:$0xf]
  %v40 = vld [vmem:[%s0 + $0x58] sm:$0xf]
  %v41 = vld [vmem:[%s0 + $0x5c] sm:$0xf]
  %v42 = vld [vmem:[%s0 + $0x60] sm:$0xf]
  %v43 = vld [vmem:[%s0 + $0x64] sm:$0xf]
  %v44 = vld [vmem:[%s0 + $0x68] sm:$0xf]
  %v45 = vld [vmem:[%s0 + $0x6c] sm:$0xf]
  %v46 = vld [vmem:[%s0 + $0x70] sm:$0xf]
  %v47 = vld [vmem:[%s0 + $0x74] sm:$0xf]
  %v48 = vld [vmem:[%s0 + $0x78] sm:$0xf]
  %v49 = vld [vmem:[%s0 + $0x7c] sm:$0xf]
  %v50 = vld [vmem:[%s0 + $0x80] sm:$0xf]
  %v51 = vld [vmem:[%s0 + $0x84] sm:$0xf]
  %v52 = vld [vmem:[%s0 + $0x88] sm:$0xf]
  %v53 = vld [vmem:[%s0 + $0x8c] sm:$0xf]
  %v54 = vld [vmem:[%s0 + $0x90] sm:$0xf]
  %v55 = vld [vmem:[%s0 + $0x94] sm:$0xf]
  %v56 = vld [vmem:[%s0 + $0x98] sm:$0xf]
  %v57 = vld [vmem:[%s0 + $0x9c] sm:$0xf]
  %v58 = vld [vmem:[%s0 + $0xa0] sm:$0xf]
  %v59 = vld [vmem:[%s0 + $0xa4] sm:$0xf]
  %v60 = vld [vmem:[%s0 + $0xa8] sm:$0xf]
  %v61 = vld [vmem:[%s0 + $0xac] sm:$0xf]
  %v62 = vld [vmem:[%s0 + $0xb0] sm:$0xf]
  %v63 = vld [vmem:[%s0 + $0xb4] sm:$0xf]
  %v64 = vld [vmem:[%s0 + $0xb8] sm:$0xf]
  %v65 = vld [vmem:[%s0 + $0xbc] sm:$0xf]
  %v66 = vld [vmem:[%s0 + $0xc0] sm:$0xf]
  %v67 = vld [vmem:[%s0 + $0xc4] sm:$0xf]
  %v68 = vld [vmem:[%s0 + $0xc8] sm:$0xf]
  %v69 = vld [vmem:[%s0 + $0xcc] sm:$0xf]
  %v70 = vld [vmem:[%s0 + $0xd0] sm:$0xf]
  %v71 = vld [vmem:[%s0 + $0xd4] sm:$0xf]
  %v72 = vld [vmem:[%s0 + $0xd8] sm:$0xf]
  %v73 = vld [vmem:[%s0 + $0xdc] sm:$0xf]
  %v74 = vld [vmem:[%s0 + $0xe0] sm:$0xf]
  %v75 = vld [vmem:[%s0 + $0xe4] sm:$0xf]
  %v76 = vld [vmem:[%s0 + $0xe8] sm:$0xf]
  %v77 = vld [vmem:[%s0 + $0xec] sm:$0xf]
  %v78 = vld [vmem:[%s0 + $0xf0] sm:$0xf]
  %v79 = vld [vmem:[%s0 + $0xf4] sm:$0xf]
  %v80 = vld [vmem:[%s0 + $0xf8] sm:$0xf]
  %v81 = vld [vmem:[%s0 + $0xfc] sm:$0xf]
  %v82 = vld [vmem:[%s1] sm:$0x3]
  %v147 = vunpack.c.l.b16 %v18
  %v148 = vunpack.c.l.b16 %v19
  %v149 = vunpack.c.l.b16 %v20
  %v150 = vunpack.c.l.b16 %v21
  %v151 = vunpack.c.l.b16 %v22
  %v152 = vunpack.c.l.b16 %v23
  %v153 = vunpack.c.l.b16 %v24
  %v154 = vunpack.c.l.b16 %v25
  %v155 = vunpack.c.l.b16 %v26
  %v156 = vunpack.c.l.b16 %v27
  %v157 = vunpack.c.l.b16 %v28
  %v158 = vunpack.c.l.b16 %v29
  %v159 = vunpack.c.l.b16 %v30
  %v160 = vunpack.c.l.b16 %v31
  %v161 = vunpack.c.l.b16 %v32
  %v162 = vunpack.c.l.b16 %v33
  %v163 = vunpack.c.l.b16 %v34
  %v164 = vunpack.c.l.b16 %v35
  %v165 = vunpack.c.l.b16 %v36
  %v166 = vunpack.c.l.b16 %v37
  %v167 = vunpack.c.l.b16 %v38
  %v168 = vunpack.c.l.b16 %v39
  %v169 = vunpack.c.l.b16 %v40
  %v170 = vunpack.c.l.b16 %v41
  %v171 = vunpack.c.l.b16 %v42
  %v172 = vunpack.c.l.b16 %v43
  %v173 = vunpack.c.l.b16 %v44
  %v174 = vunpack.c.l.b16 %v45
  %v175 = vunpack.c.l.b16 %v46
  %v176 = vunpack.c.l.b16 %v47
  %v177 = vunpack.c.l.b16 %v48
  %v178 = vunpack.c.l.b16 %v49
  %v179 = vunpack.c.l.b16 %v50
  %v180 = vunpack.c.l.b16 %v51
  %v181 = vunpack.c.l.b16 %v52
  %v182 = vunpack.c.l.b16 %v53
  %v183 = vunpack.c.l.b16 %v54
  %v184 = vunpack.c.l.b16 %v55
  %v185 = vunpack.c.l.b16 %v56
  %v186 = vunpack.c.l.b16 %v57
  %v187 = vunpack.c.l.b16 %v58
  %v188 = vunpack.c.l.b16 %v59
  %v189 = vunpack.c.l.b16 %v60
  %v190 = vunpack.c.l.b16 %v61
  %v191 = vunpack.c.l.b16 %v62
  %v192 = vunpack.c.l.b16 %v63
  %v193 = vunpack.c.l.b16 %v64
  %v194 = vunpack.c.l.b16 %v65
  %v195 = vunpack.c.l.b16 %v66
  %v196 = vunpack.c.l.b16 %v67
  %v197 = vunpack.c.l.b16 %v68
  %v198 = vunpack.c.l.b16 %v69
  %v199 = vunpack.c.l.b16 %v70
  %v200 = vunpack.c.l.b16 %v71
  %v201 = vunpack.c.l.b16 %v72
  %v202 = vunpack.c.l.b16 %v73
  %v203 = vunpack.c.l.b16 %v74
  %v204 = vunpack.c.l.b16 %v75
  %v205 = vunpack.c.l.b16 %v76
  %v206 = vunpack.c.l.b16 %v77
  %v207 = vunpack.c.l.b16 %v78
  %v208 = vunpack.c.l.b16 %v79
  %v209 = vunpack.c.l.b16 %v80
  %v210 = vunpack.c.l.b16 %v81
  %v211 = vpack.c.b16 %v148, %v147
  %v212 = vpack.c.b16 %v150, %v149
  %v213 = vpack.c.b16 %v152, %v151
  %v214 = vpack.c.b16 %v154, %v153
  %v215 = vpack.c.b16 %v156, %v155
  %v216 = vpack.c.b16 %v158, %v157
  %v217 = vpack.c.b16 %v160, %v159
  %v218 = vpack.c.b16 %v162, %v161
  %v219 = vpack.c.b16 %v164, %v163
  %v220 = vpack.c.b16 %v166, %v165
  %v221 = vpack.c.b16 %v168, %v167
  %v222 = vpack.c.b16 %v170, %v169
  %v223 = vpack.c.b16 %v172, %v171
  %v224 = vpack.c.b16 %v174, %v173
  %v225 = vpack.c.b16 %v176, %v175
  %v226 = vpack.c.b16 %v178, %v177
  %v227 = vpack.c.b16 %v180, %v179
  %v228 = vpack.c.b16 %v182, %v181
  %v229 = vpack.c.b16 %v184, %v183
  %v230 = vpack.c.b16 %v186, %v185
  %v231 = vpack.c.b16 %v188, %v187
  %v232 = vpack.c.b16 %v190, %v189
  %v233 = vpack.c.b16 %v192, %v191
  %v234 = vpack.c.b16 %v194, %v193
  %v235 = vpack.c.b16 %v196, %v195
  %v236 = vpack.c.b16 %v198, %v197
  %v237 = vpack.c.b16 %v200, %v199
  %v238 = vpack.c.b16 %v202, %v201
  %v239 = vpack.c.b16 %v204, %v203
  %v240 = vpack.c.b16 %v206, %v205
  %v241 = vpack.c.b16 %v208, %v207
  %v242 = vpack.c.b16 %v210, %v209
  %vm243 = vcmask 31744
  %v245 = vsel %vm243, %v211, 0
  %v248 = vsel %vm243, %v212, 0
  %v251 = vsel %vm243, %v213, 0
  %v254 = vsel %vm243, %v214, 0
  %v257 = vsel %vm243, %v215, 0
  %v260 = vsel %vm243, %v216, 0
  %v263 = vsel %vm243, %v217, 0
  %v266 = vsel %vm243, %v218, 0
  %v269 = vsel %vm243, %v219, 0
  %v272 = vsel %vm243, %v220, 0
  %v275 = vsel %vm243, %v221, 0
  %v278 = vsel %vm243, %v222, 0
  %v281 = vsel %vm243, %v223, 0
  %v284 = vsel %vm243, %v224, 0
  %v287 = vsel %vm243, %v225, 0
  %v290 = vsel %vm243, %v226, 0
  %v293 = vsel %vm243, %v227, 0
  %v296 = vsel %vm243, %v228, 0
  %v299 = vsel %vm243, %v229, 0
  %v302 = vsel %vm243, %v230, 0
  %v305 = vsel %vm243, %v231, 0
  %v308 = vsel %vm243, %v232, 0
  %v311 = vsel %vm243, %v233, 0
  %v314 = vsel %vm243, %v234, 0
  %v317 = vsel %vm243, %v235, 0
  %v320 = vsel %vm243, %v236, 0
  %v323 = vsel %vm243, %v237, 0
  %v326 = vsel %vm243, %v238, 0
  %v329 = vsel %vm243, %v239, 0
  %v332 = vsel %vm243, %v240, 0
  %v335 = vsel %vm243, %v241, 0
  %v338 = vsel %vm243, %v242, 0
  %vm340 = vcmask 1041408
  %v342 = vsel %vm340, %v82, 0
  %344 = vmatprep.subr.bf16.mxu0 0
  %345 = vmatpush1.bf16.msra.mxu0 %v342
  %346 = vmatprep.subr.bf16.mxu0 0
  %347 = vmatpush1.bf16.msra.mxu0 0
  %348 = vmatprep.subr.bf16.mxu0 0
  %349 = vmatpush1.bf16.msra.mxu0 0
  %350 = vmatprep.subr.bf16.mxu0 0
  %351 = vmatpush1.bf16.msra.mxu0 0
  %352 = vmatprep.subr.bf16.mxu0 0
  %353 = vmatpush1.bf16.msra.mxu0 0
  %354 = vmatprep.subr.bf16.mxu0 0
  %355 = vmatpush1.bf16.msra.mxu0 0
  %356 = vmatprep.subr.bf16.mxu0 0
  %357 = vmatpush1.bf16.msra.mxu0 0
  %358 = vmatprep.subr.bf16.mxu0 0
  %359 = vmatpush1.bf16.msra.mxu0 0
  %360 = vmatprep.subr.bf16.mxu0 0
  %361 = vmatpush1.bf16.msra.mxu0 0
  %362 = vmatprep.subr.bf16.mxu0 0
  %363 = vmatpush1.bf16.msra.mxu0 0
  %364 = vmatprep.subr.bf16.mxu0 0
  %365 = vmatpush1.bf16.msra.mxu0 0
  %366 = vmatprep.subr.bf16.mxu0 0
  %367 = vmatpush1.bf16.msra.mxu0 0
  %368 = vmatprep.subr.bf16.mxu0 0
  %369 = vmatpush1.bf16.msra.mxu0 0
  %370 = vmatprep.subr.bf16.mxu0 0
  %371 = vmatpush1.bf16.msra.mxu0 0
  %372 = vmatprep.subr.bf16.mxu0 0
  %373 = vmatpush1.bf16.msra.mxu0 0
  %374 = vmatprep.subr.bf16.mxu0 0
  %375 = vmatpush1.bf16.msra.mxu0 0
  %376 = vmatprep.mubr.bf16.mxu0 0
  %377 = vmatmul.mubr.bf16.gmra.mrb[0].mxu0 %v245
  %v378 = vpop.f32.mrb[0].mxu0
  %v379 = vadd.f32 0.0, %v378
  %v380 = vpop.f32.mrb[0].mxu0
  %v381 = vpop.f32.mrb[0].mxu0
  %v382 = vadd.f32 0.0, %v381
  %v383 = vpop.f32.mrb[0].mxu0
  %384 = vmatprep.mubr.bf16.mxu0 0
  %385 = vmatmul.mubr.bf16.gmra.mrb[0].mxu0 %v248
  %v386 = vpop.f32.mrb[0].mxu0
  %v387 = vadd.f32 0.0, %v386
  %v388 = vpop.f32.mrb[0].mxu0
  %v389 = vpop.f32.mrb[0].mxu0
  %v390 = vadd.f32 0.0, %v389
  %v391 = vpop.f32.mrb[0].mxu0
  %392 = vmatprep.mubr.bf16.mxu0 0
  %393 = vmatmul.mubr.bf16.gmra.mrb[0].mxu0 %v251
  %v394 = vpop.f32.mrb[0].mxu0
  %v395 = vadd.f32 0.0, %v394
  %v396 = vpop.f32.mrb[0].mxu0
  %v397 = vpop.f32.mrb[0].mxu0
  %v398 = vadd.f32 0.0, %v397
  %v399 = vpop.f32.mrb[0].mxu0
  %400 = vmatprep.mubr.bf16.mxu0 0
  %401 = vmatmul.mubr.bf16.gmra.mrb[0].mxu0 %v254
  %v402 = vpop.f32.mrb[0].mxu0
  %v403 = vadd.f32 0.0, %v402
  %v404 = vpop.f32.mrb[0].mxu0
  %v405 = vpop.f32.mrb[0].mxu0
  %v406 = vadd.f32 0.0, %v405
  %v407 = vpop.f32.mrb[0].mxu0
  %408 = vmatprep.mubr.bf16.mxu0 0
  %409 = vmatmul.mubr.bf16.gmra.mrb[0].mxu0 %v257
  %v410 = vpop.f32.mrb[0].mxu0
  %v411 = vadd.f32 0.0, %v410
  %v412 = vpop.f32.mrb[0].mxu0
  %v413 = vpop.f32.mrb[0].mxu0
  %v414 = vadd.f32 0.0, %v413
  %v415 = vpop.f32.mrb[0].mxu0
  %416 = vmatprep.mubr.bf16.mxu0 0
  %417 = vmatmul.mubr.bf16.gmra.mrb[0].mxu0 %v260
  %v418 = vpop.f32.mrb[0].mxu0
  %v419 = vadd.f32 0.0, %v418
  %v420 = vpop.f32.mrb[0].mxu0
  %v421 = vpop.f32.mrb[0].mxu0
  %v422 = vadd.f32 0.0, %v421
  %v423 = vpop.f32.mrb[0].mxu0
  %424 = vmatprep.mubr.bf16.mxu0 0
  %425 = vmatmul.mubr.bf16.gmra.mrb[0].mxu0 %v263
  %v426 = vpop.f32.mrb[0].mxu0
  %v427 = vadd.f32 0.0, %v426
  %v428 = vpop.f32.mrb[0].mxu0
  %v429 = vpop.f32.mrb[0].mxu0
  %v430 = vadd.f32 0.0, %v429
  %v431 = vpop.f32.mrb[0].mxu0
  %432 = vmatprep.mubr.bf16.mxu0 0
  %433 = vmatmul.mubr.bf16.gmra.mrb[0].mxu0 %v266
  %v434 = vpop.f32.mrb[0].mxu0
  %v435 = vadd.f32 0.0, %v434
  %v436 = vpop.f32.mrb[0].mxu0
  %v437 = vpop.f32.mrb[0].mxu0
  %v438 = vadd.f32 0.0, %v437
  %v439 = vpop.f32.mrb[0].mxu0
  %440 = vmatprep.mubr.bf16.mxu0 0
  %441 = vmatmul.mubr.bf16.gmra.mrb[0].mxu0 %v269
  %v442 = vpop.f32.mrb[0].mxu0
  %v443 = vadd.f32 0.0, %v442
  %v444 = vpop.f32.mrb[0].mxu0
  %v445 = vpop.f32.mrb[0].mxu0
  %v446 = vadd.f32 0.0, %v445
  %v447 = vpop.f32.mrb[0].mxu0
  %448 = vmatprep.mubr.bf16.mxu0 0
  %449 = vmatmul.mubr.bf16.gmra.mrb[0].mxu0 %v272
  %v450 = vpop.f32.mrb[0].mxu0
  %v451 = vadd.f32 0.0, %v450
  %v452 = vpop.f32.mrb[0].mxu0
  %v453 = vpop.f32.mrb[0].mxu0
  %v454 = vadd.f32 0.0, %v453
  %v455 = vpop.f32.mrb[0].mxu0
  %456 = vmatprep.mubr.bf16.mxu0 0
  %457 = vmatmul.mubr.bf16.gmra.mrb[0].mxu0 %v275
  %v458 = vpop.f32.mrb[0].mxu0
  %v459 = vadd.f32 0.0, %v458
  %v460 = vpop.f32.mrb[0].mxu0
  %v461 = vpop.f32.mrb[0].mxu0
  %v462 = vadd.f32 0.0, %v461
  %v463 = vpop.f32.mrb[0].mxu0
  %464 = vmatprep.mubr.bf16.mxu0 0
  %465 = vmatmul.mubr.bf16.gmra.mrb[0].mxu0 %v278
  %v466 = vpop.f32.mrb[0].mxu0
  %v467 = vadd.f32 0.0, %v466
  %v468 = vpop.f32.mrb[0].mxu0
  %v469 = vpop.f32.mrb[0].mxu0
  %v470 = vadd.f32 0.0, %v469
  %v471 = vpop.f32.mrb[0].mxu0
  %472 = vmatprep.mubr.bf16.mxu0 0
  %473 = vmatmul.mubr.bf16.gmra.mrb[0].mxu0 %v281
  %v474 = vpop.f32.mrb[0].mxu0
  %v475 = vadd.f32 0.0, %v474
  %v476 = vpop.f32.mrb[0].mxu0
  %v477 = vpop.f32.mrb[0].mxu0
  %v478 = vadd.f32 0.0, %v477
  %v479 = vpop.f32.mrb[0].mxu0
  %480 = vmatprep.mubr.bf16.mxu0 0
  %481 = vmatmul.mubr.bf16.gmra.mrb[0].mxu0 %v284
  %v482 = vpop.f32.mrb[0].mxu0
  %v483 = vadd.f32 0.0, %v482
  %v484 = vpop.f32.mrb[0].mxu0
  %v485 = vpop.f32.mrb[0].mxu0
  %v486 = vadd.f32 0.0, %v485
  %v487 = vpop.f32.mrb[0].mxu0
  %488 = vmatprep.mubr.bf16.mxu0 0
  %489 = vmatmul.mubr.bf16.gmra.mrb[0].mxu0 %v287
  %v490 = vpop.f32.mrb[0].mxu0
  %v491 = vadd.f32 0.0, %v490
  %v492 = vpop.f32.mrb[0].mxu0
  %v493 = vpop.f32.mrb[0].mxu0
  %v494 = vadd.f32 0.0, %v493
  %v495 = vpop.f32.mrb[0].mxu0
  %496 = vmatprep.mubr.bf16.mxu0 0
  %497 = vmatmul.mubr.bf16.gmra.mrb[0].mxu0 %v290
  %v498 = vpop.f32.mrb[0].mxu0
  %v499 = vadd.f32 0.0, %v498
  %v500 = vpop.f32.mrb[0].mxu0
  %v501 = vpop.f32.mrb[0].mxu0
  %v502 = vadd.f32 0.0, %v501
  %v503 = vpop.f32.mrb[0].mxu0
  %504 = vmatprep.mubr.bf16.mxu0 0
  %505 = vmatmul.mubr.bf16.gmra.mrb[0].mxu0 %v293
  %v506 = vpop.f32.mrb[0].mxu0
  %v507 = vadd.f32 0.0, %v506
  %v508 = vpop.f32.mrb[0].mxu0
  %v509 = vpop.f32.mrb[0].mxu0
  %v510 = vadd.f32 0.0, %v509
  %v511 = vpop.f32.mrb[0].mxu0
  %512 = vmatprep.mubr.bf16.mxu0 0
  %513 = vmatmul.mubr.bf16.gmra.mrb[0].mxu0 %v296
  %v514 = vpop.f32.mrb[0].mxu0
  %v515 = vadd.f32 0.0, %v514
  %v516 = vpop.f32.mrb[0].mxu0
  %v517 = vpop.f32.mrb[0].mxu0
  %v518 = vadd.f32 0.0, %v517
  %v519 = vpop.f32.mrb[0].mxu0
  %520 = vmatprep.mubr.bf16.mxu0 0
  %521 = vmatmul.mubr.bf16.gmra.mrb[0].mxu0 %v299
  %v522 = vpop.f32.mrb[0].mxu0
  %v523 = vadd.f32 0.0, %v522
  %v524 = vpop.f32.mrb[0].mxu0
  %v525 = vpop.f32.mrb[0].mxu0
  %v526 = vadd.f32 0.0, %v525
  %v527 = vpop.f32.mrb[0].mxu0
  %528 = vmatprep.mubr.bf16.mxu0 0
  %529 = vmatmul.mubr.bf16.gmra.mrb[0].mxu0 %v302
  %v530 = vpop.f32.mrb[0].mxu0
  %v531 = vadd.f32 0.0, %v530
  %v532 = vpop.f32.mrb[0].mxu0
  %v533 = vpop.f32.mrb[0].mxu0
  %v534 = vadd.f32 0.0, %v533
  %v535 = vpop.f32.mrb[0].mxu0
  %536 = vmatprep.mubr.bf16.mxu0 0
  %537 = vmatmul.mubr.bf16.gmra.mrb[0].mxu0 %v305
  %v538 = vpop.f32.mrb[0].mxu0
  %v539 = vadd.f32 0.0, %v538
  %v540 = vpop.f32.mrb[0].mxu0
  %v541 = vpop.f32.mrb[0].mxu0
  %v542 = vadd.f32 0.0, %v541
  %v543 = vpop.f32.mrb[0].mxu0
  %544 = vmatprep.mubr.bf16.mxu0 0
  %545 = vmatmul.mubr.bf16.gmra.mrb[0].mxu0 %v308
  %v546 = vpop.f32.mrb[0].mxu0
  %v547 = vadd.f32 0.0, %v546
  %v548 = vpop.f32.mrb[0].mxu0
  %v549 = vpop.f32.mrb[0].mxu0
  %v550 = vadd.f32 0.0, %v549
  %v551 = vpop.f32.mrb[0].mxu0
  %552 = vmatprep.mubr.bf16.mxu0 0
  %553 = vmatmul.mubr.bf16.gmra.mrb[0].mxu0 %v311
  %v554 = vpop.f32.mrb[0].mxu0
  %v555 = vadd.f32 0.0, %v554
  %v556 = vpop.f32.mrb[0].mxu0
  %v557 = vpop.f32.mrb[0].mxu0
  %v558 = vadd.f32 0.0, %v557
  %v559 = vpop.f32.mrb[0].mxu0
  %560 = vmatprep.mubr.bf16.mxu0 0
  %561 = vmatmul.mubr.bf16.gmra.mrb[0].mxu0 %v314
  %v562 = vpop.f32.mrb[0].mxu0
  %v563 = vadd.f32 0.0, %v562
  %v564 = vpop.f32.mrb[0].mxu0
  %v565 = vpop.f32.mrb[0].mxu0
  %v566 = vadd.f32 0.0, %v565
  %v567 = vpop.f32.mrb[0].mxu0
  %568 = vmatprep.mubr.bf16.mxu0 0
  %569 = vmatmul.mubr.bf16.gmra.mrb[0].mxu0 %v317
  %v570 = vpop.f32.mrb[0].mxu0
  %v571 = vadd.f32 0.0, %v570
  %v572 = vpop.f32.mrb[0].mxu0
  %v573 = vpop.f32.mrb[0].mxu0
  %v574 = vadd.f32 0.0, %v573
  %v575 = vpop.f32.mrb[0].mxu0
  %576 = vmatprep.mubr.bf16.mxu0 0
  %577 = vmatmul.mubr.bf16.gmra.mrb[0].mxu0 %v320
  %v578 = vpop.f32.mrb[0].mxu0
  %v579 = vadd.f32 0.0, %v578
  %v580 = vpop.f32.mrb[0].mxu0
  %v581 = vpop.f32.mrb[0].mxu0
  %v582 = vadd.f32 0.0, %v581
  %v583 = vpop.f32.mrb[0].mxu0
  %584 = vmatprep.mubr.bf16.mxu0 0
  %585 = vmatmul.mubr.bf16.gmra.mrb[0].mxu0 %v323
  %v586 = vpop.f32.mrb[0].mxu0
  %v587 = vadd.f32 0.0, %v586
  %v588 = vpop.f32.mrb[0].mxu0
  %v589 = vpop.f32.mrb[0].mxu0
  %v590 = vadd.f32 0.0, %v589
  %v591 = vpop.f32.mrb[0].mxu0
  %592 = vmatprep.mubr.bf16.mxu0 0
  %593 = vmatmul.mubr.bf16.gmra.mrb[0].mxu0 %v326
  %v594 = vpop.f32.mrb[0].mxu0
  %v595 = vadd.f32 0.0, %v594
  %v596 = vpop.f32.mrb[0].mxu0
  %v597 = vpop.f32.mrb[0].mxu0
  %v598 = vadd.f32 0.0, %v597
  %v599 = vpop.f32.mrb[0].mxu0
  %600 = vmatprep.mubr.bf16.mxu0 0
  %601 = vmatmul.mubr.bf16.gmra.mrb[0].mxu0 %v329
  %v602 = vpop.f32.mrb[0].mxu0
  %v603 = vadd.f32 0.0, %v602
  %v604 = vpop.f32.mrb[0].mxu0
  %v605 = vpop.f32.mrb[0].mxu0
  %v606 = vadd.f32 0.0, %v605
  %v607 = vpop.f32.mrb[0].mxu0
  %608 = vmatprep.mubr.bf16.mxu0 0
  %609 = vmatmul.mubr.bf16.gmra.mrb[0].mxu0 %v332
  %v610 = vpop.f32.mrb[0].mxu0
  %v611 = vadd.f32 0.0, %v610
  %v612 = vpop.f32.mrb[0].mxu0
  %v613 = vpop.f32.mrb[0].mxu0
  %v614 = vadd.f32 0.0, %v613
  %v615 = vpop.f32.mrb[0].mxu0
  %616 = vmatprep.mubr.bf16.mxu0 0
  %617 = vmatmul.mubr.bf16.gmra.mrb[0].mxu0 %v335
  %v618 = vpop.f32.mrb[0].mxu0
  %v619 = vadd.f32 0.0, %v618
  %v620 = vpop.f32.mrb[0].mxu0
  %v621 = vpop.f32.mrb[0].mxu0
  %v622 = vadd.f32 0.0, %v621
  %v623 = vpop.f32.mrb[0].mxu0
  %624 = vmatprep.mubr.bf16.mxu0 0
  %625 = vmatmul.mubr.bf16.gmra.mrb[0].mxu0 %v338
  %v626 = vpop.f32.mrb[0].mxu0
  %v627 = vadd.f32 0.0, %v626
  %v628 = vpop.f32.mrb[0].mxu0
  %v629 = vpop.f32.mrb[0].mxu0
  %v630 = vadd.f32 0.0, %v629
  %v631 = vpop.f32.mrb[0].mxu0
  %632 = vdwg.mxu0
  %v633 = vld [vmem:[%s2] sm:$0x1]
  %v635 = vlaneseq
  %v636 = vshrl.u32 %v635, 7
  %v637 = vsub.s32 0, %v636
  %v638 = vrot.slane %v633, %v637
  %v640 = vmul.f32 %v379, %v638
  %v641 = vmul.f32 %v382, %v638
  %v642 = vmul.f32 %v387, %v638
  %v643 = vmul.f32 %v390, %v638
  %v644 = vmul.f32 %v395, %v638
  %v645 = vmul.f32 %v398, %v638
  %v646 = vmul.f32 %v403, %v638
  %v647 = vmul.f32 %v406, %v638
  %v648 = vmul.f32 %v411, %v638
  %v649 = vmul.f32 %v414, %v638
  %v650 = vmul.f32 %v419, %v638
  %v651 = vmul.f32 %v422, %v638
  %v652 = vmul.f32 %v427, %v638
  %v653 = vmul.f32 %v430, %v638
  %v654 = vmul.f32 %v435, %v638
  %v655 = vmul.f32 %v438, %v638
  %v656 = vmul.f32 %v443, %v638
  %v657 = vmul.f32 %v446, %v638
  %v658 = vmul.f32 %v451, %v638
  %v659 = vmul.f32 %v454, %v638
  %v660 = vmul.f32 %v459, %v638
  %v661 = vmul.f32 %v462, %v638
  %v662 = vmul.f32 %v467, %v638
  %v663 = vmul.f32 %v470, %v638
  %v664 = vmul.f32 %v475, %v638
  %v665 = vmul.f32 %v478, %v638
  %v666 = vmul.f32 %v483, %v638
  %v667 = vmul.f32 %v486, %v638
  %v668 = vmul.f32 %v491, %v638
  %v669 = vmul.f32 %v494, %v638
  %v670 = vmul.f32 %v499, %v638
  %v671 = vmul.f32 %v502, %v638
  %v672 = vmul.f32 %v507, %v638
  %v673 = vmul.f32 %v510, %v638
  %v674 = vmul.f32 %v515, %v638
  %v675 = vmul.f32 %v518, %v638
  %v676 = vmul.f32 %v523, %v638
  %v677 = vmul.f32 %v526, %v638
  %v678 = vmul.f32 %v531, %v638
  %v679 = vmul.f32 %v534, %v638
  %v680 = vmul.f32 %v539, %v638
  %v681 = vmul.f32 %v542, %v638
  %v682 = vmul.f32 %v547, %v638
  %v683 = vmul.f32 %v550, %v638
  %v684 = vmul.f32 %v555, %v638
  %v685 = vmul.f32 %v558, %v638
  %v686 = vmul.f32 %v563, %v638
  %v687 = vmul.f32 %v566, %v638
  %v688 = vmul.f32 %v571, %v638
  %v689 = vmul.f32 %v574, %v638
  %v690 = vmul.f32 %v579, %v638
  %v691 = vmul.f32 %v582, %v638
  %v692 = vmul.f32 %v587, %v638
  %v693 = vmul.f32 %v590, %v638
  %v694 = vmul.f32 %v595, %v638
  %v695 = vmul.f32 %v598, %v638
  %v696 = vmul.f32 %v603, %v638
  %v697 = vmul.f32 %v606, %v638
  %v698 = vmul.f32 %v611, %v638
  %v699 = vmul.f32 %v614, %v638
  %v700 = vmul.f32 %v619, %v638
  %v701 = vmul.f32 %v622, %v638
  %v702 = vmul.f32 %v627, %v638
  %v703 = vmul.f32 %v630, %v638
  %v704 = vld [vmem:[%s3] sm:$0x1]
  %v706 = vlaneseq
  %v707 = vshrl.u32 %v706, 7
  %v708 = vsub.s32 0, %v707
  %v709 = vrot.slane %v704, %v708
  %v711 = vadd.f32 %v640, %v709
  %v712 = vadd.f32 %v641, %v709
  %v713 = vadd.f32 %v642, %v709
  %v714 = vadd.f32 %v643, %v709
  %v715 = vadd.f32 %v644, %v709
  %v716 = vadd.f32 %v645, %v709
  %v717 = vadd.f32 %v646, %v709
  %v718 = vadd.f32 %v647, %v709
  %v719 = vadd.f32 %v648, %v709
  %v720 = vadd.f32 %v649, %v709
  %v721 = vadd.f32 %v650, %v709
  %v722 = vadd.f32 %v651, %v709
  %v723 = vadd.f32 %v652, %v709
  %v724 = vadd.f32 %v653, %v709
  %v725 = vadd.f32 %v654, %v709
  %v726 = vadd.f32 %v655, %v709
  %v727 = vadd.f32 %v656, %v709
  %v728 = vadd.f32 %v657, %v709
  %v729 = vadd.f32 %v658, %v709
  %v730 = vadd.f32 %v659, %v709
  %v731 = vadd.f32 %v660, %v709
  %v732 = vadd.f32 %v661, %v709
  %v733 = vadd.f32 %v662, %v709
  %v734 = vadd.f32 %v663, %v709
  %v735 = vadd.f32 %v664, %v709
  %v736 = vadd.f32 %v665, %v709
  %v737 = vadd.f32 %v666, %v709
  %v738 = vadd.f32 %v667, %v709
  %v739 = vadd.f32 %v668, %v709
  %v740 = vadd.f32 %v669, %v709
  %v741 = vadd.f32 %v670, %v709
  %v742 = vadd.f32 %v671, %v709
  %v743 = vadd.f32 %v672, %v709
  %v744 = vadd.f32 %v673, %v709
  %v745 = vadd.f32 %v674, %v709
  %v746 = vadd.f32 %v675, %v709
  %v747 = vadd.f32 %v676, %v709
  %v748 = vadd.f32 %v677, %v709
  %v749 = vadd.f32 %v678, %v709
  %v750 = vadd.f32 %v679, %v709
  %v751 = vadd.f32 %v680, %v709
  %v752 = vadd.f32 %v681, %v709
  %v753 = vadd.f32 %v682, %v709
  %v754 = vadd.f32 %v683, %v709
  %v755 = vadd.f32 %v684, %v709
  %v756 = vadd.f32 %v685, %v709
  %v757 = vadd.f32 %v686, %v709
  %v758 = vadd.f32 %v687, %v709
  %v759 = vadd.f32 %v688, %v709
  %v760 = vadd.f32 %v689, %v709
  %v761 = vadd.f32 %v690, %v709
  %v762 = vadd.f32 %v691, %v709
  %v763 = vadd.f32 %v692, %v709
  %v764 = vadd.f32 %v693, %v709
  %v765 = vadd.f32 %v694, %v709
  %v766 = vadd.f32 %v695, %v709
  %v767 = vadd.f32 %v696, %v709
  %v768 = vadd.f32 %v697, %v709
  %v769 = vadd.f32 %v698, %v709
  %v770 = vadd.f32 %v699, %v709
  %v771 = vadd.f32 %v700, %v709
  %v772 = vadd.f32 %v701, %v709
  %v773 = vadd.f32 %v702, %v709
  %v774 = vadd.f32 %v703, %v709
  %v775 = vxor.u32 %v711, 2147483648
  %v776 = vxor.u32 %v712, 2147483648
  %v777 = vxor.u32 %v713, 2147483648
  %v778 = vxor.u32 %v714, 2147483648
  %v779 = vxor.u32 %v715, 2147483648
  %v780 = vxor.u32 %v716, 2147483648
  %v781 = vxor.u32 %v717, 2147483648
  %v782 = vxor.u32 %v718, 2147483648
  %v783 = vxor.u32 %v719, 2147483648
  %v784 = vxor.u32 %v720, 2147483648
  %v785 = vxor.u32 %v721, 2147483648
  %v786 = vxor.u32 %v722, 2147483648
  %v787 = vxor.u32 %v723, 2147483648
  %v788 = vxor.u32 %v724, 2147483648
  %v789 = vxor.u32 %v725, 2147483648
  %v790 = vxor.u32 %v726, 2147483648
  %v791 = vxor.u32 %v727, 2147483648
  %v792 = vxor.u32 %v728, 2147483648
  %v793 = vxor.u32 %v729, 2147483648
  %v794 = vxor.u32 %v730, 2147483648
  %v795 = vxor.u32 %v731, 2147483648
  %v796 = vxor.u32 %v732, 2147483648
  %v797 = vxor.u32 %v733, 2147483648
  %v798 = vxor.u32 %v734, 2147483648
  %v799 = vxor.u32 %v735, 2147483648
  %v800 = vxor.u32 %v736, 2147483648
  %v801 = vxor.u32 %v737, 2147483648
  %v802 = vxor.u32 %v738, 2147483648
  %v803 = vxor.u32 %v739, 2147483648
  %v804 = vxor.u32 %v740, 2147483648
  %v805 = vxor.u32 %v741, 2147483648
  %v806 = vxor.u32 %v742, 2147483648
  %v807 = vxor.u32 %v743, 2147483648
  %v808 = vxor.u32 %v744, 2147483648
  %v809 = vxor.u32 %v745, 2147483648
  %v810 = vxor.u32 %v746, 2147483648
  %v811 = vxor.u32 %v747, 2147483648
  %v812 = vxor.u32 %v748, 2147483648
  %v813 = vxor.u32 %v749, 2147483648
  %v814 = vxor.u32 %v750, 2147483648
  %v815 = vxor.u32 %v751, 2147483648
  %v816 = vxor.u32 %v752, 2147483648
  %v817 = vxor.u32 %v753, 2147483648
  %v818 = vxor.u32 %v754, 2147483648
  %v819 = vxor.u32 %v755, 2147483648
  %v820 = vxor.u32 %v756, 2147483648
  %v821 = vxor.u32 %v757, 2147483648
  %v822 = vxor.u32 %v758, 2147483648
  %v823 = vxor.u32 %v759, 2147483648
  %v824 = vxor.u32 %v760, 2147483648
  %v825 = vxor.u32 %v761, 2147483648
  %v826 = vxor.u32 %v762, 2147483648
  %v827 = vxor.u32 %v763, 2147483648
  %v828 = vxor.u32 %v764, 2147483648
  %v829 = vxor.u32 %v765, 2147483648
  %v830 = vxor.u32 %v766, 2147483648
  %v831 = vxor.u32 %v767, 2147483648
  %v832 = vxor.u32 %v768, 2147483648
  %v833 = vxor.u32 %v769, 2147483648
  %v834 = vxor.u32 %v770, 2147483648
  %v835 = vxor.u32 %v771, 2147483648
  %v836 = vxor.u32 %v772, 2147483648
  %v837 = vxor.u32 %v773, 2147483648
  %v838 = vxor.u32 %v774, 2147483648
  %v839 = vmul.f32 %v775, 1.442695
  %v840 = vpow.pop %v839
  %v841 = vmul.f32 %v776, 1.442695
  %v842 = vpow.pop %v841
  %v843 = vmul.f32 %v777, 1.442695
  %v844 = vpow.pop %v843
  %v845 = vmul.f32 %v778, 1.442695
  %v846 = vpow.pop %v845
  %v847 = vmul.f32 %v779, 1.442695
  %v848 = vpow.pop %v847
  %v849 = vmul.f32 %v780, 1.442695
  %v850 = vpow.pop %v849
  %v851 = vmul.f32 %v781, 1.442695
  %v852 = vpow.pop %v851
  %v853 = vmul.f32 %v782, 1.442695
  %v854 = vpow.pop %v853
  %v855 = vmul.f32 %v783, 1.442695
  %v856 = vpow.pop %v855
  %v857 = vmul.f32 %v784, 1.442695
  %v858 = vpow.pop %v857
  %v859 = vmul.f32 %v785, 1.442695
  %v860 = vpow.pop %v859
  %v861 = vmul.f32 %v786, 1.442695
  %v862 = vpow.pop %v861
  %v863 = vmul.f32 %v787, 1.442695
  %v864 = vpow.pop %v863
  %v865 = vmul.f32 %v788, 1.442695
  %v866 = vpow.pop %v865
  %v867 = vmul.f32 %v789, 1.442695
  %v868 = vpow.pop %v867
  %v869 = vmul.f32 %v790, 1.442695
  %v870 = vpow.pop %v869
  %v871 = vmul.f32 %v791, 1.442695
  %v872 = vpow.pop %v871
  %v873 = vmul.f32 %v792, 1.442695
  %v874 = vpow.pop %v873
  %v875 = vmul.f32 %v793, 1.442695
  %v876 = vpow.pop %v875
  %v877 = vmul.f32 %v794, 1.442695
  %v878 = vpow.pop %v877
  %v879 = vmul.f32 %v795, 1.442695
  %v880 = vpow.pop %v879
  %v881 = vmul.f32 %v796, 1.442695
  %v882 = vpow.pop %v881
  %v883 = vmul.f32 %v797, 1.442695
  %v884 = vpow.pop %v883
  %v885 = vmul.f32 %v798, 1.442695
  %v886 = vpow.pop %v885
  %v887 = vmul.f32 %v799, 1.442695
  %v888 = vpow.pop %v887
  %v889 = vmul.f32 %v800, 1.442695
  %v890 = vpow.pop %v889
  %v891 = vmul.f32 %v801, 1.442695
  %v892 = vpow.pop %v891
  %v893 = vmul.f32 %v802, 1.442695
  %v894 = vpow.pop %v893
  %v895 = vmul.f32 %v803, 1.442695
  %v896 = vpow.pop %v895
  %v897 = vmul.f32 %v804, 1.442695
  %v898 = vpow.pop %v897
  %v899 = vmul.f32 %v805, 1.442695
  %v900 = vpow.pop %v899
  %v901 = vmul.f32 %v806, 1.442695
  %v902 = vpow.pop %v901
  %v903 = vmul.f32 %v807, 1.442695
  %v904 = vpow.pop %v903
  %v905 = vmul.f32 %v808, 1.442695
  %v906 = vpow.pop %v905
  %v907 = vmul.f32 %v809, 1.442695
  %v908 = vpow.pop %v907
  %v909 = vmul.f32 %v810, 1.442695
  %v910 = vpow.pop %v909
  %v911 = vmul.f32 %v811, 1.442695
  %v912 = vpow.pop %v911
  %v913 = vmul.f32 %v812, 1.442695
  %v914 = vpow.pop %v913
  %v915 = vmul.f32 %v813, 1.442695
  %v916 = vpow.pop %v915
  %v917 = vmul.f32 %v814, 1.442695
  %v918 = vpow.pop %v917
  %v919 = vmul.f32 %v815, 1.442695
  %v920 = vpow.pop %v919
  %v921 = vmul.f32 %v816, 1.442695
  %v922 = vpow.pop %v921
  %v923 = vmul.f32 %v817, 1.442695
  %v924 = vpow.pop %v923
  %v925 = vmul.f32 %v818, 1.442695
  %v926 = vpow.pop %v925
  %v927 = vmul.f32 %v819, 1.442695
  %v928 = vpow.pop %v927
  %v929 = vmul.f32 %v820, 1.442695
  %v930 = vpow.pop %v929
  %v931 = vmul.f32 %v821, 1.442695
  %v932 = vpow.pop %v931
  %v933 = vmul.f32 %v822, 1.442695
  %v934 = vpow.pop %v933
  %v935 = vmul.f32 %v823, 1.442695
  %v936 = vpow.pop %v935
  %v937 = vmul.f32 %v824, 1.442695
  %v938 = vpow.pop %v937
  %v939 = vmul.f32 %v825, 1.442695
  %v940 = vpow.pop %v939
  %v941 = vmul.f32 %v826, 1.442695
  %v942 = vpow.pop %v941
  %v943 = vmul.f32 %v827, 1.442695
  %v944 = vpow.pop %v943
  %v945 = vmul.f32 %v828, 1.442695
  %v946 = vpow.pop %v945
  %v947 = vmul.f32 %v829, 1.442695
  %v948 = vpow.pop %v947
  %v949 = vmul.f32 %v830, 1.442695
  %v950 = vpow.pop %v949
  %v951 = vmul.f32 %v831, 1.442695
  %v952 = vpow.pop %v951
  %v953 = vmul.f32 %v832, 1.442695
  %v954 = vpow.pop %v953
  %v955 = vmul.f32 %v833, 1.442695
  %v956 = vpow.pop %v955
  %v957 = vmul.f32 %v834, 1.442695
  %v958 = vpow.pop %v957
  %v959 = vmul.f32 %v835, 1.442695
  %v960 = vpow.pop %v959
  %v961 = vmul.f32 %v836, 1.442695
  %v962 = vpow.pop %v961
  %v963 = vmul.f32 %v837, 1.442695
  %v964 = vpow.pop %v963
  %v965 = vmul.f32 %v838, 1.442695
  %v966 = vpow.pop %v965
  %v967 = vadd.f32 %v840, 1.0
  %v968 = vadd.f32 %v842, 1.0
  %v969 = vadd.f32 %v844, 1.0
  %v970 = vadd.f32 %v846, 1.0
  %v971 = vadd.f32 %v848, 1.0
  %v972 = vadd.f32 %v850, 1.0
  %v973 = vadd.f32 %v852, 1.0
  %v974 = vadd.f32 %v854, 1.0
  %v975 = vadd.f32 %v856, 1.0
  %v976 = vadd.f32 %v858, 1.0
  %v977 = vadd.f32 %v860, 1.0
  %v978 = vadd.f32 %v862, 1.0
  %v979 = vadd.f32 %v864, 1.0
  %v980 = vadd.f32 %v866, 1.0
  %v981 = vadd.f32 %v868, 1.0
  %v982 = vadd.f32 %v870, 1.0
  %v983 = vadd.f32 %v872, 1.0
  %v984 = vadd.f32 %v874, 1.0
  %v985 = vadd.f32 %v876, 1.0
  %v986 = vadd.f32 %v878, 1.0
  %v987 = vadd.f32 %v880, 1.0
  %v988 = vadd.f32 %v882, 1.0
  %v989 = vadd.f32 %v884, 1.0
  %v990 = vadd.f32 %v886, 1.0
  %v991 = vadd.f32 %v888, 1.0
  %v992 = vadd.f32 %v890, 1.0
  %v993 = vadd.f32 %v892, 1.0
  %v994 = vadd.f32 %v894, 1.0
  %v995 = vadd.f32 %v896, 1.0
  %v996 = vadd.f32 %v898, 1.0
  %v997 = vadd.f32 %v900, 1.0
  %v998 = vadd.f32 %v902, 1.0
  %v999 = vadd.f32 %v904, 1.0
  %v1000 = vadd.f32 %v906, 1.0
  %v1001 = vadd.f32 %v908, 1.0
  %v1002 = vadd.f32 %v910, 1.0
  %v1003 = vadd.f32 %v912, 1.0
  %v1004 = vadd.f32 %v914, 1.0
  %v1005 = vadd.f32 %v916, 1.0
  %v1006 = vadd.f32 %v918, 1.0
  %v1007 = vadd.f32 %v920, 1.0
  %v1008 = vadd.f32 %v922, 1.0
  %v1009 = vadd.f32 %v924, 1.0
  %v1010 = vadd.f32 %v926, 1.0
  %v1011 = vadd.f32 %v928, 1.0
  %v1012 = vadd.f32 %v930, 1.0
  %v1013 = vadd.f32 %v932, 1.0
  %v1014 = vadd.f32 %v934, 1.0
  %v1015 = vadd.f32 %v936, 1.0
  %v1016 = vadd.f32 %v938, 1.0
  %v1017 = vadd.f32 %v940, 1.0
  %v1018 = vadd.f32 %v942, 1.0
  %v1019 = vadd.f32 %v944, 1.0
  %v1020 = vadd.f32 %v946, 1.0
  %v1021 = vadd.f32 %v948, 1.0
  %v1022 = vadd.f32 %v950, 1.0
  %v1023 = vadd.f32 %v952, 1.0
  %v1024 = vadd.f32 %v954, 1.0
  %v1025 = vadd.f32 %v956, 1.0
  %v1026 = vadd.f32 %v958, 1.0
  %v1027 = vadd.f32 %v960, 1.0
  %v1028 = vadd.f32 %v962, 1.0
  %v1029 = vadd.f32 %v964, 1.0
  %v1030 = vadd.f32 %v966, 1.0
  %v1031 = vrcp.pop %v967
  %v1032 = vmul.f32 1.0, %v1031
  %v1033 = vrcp.pop %v968
  %v1034 = vmul.f32 1.0, %v1033
  %v1035 = vrcp.pop %v969
  %v1036 = vmul.f32 1.0, %v1035
  %v1037 = vrcp.pop %v970
  %v1038 = vmul.f32 1.0, %v1037
  %v1039 = vrcp.pop %v971
  %v1040 = vmul.f32 1.0, %v1039
  %v1041 = vrcp.pop %v972
  %v1042 = vmul.f32 1.0, %v1041
  %v1043 = vrcp.pop %v973
  %v1044 = vmul.f32 1.0, %v1043
  %v1045 = vrcp.pop %v974
  %v1046 = vmul.f32 1.0, %v1045
  %v1047 = vrcp.pop %v975
  %v1048 = vmul.f32 1.0, %v1047
  %v1049 = vrcp.pop %v976
  %v1050 = vmul.f32 1.0, %v1049
  %v1051 = vrcp.pop %v977
  %v1052 = vmul.f32 1.0, %v1051
  %v1053 = vrcp.pop %v978
  %v1054 = vmul.f32 1.0, %v1053
  %v1055 = vrcp.pop %v979
  %v1056 = vmul.f32 1.0, %v1055
  %v1057 = vrcp.pop %v980
  %v1058 = vmul.f32 1.0, %v1057
  %v1059 = vrcp.pop %v981
  %v1060 = vmul.f32 1.0, %v1059
  %v1061 = vrcp.pop %v982
  %v1062 = vmul.f32 1.0, %v1061
  %v1063 = vrcp.pop %v983
  %v1064 = vmul.f32 1.0, %v1063
  %v1065 = vrcp.pop %v984
  %v1066 = vmul.f32 1.0, %v1065
  %v1067 = vrcp.pop %v985
  %v1068 = vmul.f32 1.0, %v1067
  %v1069 = vrcp.pop %v986
  %v1070 = vmul.f32 1.0, %v1069
  %v1071 = vrcp.pop %v987
  %v1072 = vmul.f32 1.0, %v1071
  %v1073 = vrcp.pop %v988
  %v1074 = vmul.f32 1.0, %v1073
  %v1075 = vrcp.pop %v989
  %v1076 = vmul.f32 1.0, %v1075
  %v1077 = vrcp.pop %v990
  %v1078 = vmul.f32 1.0, %v1077
  %v1079 = vrcp.pop %v991
  %v1080 = vmul.f32 1.0, %v1079
  %v1081 = vrcp.pop %v992
  %v1082 = vmul.f32 1.0, %v1081
  %v1083 = vrcp.pop %v993
  %v1084 = vmul.f32 1.0, %v1083
  %v1085 = vrcp.pop %v994
  %v1086 = vmul.f32 1.0, %v1085
  %v1087 = vrcp.pop %v995
  %v1088 = vmul.f32 1.0, %v1087
  %v1089 = vrcp.pop %v996
  %v1090 = vmul.f32 1.0, %v1089
  %v1091 = vrcp.pop %v997
  %v1092 = vmul.f32 1.0, %v1091
  %v1093 = vrcp.pop %v998
  %v1094 = vmul.f32 1.0, %v1093
  %v1095 = vrcp.pop %v999
  %v1096 = vmul.f32 1.0, %v1095
  %v1097 = vrcp.pop %v1000
  %v1098 = vmul.f32 1.0, %v1097
  %v1099 = vrcp.pop %v1001
  %v1100 = vmul.f32 1.0, %v1099
  %v1101 = vrcp.pop %v1002
  %v1102 = vmul.f32 1.0, %v1101
  %v1103 = vrcp.pop %v1003
  %v1104 = vmul.f32 1.0, %v1103
  %v1105 = vrcp.pop %v1004
  %v1106 = vmul.f32 1.0, %v1105
  %v1107 = vrcp.pop %v1005
  %v1108 = vmul.f32 1.0, %v1107
  %v1109 = vrcp.pop %v1006
  %v1110 = vmul.f32 1.0, %v1109
  %v1111 = vrcp.pop %v1007
  %v1112 = vmul.f32 1.0, %v1111
  %v1113 = vrcp.pop %v1008
  %v1114 = vmul.f32 1.0, %v1113
  %v1115 = vrcp.pop %v1009
  %v1116 = vmul.f32 1.0, %v1115
  %v1117 = vrcp.pop %v1010
  %v1118 = vmul.f32 1.0, %v1117
  %v1119 = vrcp.pop %v1011
  %v1120 = vmul.f32 1.0, %v1119
  %v1121 = vrcp.pop %v1012
  %v1122 = vmul.f32 1.0, %v1121
  %v1123 = vrcp.pop %v1013
  %v1124 = vmul.f32 1.0, %v1123
  %v1125 = vrcp.pop %v1014
  %v1126 = vmul.f32 1.0, %v1125
  %v1127 = vrcp.pop %v1015
  %v1128 = vmul.f32 1.0, %v1127
  %v1129 = vrcp.pop %v1016
  %v1130 = vmul.f32 1.0, %v1129
  %v1131 = vrcp.pop %v1017
  %v1132 = vmul.f32 1.0, %v1131
  %v1133 = vrcp.pop %v1018
  %v1134 = vmul.f32 1.0, %v1133
  %v1135 = vrcp.pop %v1019
  %v1136 = vmul.f32 1.0, %v1135
  %v1137 = vrcp.pop %v1020
  %v1138 = vmul.f32 1.0, %v1137
  %v1139 = vrcp.pop %v1021
  %v1140 = vmul.f32 1.0, %v1139
  %v1141 = vrcp.pop %v1022
  %v1142 = vmul.f32 1.0, %v1141
  %v1143 = vrcp.pop %v1023
  %v1144 = vmul.f32 1.0, %v1143
  %v1145 = vrcp.pop %v1024
  %v1146 = vmul.f32 1.0, %v1145
  %v1147 = vrcp.pop %v1025
  %v1148 = vmul.f32 1.0, %v1147
  %v1149 = vrcp.pop %v1026
  %v1150 = vmul.f32 1.0, %v1149
  %v1151 = vrcp.pop %v1027
  %v1152 = vmul.f32 1.0, %v1151
  %v1153 = vrcp.pop %v1028
  %v1154 = vmul.f32 1.0, %v1153
  %v1155 = vrcp.pop %v1029
  %v1156 = vmul.f32 1.0, %v1155
  %v1157 = vrcp.pop %v1030
  %v1158 = vmul.f32 1.0, %v1157
  %v1159 = vmul.f32 %v711, %v1032
  %v1160 = vmul.f32 %v712, %v1034
  %v1161 = vmul.f32 %v713, %v1036
  %v1162 = vmul.f32 %v714, %v1038
  %v1163 = vmul.f32 %v715, %v1040
  %v1164 = vmul.f32 %v716, %v1042
  %v1165 = vmul.f32 %v717, %v1044
  %v1166 = vmul.f32 %v718, %v1046
  %v1167 = vmul.f32 %v719, %v1048
  %v1168 = vmul.f32 %v720, %v1050
  %v1169 = vmul.f32 %v721, %v1052
  %v1170 = vmul.f32 %v722, %v1054
  %v1171 = vmul.f32 %v723, %v1056
  %v1172 = vmul.f32 %v724, %v1058
  %v1173 = vmul.f32 %v725, %v1060
  %v1174 = vmul.f32 %v726, %v1062
  %v1175 = vmul.f32 %v727, %v1064
  %v1176 = vmul.f32 %v728, %v1066
  %v1177 = vmul.f32 %v729, %v1068
  %v1178 = vmul.f32 %v730, %v1070
  %v1179 = vmul.f32 %v731, %v1072
  %v1180 = vmul.f32 %v732, %v1074
  %v1181 = vmul.f32 %v733, %v1076
  %v1182 = vmul.f32 %v734, %v1078
  %v1183 = vmul.f32 %v735, %v1080
  %v1184 = vmul.f32 %v736, %v1082
  %v1185 = vmul.f32 %v737, %v1084
  %v1186 = vmul.f32 %v738, %v1086
  %v1187 = vmul.f32 %v739, %v1088
  %v1188 = vmul.f32 %v740, %v1090
  %v1189 = vmul.f32 %v741, %v1092
  %v1190 = vmul.f32 %v742, %v1094
  %v1191 = vmul.f32 %v743, %v1096
  %v1192 = vmul.f32 %v744, %v1098
  %v1193 = vmul.f32 %v745, %v1100
  %v1194 = vmul.f32 %v746, %v1102
  %v1195 = vmul.f32 %v747, %v1104
  %v1196 = vmul.f32 %v748, %v1106
  %v1197 = vmul.f32 %v749, %v1108
  %v1198 = vmul.f32 %v750, %v1110
  %v1199 = vmul.f32 %v751, %v1112
  %v1200 = vmul.f32 %v752, %v1114
  %v1201 = vmul.f32 %v753, %v1116
  %v1202 = vmul.f32 %v754, %v1118
  %v1203 = vmul.f32 %v755, %v1120
  %v1204 = vmul.f32 %v756, %v1122
  %v1205 = vmul.f32 %v757, %v1124
  %v1206 = vmul.f32 %v758, %v1126
  %v1207 = vmul.f32 %v759, %v1128
  %v1208 = vmul.f32 %v760, %v1130
  %v1209 = vmul.f32 %v761, %v1132
  %v1210 = vmul.f32 %v762, %v1134
  %v1211 = vmul.f32 %v763, %v1136
  %v1212 = vmul.f32 %v764, %v1138
  %v1213 = vmul.f32 %v765, %v1140
  %v1214 = vmul.f32 %v766, %v1142
  %v1215 = vmul.f32 %v767, %v1144
  %v1216 = vmul.f32 %v768, %v1146
  %v1217 = vmul.f32 %v769, %v1148
  %v1218 = vmul.f32 %v770, %v1150
  %v1219 = vmul.f32 %v771, %v1152
  %v1220 = vmul.f32 %v772, %v1154
  %v1221 = vmul.f32 %v773, %v1156
  %v1222 = vmul.f32 %v774, %v1158
  %v1223 = vpack.c.bf16 %v1160, %v1159
  %v1224 = vpack.c.bf16 %v1162, %v1161
  %v1225 = vpack.c.bf16 %v1164, %v1163
  %v1226 = vpack.c.bf16 %v1166, %v1165
  %v1227 = vpack.c.bf16 %v1168, %v1167
  %v1228 = vpack.c.bf16 %v1170, %v1169
  %v1229 = vpack.c.bf16 %v1172, %v1171
  %v1230 = vpack.c.bf16 %v1174, %v1173
  %v1231 = vpack.c.bf16 %v1176, %v1175
  %v1232 = vpack.c.bf16 %v1178, %v1177
  %v1233 = vpack.c.bf16 %v1180, %v1179
  %v1234 = vpack.c.bf16 %v1182, %v1181
  %v1235 = vpack.c.bf16 %v1184, %v1183
  %v1236 = vpack.c.bf16 %v1186, %v1185
  %v1237 = vpack.c.bf16 %v1188, %v1187
  %v1238 = vpack.c.bf16 %v1190, %v1189
  %v1239 = vpack.c.bf16 %v1192, %v1191
  %v1240 = vpack.c.bf16 %v1194, %v1193
  %v1241 = vpack.c.bf16 %v1196, %v1195
  %v1242 = vpack.c.bf16 %v1198, %v1197
  %v1243 = vpack.c.bf16 %v1200, %v1199
  %v1244 = vpack.c.bf16 %v1202, %v1201
  %v1245 = vpack.c.bf16 %v1204, %v1203
  %v1246 = vpack.c.bf16 %v1206, %v1205
  %v1247 = vpack.c.bf16 %v1208, %v1207
  %v1248 = vpack.c.bf16 %v1210, %v1209
  %v1249 = vpack.c.bf16 %v1212, %v1211
  %v1250 = vpack.c.bf16 %v1214, %v1213
  %v1251 = vpack.c.bf16 %v1216, %v1215
  %v1252 = vpack.c.bf16 %v1218, %v1217
  %v1253 = vpack.c.bf16 %v1220, %v1219
  %v1254 = vpack.c.bf16 %v1222, %v1221
  %v1287 = vunpack.c.l.b16 %v1223
  %v1288 = vunpack.c.h.b16 %v1223
  %v1289 = vunpack.c.l.b16 %v1224
  %v1290 = vunpack.c.h.b16 %v1224
  %v1291 = vunpack.c.l.b16 %v1225
  %v1292 = vunpack.c.h.b16 %v1225
  %v1293 = vunpack.c.l.b16 %v1226
  %v1294 = vunpack.c.h.b16 %v1226
  %v1295 = vunpack.c.l.b16 %v1227
  %v1296 = vunpack.c.h.b16 %v1227
  %v1297 = vunpack.c.l.b16 %v1228
  %v1298 = vunpack.c.h.b16 %v1228
  %v1299 = vunpack.c.l.b16 %v1229
  %v1300 = vunpack.c.h.b16 %v1229
  %v1301 = vunpack.c.l.b16 %v1230
  %v1302 = vunpack.c.h.b16 %v1230
  %v1303 = vunpack.c.l.b16 %v1231
  %v1304 = vunpack.c.h.b16 %v1231
  %v1305 = vunpack.c.l.b16 %v1232
  %v1306 = vunpack.c.h.b16 %v1232
  %v1307 = vunpack.c.l.b16 %v1233
  %v1308 = vunpack.c.h.b16 %v1233
  %v1309 = vunpack.c.l.b16 %v1234
  %v1310 = vunpack.c.h.b16 %v1234
  %v1311 = vunpack.c.l.b16 %v1235
  %v1312 = vunpack.c.h.b16 %v1235
  %v1313 = vunpack.c.l.b16 %v1236
  %v1314 = vunpack.c.h.b16 %v1236
  %v1315 = vunpack.c.l.b16 %v1237
  %v1316 = vunpack.c.h.b16 %v1237
  %v1317 = vunpack.c.l.b16 %v1238
  %v1318 = vunpack.c.h.b16 %v1238
  %v1319 = vunpack.c.l.b16 %v1239
  %v1320 = vunpack.c.h.b16 %v1239
  %v1321 = vunpack.c.l.b16 %v1240
  %v1322 = vunpack.c.h.b16 %v1240
  %v1323 = vunpack.c.l.b16 %v1241
  %v1324 = vunpack.c.h.b16 %v1241
  %v1325 = vunpack.c.l.b16 %v1242
  %v1326 = vunpack.c.h.b16 %v1242
  %v1327 = vunpack.c.l.b16 %v1243
  %v1328 = vunpack.c.h.b16 %v1243
  %v1329 = vunpack.c.l.b16 %v1244
  %v1330 = vunpack.c.h.b16 %v1244
  %v1331 = vunpack.c.l.b16 %v1245
  %v1332 = vunpack.c.h.b16 %v1245
  %v1333 = vunpack.c.l.b16 %v1246
  %v1334 = vunpack.c.h.b16 %v1246
  %v1335 = vunpack.c.l.b16 %v1247
  %v1336 = vunpack.c.h.b16 %v1247
  %v1337 = vunpack.c.l.b16 %v1248
  %v1338 = vunpack.c.h.b16 %v1248
  %v1339 = vunpack.c.l.b16 %v1249
  %v1340 = vunpack.c.h.b16 %v1249
  %v1341 = vunpack.c.l.b16 %v1250
  %v1342 = vunpack.c.h.b16 %v1250
  %v1343 = vunpack.c.l.b16 %v1251
  %v1344 = vunpack.c.h.b16 %v1251
  %v1345 = vunpack.c.l.b16 %v1252
  %v1346 = vunpack.c.h.b16 %v1252
  %v1347 = vunpack.c.l.b16 %v1253
  %v1348 = vunpack.c.h.b16 %v1253
  %v1349 = vunpack.c.l.b16 %v1254
  %v1350 = vunpack.c.h.b16 %v1254
  %v1351 = vpack.c.b16 %v1287, %v1287
  %v1352 = vpack.c.b16 %v1288, %v1288
  %v1353 = vpack.c.b16 %v1289, %v1289
  %v1354 = vpack.c.b16 %v1290, %v1290
  %v1355 = vpack.c.b16 %v1291, %v1291
  %v1356 = vpack.c.b16 %v1292, %v1292
  %v1357 = vpack.c.b16 %v1293, %v1293
  %v1358 = vpack.c.b16 %v1294, %v1294
  %v1359 = vpack.c.b16 %v1295, %v1295
  %v1360 = vpack.c.b16 %v1296, %v1296
  %v1361 = vpack.c.b16 %v1297, %v1297
  %v1362 = vpack.c.b16 %v1298, %v1298
  %v1363 = vpack.c.b16 %v1299, %v1299
  %v1364 = vpack.c.b16 %v1300, %v1300
  %v1365 = vpack.c.b16 %v1301, %v1301
  %v1366 = vpack.c.b16 %v1302, %v1302
  %v1367 = vpack.c.b16 %v1303, %v1303
  %v1368 = vpack.c.b16 %v1304, %v1304
  %v1369 = vpack.c.b16 %v1305, %v1305
  %v1370 = vpack.c.b16 %v1306, %v1306
  %v1371 = vpack.c.b16 %v1307, %v1307
  %v1372 = vpack.c.b16 %v1308, %v1308
  %v1373 = vpack.c.b16 %v1309, %v1309
  %v1374 = vpack.c.b16 %v1310, %v1310
  %v1375 = vpack.c.b16 %v1311, %v1311
  %v1376 = vpack.c.b16 %v1312, %v1312
  %v1377 = vpack.c.b16 %v1313, %v1313
  %v1378 = vpack.c.b16 %v1314, %v1314
  %v1379 = vpack.c.b16 %v1315, %v1315
  %v1380 = vpack.c.b16 %v1316, %v1316
  %v1381 = vpack.c.b16 %v1317, %v1317
  %v1382 = vpack.c.b16 %v1318, %v1318
  %v1383 = vpack.c.b16 %v1319, %v1319
  %v1384 = vpack.c.b16 %v1320, %v1320
  %v1385 = vpack.c.b16 %v1321, %v1321
  %v1386 = vpack.c.b16 %v1322, %v1322
  %v1387 = vpack.c.b16 %v1323, %v1323
  %v1388 = vpack.c.b16 %v1324, %v1324
  %v1389 = vpack.c.b16 %v1325, %v1325
  %v1390 = vpack.c.b16 %v1326, %v1326
  %v1391 = vpack.c.b16 %v1327, %v1327
  %v1392 = vpack.c.b16 %v1328, %v1328
  %v1393 = vpack.c.b16 %v1329, %v1329
  %v1394 = vpack.c.b16 %v1330, %v1330
  %v1395 = vpack.c.b16 %v1331, %v1331
  %v1396 = vpack.c.b16 %v1332, %v1332
  %v1397 = vpack.c.b16 %v1333, %v1333
  %v1398 = vpack.c.b16 %v1334, %v1334
  %v1399 = vpack.c.b16 %v1335, %v1335
  %v1400 = vpack.c.b16 %v1336, %v1336
  %v1401 = vpack.c.b16 %v1337, %v1337
  %v1402 = vpack.c.b16 %v1338, %v1338
  %v1403 = vpack.c.b16 %v1339, %v1339
  %v1404 = vpack.c.b16 %v1340, %v1340
  %v1405 = vpack.c.b16 %v1341, %v1341
  %v1406 = vpack.c.b16 %v1342, %v1342
  %v1407 = vpack.c.b16 %v1343, %v1343
  %v1408 = vpack.c.b16 %v1344, %v1344
  %v1409 = vpack.c.b16 %v1345, %v1345
  %v1410 = vpack.c.b16 %v1346, %v1346
  %v1411 = vpack.c.b16 %v1347, %v1347
  %v1412 = vpack.c.b16 %v1348, %v1348
  %v1413 = vpack.c.b16 %v1349, %v1349
  %v1414 = vpack.c.b16 %v1350, %v1350
  %vm1479 = vcmask 11264
  %1480 = vst.msk [vmem:[%s4] sm:$0xf] %vm1479, %v1351
  %1481 = vst.msk [vmem:[%s4 + $0x4] sm:$0xf] %vm1479, %v1352
  %1482 = vst.msk [vmem:[%s4 + $0x8] sm:$0xf] %vm1479, %v1353
  %1483 = vst.msk [vmem:[%s4 + $0xc] sm:$0xf] %vm1479, %v1354
  %1484 = vst.msk [vmem:[%s4 + $0x10] sm:$0xf] %vm1479, %v1355
  %1485 = vst.msk [vmem:[%s4 + $0x14] sm:$0xf] %vm1479, %v1356
  %1486 = vst.msk [vmem:[%s4 + $0x18] sm:$0xf] %vm1479, %v1357
  %1487 = vst.msk [vmem:[%s4 + $0x1c] sm:$0xf] %vm1479, %v1358
  %1488 = vst.msk [vmem:[%s4 + $0x20] sm:$0xf] %vm1479, %v1359
  %1489 = vst.msk [vmem:[%s4 + $0x24] sm:$0xf] %vm1479, %v1360
  %1490 = vst.msk [vmem:[%s4 + $0x28] sm:$0xf] %vm1479, %v1361
  %1491 = vst.msk [vmem:[%s4 + $0x2c] sm:$0xf] %vm1479, %v1362
  %1492 = vst.msk [vmem:[%s4 + $0x30] sm:$0xf] %vm1479, %v1363
  %1493 = vst.msk [vmem:[%s4 + $0x34] sm:$0xf] %vm1479, %v1364
  %1494 = vst.msk [vmem:[%s4 + $0x38] sm:$0xf] %vm1479, %v1365
  %1495 = vst.msk [vmem:[%s4 + $0x3c] sm:$0xf] %vm1479, %v1366
  %1496 = vst.msk [vmem:[%s4 + $0x40] sm:$0xf] %vm1479, %v1367
  %1497 = vst.msk [vmem:[%s4 + $0x44] sm:$0xf] %vm1479, %v1368
  %1498 = vst.msk [vmem:[%s4 + $0x48] sm:$0xf] %vm1479, %v1369
  %1499 = vst.msk [vmem:[%s4 + $0x4c] sm:$0xf] %vm1479, %v1370
  %1500 = vst.msk [vmem:[%s4 + $0x50] sm:$0xf] %vm1479, %v1371
  %1501 = vst.msk [vmem:[%s4 + $0x54] sm:$0xf] %vm1479, %v1372
  %1502 = vst.msk [vmem:[%s4 + $0x58] sm:$0xf] %vm1479, %v1373
  %1503 = vst.msk [vmem:[%s4 + $0x5c] sm:$0xf] %vm1479, %v1374
  %1504 = vst.msk [vmem:[%s4 + $0x60] sm:$0xf] %vm1479, %v1375
  %1505 = vst.msk [vmem:[%s4 + $0x64] sm:$0xf] %vm1479, %v1376
  %1506 = vst.msk [vmem:[%s4 + $0x68] sm:$0xf] %vm1479, %v1377
  %1507 = vst.msk [vmem:[%s4 + $0x6c] sm:$0xf] %vm1479, %v1378
  %1508 = vst.msk [vmem:[%s4 + $0x70] sm:$0xf] %vm1479, %v1379
  %1509 = vst.msk [vmem:[%s4 + $0x74] sm:$0xf] %vm1479, %v1380
  %1510 = vst.msk [vmem:[%s4 + $0x78] sm:$0xf] %vm1479, %v1381
  %1511 = vst.msk [vmem:[%s4 + $0x7c] sm:$0xf] %vm1479, %v1382
  %1512 = vst.msk [vmem:[%s4 + $0x80] sm:$0xf] %vm1479, %v1383
  %1513 = vst.msk [vmem:[%s4 + $0x84] sm:$0xf] %vm1479, %v1384
  %1514 = vst.msk [vmem:[%s4 + $0x88] sm:$0xf] %vm1479, %v1385
  %1515 = vst.msk [vmem:[%s4 + $0x8c] sm:$0xf] %vm1479, %v1386
  %1516 = vst.msk [vmem:[%s4 + $0x90] sm:$0xf] %vm1479, %v1387
  %1517 = vst.msk [vmem:[%s4 + $0x94] sm:$0xf] %vm1479, %v1388
  %1518 = vst.msk [vmem:[%s4 + $0x98] sm:$0xf] %vm1479, %v1389
  %1519 = vst.msk [vmem:[%s4 + $0x9c] sm:$0xf] %vm1479, %v1390
  %1520 = vst.msk [vmem:[%s4 + $0xa0] sm:$0xf] %vm1479, %v1391
  %1521 = vst.msk [vmem:[%s4 + $0xa4] sm:$0xf] %vm1479, %v1392
  %1522 = vst.msk [vmem:[%s4 + $0xa8] sm:$0xf] %vm1479, %v1393
  %1523 = vst.msk [vmem:[%s4 + $0xac] sm:$0xf] %vm1479, %v1394
  %1524 = vst.msk [vmem:[%s4 + $0xb0] sm:$0xf] %vm1479, %v1395
  %1525 = vst.msk [vmem:[%s4 + $0xb4] sm:$0xf] %vm1479, %v1396
  %1526 = vst.msk [vmem:[%s4 + $0xb8] sm:$0xf] %vm1479, %v1397
  %1527 = vst.msk [vmem:[%s4 + $0xbc] sm:$0xf] %vm1479, %v1398
  %1528 = vst.msk [vmem:[%s4 + $0xc0] sm:$0xf] %vm1479, %v1399
  %1529 = vst.msk [vmem:[%s4 + $0xc4] sm:$0xf] %vm1479, %v1400
  %1530 = vst.msk [vmem:[%s4 + $0xc8] sm:$0xf] %vm1479, %v1401
  %1531 = vst.msk [vmem:[%s4 + $0xcc] sm:$0xf] %vm1479, %v1402
  %1532 = vst.msk [vmem:[%s4 + $0xd0] sm:$0xf] %vm1479, %v1403
  %1533 = vst.msk [vmem:[%s4 + $0xd4] sm:$0xf] %vm1479, %v1404
  %1534 = vst.msk [vmem:[%s4 + $0xd8] sm:$0xf] %vm1479, %v1405
  %1535 = vst.msk [vmem:[%s4 + $0xdc] sm:$0xf] %vm1479, %v1406
  %1536 = vst.msk [vmem:[%s4 + $0xe0] sm:$0xf] %vm1479, %v1407
  %1537 = vst.msk [vmem:[%s4 + $0xe4] sm:$0xf] %vm1479, %v1408
  %1538 = vst.msk [vmem:[%s4 + $0xe8] sm:$0xf] %vm1479, %v1409
  %1539 = vst.msk [vmem:[%s4 + $0xec] sm:$0xf] %vm1479, %v1410
  %1540 = vst.msk [vmem:[%s4 + $0xf0] sm:$0xf] %vm1479, %v1411
  %1541 = vst.msk [vmem:[%s4 + $0xf4] sm:$0xf] %vm1479, %v1412
  %1542 = vst.msk [vmem:[%s4 + $0xf8] sm:$0xf] %vm1479, %v1413
  %1543 = vst.msk [vmem:[%s4 + $0xfc] sm:$0xf] %vm1479, %v1414
  // Predicated region
  $region18: #{sppf_forward.2} parent=0 // pred_check
    _
  $region19: #{sppf_forward.2} parent=0 // pred_check_branch
    %1545 = sbr.rel (0) target = $region21
  $region20: #{sppf_forward.2} parent=0 // pred_region
    _
  $region21: #{sppf_forward.2} parent=0 // pred_fallthru
    _
  // Predicated region
  $region22: #{sppf_forward.2} parent=0 // pred_check
    _
  $region23: #{sppf_forward.2} parent=0 // pred_check_branch
    %1547 = sbr.rel (0) target = $region25
  $region24: #{sppf_forward.2} parent=0 // pred_region
    _
  $region25: #{sppf_forward.2} parent=0 // pred_fallthru
    _

// kernel: sppf_forward.3
$region0: #{sppf_forward.3}
  #allocation0 [shape = 'u32[]', space=smem, size = 0x4, offset = 0x4, fixed_abs, tag = 'smem constant byte address 0x4 - core index']
  #allocation1 [shape = 'u32[144,128]{1,0:T(1,128)}', space=vmem, size = 0x12000, scoped, tag = 'internal scratch']
  #allocation2 [shape = 'f32[256,8]{1,0:T(8,128)}', space=vmem, size = 0x20000, scoped, tag = 'scratch operand']
  #allocation3 [shape = 'f32[20,16,2]{2,1,0:T(8,128)}', space=vmem, size = 0x28000, scoped, tag = 'scratch operand']
  %s0 = inlined_call_operand.vmem [shape: bf16[2,16,16,2], index: 0, kind: input, shape index: {}]
  %s1 = inlined_call_operand.vmem [shape: bf16[4,2,8], index: 1, kind: input, shape index: {}]
  %s2 = inlined_call_operand.vmem [shape: f32[1,8], index: 2, kind: input, shape index: {}]
  %s3 = inlined_call_operand.vmem [shape: f32[1,8], index: 3, kind: input, shape index: {}]
  %s4 = inlined_call_operand.vmem [shape: f32[2,256,8], index: 4, kind: output, shape index: {}]
  %s5 = sld [smem:[#allocation0]]
  $region57: #{sppf_forward.3} parent=0
    _
  %s7 = ssub.s32 1, %s5
  %s8 = scalar_select 0, %s7, %s5
  loop: start=0, step=1, limit=4
  $region2: #{sppf_forward.3} parent=0 // loop_pre_header
    _
  $region3: #{sppf_forward.3} parent=0 // loop_header
    %s10 = sphi 0, %s14
    %p11 = scmp.ge.s32.totalorder %s10, 4
    %s17 = sphi 0, %s29
    %s18 = sphi 0, %s25
    %s19 = sphi 0, %s17
    %s20 = sphi 0, %s18
    %s21 = sphi 0, %s19
    %s22 = sphi 0, %s20
    %s34 = sphi 0, %s36
    %s37 = sphi 0, %s34
    %s38 = sphi 0, %s37
    %s54 = sphi 0, %s38
    %s60 = sphi 0, %s62
    %s63 = sphi 0, %s60
    %s64 = sphi 0, %s63
    %s80 = sphi 0, %s64
    %s84 = sphi 0, %s84
    %s86 = sphi 0, %s84
    %s87 = sphi 0, %s86
    %s101 = sphi 0, %s87
    %s105 = sphi 0, %s105
    %s107 = sphi 0, %s105
    %s108 = sphi 0, %s107
    %s122 = sphi 0, %s108
    %s128 = sphi 0, %s130
    %s131 = sphi 0, %s128
    %s132 = sphi 0, %s131
    %s148 = sphi 0, %s132
  $region4: #{sppf_forward.3} parent=0 // loop_header_branch
    %13 = sbr.rel (%p11) target = $region8
  $region5: #{sppf_forward.3} parent=0 // loop_body
    %s15 = ssub.s32 %s10, 1
    %s16 = ssub.s32 %s10, 2
    %s23 = sadd.s32 1, %s18
    %p24 = scmp.ge.s32.totalorder %s23, 1
    %s25 = scalar_select %p24, 0, %s23
    %s26 = sadd.s32 1, %s17
    %s27 = scalar_select %p24, %s26, %s17
    %p28 = scmp.ge.s32.totalorder %s27, 2
    %s29 = scalar_select %p28, 0, %s27
    %s30 = ssub.s32 %s17, %s29
    %s31 = ssub.s32 %s18, %s25
    %s32 = sor.u32 %s30, %s31
    %p33 = scmp.eq.s32.totalorder %s32, 0
    %s35 = sadd.s32 %s34, 1
    %s36 = scalar_select %p33, %s34, %s35
    %p39 = pneg %p33
    %p40 = scmp.eq.s32.totalorder %s10, 1
    %p41 = por %p39, %p40
    %p42 = scmp.ne.s32.totalorder %s34, %s37
    %p43 = scmp.eq.s32.totalorder %s10, 0
    %p44 = por %p42, %p43
    %p45 = scmp.ne.s32.totalorder %s34, %s37
    %p46 = scmp.eq.s32.totalorder %s15, 1
    %p47 = por %p45, %p46
    %p48 = scmp.ne.s32.totalorder %s37, %s38
    %p49 = scmp.eq.s32.totalorder %s15, 0
    %p50 = por %p48, %p49
    %p51 = scmp.ne.s32.totalorder %s37, %s38
    %p52 = scmp.eq.s32.totalorder %s16, 1
    %p53 = por %p51, %p52
    %p55 = scmp.ne.s32.totalorder %s38, %s54
    %p56 = scmp.eq.s32.totalorder %s16, 0
    %p57 = por %p55, %p56
    %s58 = ssub.s32 %s18, %s25
    %p59 = scmp.eq.s32.totalorder %s58, 0
    %s61 = sadd.s32 %s60, 1
    %s62 = scalar_select %p59, %s60, %s61
    %p65 = pneg %p59
    %p66 = scmp.eq.s32.totalorder %s10, 1
    %p67 = por %p65, %p66
    %p68 = scmp.ne.s32.totalorder %s60, %s63
    %p69 = scmp.eq.s32.totalorder %s10, 0
    %p70 = por %p68, %p69
    %p71 = scmp.ne.s32.totalorder %s60, %s63
    %p72 = scmp.eq.s32.totalorder %s15, 1
    %p73 = por %p71, %p72
    %p74 = scmp.ne.s32.totalorder %s63, %s64
    %p75 = scmp.eq.s32.totalorder %s15, 0
    %p76 = por %p74, %p75
    %p77 = scmp.ne.s32.totalorder %s63, %s64
    %p78 = scmp.eq.s32.totalorder %s16, 1
    %p79 = por %p77, %p78
    %p81 = scmp.ne.s32.totalorder %s64, %s80
    %p82 = scmp.eq.s32.totalorder %s16, 0
    %p83 = por %p81, %p82
    %s85 = sadd.s32 %s84, 1
    %p88 = scmp.eq.s32.totalorder %s10, 1
    %p89 = scmp.ne.s32.totalorder %s84, %s86
    %p90 = scmp.eq.s32.totalorder %s10, 0
    %p91 = por %p89, %p90
    %p92 = scmp.ne.s32.totalorder %s84, %s86
    %p93 = scmp.eq.s32.totalorder %s15, 1
    %p94 = por %p92, %p93
    %p95 = scmp.ne.s32.totalorder %s86, %s87
    %p96 = scmp.eq.s32.totalorder %s15, 0
    %p97 = por %p95, %p96
    %p98 = scmp.ne.s32.totalorder %s86, %s87
    %p99 = scmp.eq.s32.totalorder %s16, 1
    %p100 = por %p98, %p99
    %p102 = scmp.ne.s32.totalorder %s87, %s101
    %p103 = scmp.eq.s32.totalorder %s16, 0
    %p104 = por %p102, %p103
    %s106 = sadd.s32 %s105, 1
    %p109 = scmp.eq.s32.totalorder %s10, 1
    %p110 = scmp.ne.s32.totalorder %s105, %s107
    %p111 = scmp.eq.s32.totalorder %s10, 0
    %p112 = por %p110, %p111
    %p113 = scmp.ne.s32.totalorder %s105, %s107
    %p114 = scmp.eq.s32.totalorder %s15, 1
    %p115 = por %p113, %p114
    %p116 = scmp.ne.s32.totalorder %s107, %s108
    %p117 = scmp.eq.s32.totalorder %s15, 0
    %p118 = por %p116, %p117
    %p119 = scmp.ne.s32.totalorder %s107, %s108
    %p120 = scmp.eq.s32.totalorder %s16, 1
    %p121 = por %p119, %p120
    %p123 = scmp.ne.s32.totalorder %s108, %s122
    %p124 = scmp.eq.s32.totalorder %s16, 0
    %p125 = por %p123, %p124
    %s126 = ssub.s32 %s17, %s29
    %p127 = scmp.eq.s32.totalorder %s126, 0
    %s129 = sadd.s32 %s128, 1
    %s130 = scalar_select %p127, %s128, %s129
    %p133 = pneg %p127
    %p134 = scmp.eq.s32.totalorder %s10, 1
    %p135 = por %p133, %p134
    %p136 = scmp.ne.s32.totalorder %s128, %s131
    %p137 = scmp.eq.s32.totalorder %s10, 0
    %p138 = por %p136, %p137
    %p139 = scmp.ne.s32.totalorder %s128, %s131
    %p140 = scmp.eq.s32.totalorder %s15, 1
    %p141 = por %p139, %p140
    %p142 = scmp.ne.s32.totalorder %s131, %s132
    %p143 = scmp.eq.s32.totalorder %s15, 0
    %p144 = por %p142, %p143
    %p145 = scmp.ne.s32.totalorder %s131, %s132
    %p146 = scmp.eq.s32.totalorder %s16, 1
    %p147 = por %p145, %p146
    %p149 = scmp.ne.s32.totalorder %s132, %s148
    %p150 = scmp.eq.s32.totalorder %s16, 0
    %p151 = por %p149, %p150
    %p152 = scmp.le.s32.totalorder 1, %s10
    %p153 = scmp.lt.s32.totalorder %s10, 3
    %p154 = pnand %p152, %p153
    %p155 = pneg %p154
    // Predicated region
    $region9: #{sppf_forward.3} parent=5 // pred_check
      _
    $region10: #{sppf_forward.3} parent=5 // pred_check_branch
      %157 = sbr.rel (%p154) target = $region12
    $region11: #{sppf_forward.3} parent=5 // pred_region
      %s158 = ssub.s32 %s10, 1
      // Predicated region
      $region13: #{sppf_forward.3} parent=11 // pred_check
        %p159 = pneg %p76
      $region14: #{sppf_forward.3} parent=11 // pred_check_branch
        %161 = sbr.rel (%p159) target = $region16
      $region15: #{sppf_forward.3} parent=11 // pred_region
        %p162 = scmp.lt.s32.totalorder %s20, 0
        %s163 = scalar_select %p162, %s20, 0
        %s164 = scalar_lea.vmem %s1, %s163
      $region16: #{sppf_forward.3} parent=11 // pred_fallthru
        _
      // Predicated region
      $region17: #{sppf_forward.3} parent=11 // pred_check
        %p165 = pneg %p97
      $region18: #{sppf_forward.3} parent=11 // pred_check_branch
        %167 = sbr.rel (%p165) target = $region20
      $region19: #{sppf_forward.3} parent=11 // pred_region
        _
      $region20: #{sppf_forward.3} parent=11 // pred_fallthru
        _
      // Predicated region
      $region21: #{sppf_forward.3} parent=11 // pred_check
        %p168 = pneg %p118
      $region22: #{sppf_forward.3} parent=11 // pred_check_branch
        %170 = sbr.rel (%p168) target = $region24
      $region23: #{sppf_forward.3} parent=11 // pred_region
        _
      $region24: #{sppf_forward.3} parent=11 // pred_fallthru
        _
    $region12: #{sppf_forward.3} parent=5 // pred_fallthru
      _
    %p171 = scmp.lt.s32.totalorder %s10, 2
    // Predicated region
    $region25: #{sppf_forward.3} parent=5 // pred_check
      %p172 = pneg %p171
    $region26: #{sppf_forward.3} parent=5 // pred_check_branch
      %174 = sbr.rel (%p172) target = $region28
    $region27: #{sppf_forward.3} parent=5 // pred_region
      // Predicated region
      $region29: #{sppf_forward.3} parent=27 // pred_check
        %p175 = pneg %p44
      $region30: #{sppf_forward.3} parent=27 // pred_check_branch
        %177 = sbr.rel (%p175) target = $region32
      $region31: #{sppf_forward.3} parent=27 // pred_region
        %p178 = scmp.lt.s32.totalorder %s17, 1
        %s179 = scalar_select %p178, %s17, 1
        %p180 = scmp.lt.s32.totalorder %s18, 0
        %s181 = scalar_select %p180, %s18, 0
        %s182 = smul.addr %s179, 32
        %s183 = sadd.s32 %s181, %s182
        %s184 = smul.addr %s183, 4
        %s185 = scalar_lea.vmem %s0, %s184
      $region32: #{sppf_forward.3} parent=27 // pred_fallthru
        _
    $region28: #{sppf_forward.3} parent=5 // pred_fallthru
      _
    %p186 = scmp.le.s32.totalorder 1, %s10
    %p187 = scmp.lt.s32.totalorder %s10, 3
    %p188 = pnand %p186, %p187
    %p189 = pneg %p188
    // Predicated region
    $region33: #{sppf_forward.3} parent=5 // pred_check
      _
    $region34: #{sppf_forward.3} parent=5 // pred_check_branch
      %191 = sbr.rel (%p188) target = $region36
    $region35: #{sppf_forward.3} parent=5 // pred_region
      %s192 = ssub.s32 %s10, 1
      %p193 = scmp.lt.s32.totalorder %s19, 1
      %s194 = scalar_select %p193, %s19, 1
      %p195 = scmp.lt.s32.totalorder %s20, 0
      %s196 = scalar_select %p195, %s20, 0
      %s197 = smul.addr %s194, 32
      %s198 = sadd.s32 %s196, %s197
      %s199 = smul.addr %s198, 4
      %s200 = scalar_lea.vmem %s0, %s199
      %p201 = pneg %p50
      %p202 = pneg %p47
      %p203 = scmp.lt.s32.totalorder %s20, 0
      %s204 = scalar_select %p203, %s20, 0
      %s205 = scalar_lea.vmem %s1, %s204
      %p206 = pneg %p76
      %p207 = pneg %p73
      %p208 = pneg %p97
      %p209 = pneg %p94
      %p210 = pneg %p118
      %p211 = pneg %p115
      %p212 = pneg %p144
      %p213 = pneg %p141
      %p214 = scmp.lt.s32.totalorder %s19, 1
      %s215 = scalar_select %p214, %s19, 1
      %s216 = smul.addr %s215, 32
      %s217 = smul.addr %s216, 8
      %s218 = scalar_lea.vmem %s4, %s217
      %p219 = scmp.lt.s32.totalorder %s19, 1
      %s220 = scalar_select %p219, %s19, 1
      %p221 = scmp.lt.s32.totalorder %s20, 0
      %s222 = scalar_select %p221, %s20, 0
      %s223 = smul.addr %s220, 32
      %s224 = sadd.s32 %s222, %s223
      %s225 = smul.addr %s224, 4
      %s226 = scalar_lea.vmem %s0, %s225
      %p227 = scmp.lt.s32.totalorder %s20, 0
      %s228 = scalar_select %p227, %s20, 0
      %s229 = scalar_lea.vmem %s1, %s228
      %p230 = scmp.lt.s32.totalorder %s19, 1
      %s231 = scalar_select %p230, %s19, 1
      %s232 = smul.addr %s231, 32
      %s233 = smul.addr %s232, 8
      %s234 = scalar_lea.vmem %s4, %s233
      %v236 = vld [vmem:[%s226] sm:$0xf]
      %v237 = vld [vmem:[%s226 + $0x4] sm:$0xf]
      %v238 = vld [vmem:[%s226 + $0x8] sm:$0xf]
      %v239 = vld [vmem:[%s226 + $0xc] sm:$0xf]
      %v240 = vld [vmem:[%s226 + $0x10] sm:$0xf]
      %v241 = vld [vmem:[%s226 + $0x14] sm:$0xf]
      %v242 = vld [vmem:[%s226 + $0x18] sm:$0xf]
      %v243 = vld [vmem:[%s226 + $0x1c] sm:$0xf]
      %v244 = vld [vmem:[%s226 + $0x20] sm:$0xf]
      %v245 = vld [vmem:[%s226 + $0x24] sm:$0xf]
      %v246 = vld [vmem:[%s226 + $0x28] sm:$0xf]
      %v247 = vld [vmem:[%s226 + $0x2c] sm:$0xf]
      %v248 = vld [vmem:[%s226 + $0x30] sm:$0xf]
      %v249 = vld [vmem:[%s226 + $0x34] sm:$0xf]
      %v250 = vld [vmem:[%s226 + $0x38] sm:$0xf]
      %v251 = vld [vmem:[%s226 + $0x3c] sm:$0xf]
      %v252 = vld [vmem:[%s226 + $0x40] sm:$0xf]
      %v253 = vld [vmem:[%s226 + $0x44] sm:$0xf]
      %v254 = vld [vmem:[%s226 + $0x48] sm:$0xf]
      %v255 = vld [vmem:[%s226 + $0x4c] sm:$0xf]
      %v256 = vld [vmem:[%s226 + $0x50] sm:$0xf]
      %v257 = vld [vmem:[%s226 + $0x54] sm:$0xf]
      %v258 = vld [vmem:[%s226 + $0x58] sm:$0xf]
      %v259 = vld [vmem:[%s226 + $0x5c] sm:$0xf]
      %v260 = vld [vmem:[%s226 + $0x60] sm:$0xf]
      %v261 = vld [vmem:[%s226 + $0x64] sm:$0xf]
      %v262 = vld [vmem:[%s226 + $0x68] sm:$0xf]
      %v263 = vld [vmem:[%s226 + $0x6c] sm:$0xf]
      %v264 = vld [vmem:[%s226 + $0x70] sm:$0xf]
      %v265 = vld [vmem:[%s226 + $0x74] sm:$0xf]
      %v266 = vld [vmem:[%s226 + $0x78] sm:$0xf]
      %v267 = vld [vmem:[%s226 + $0x7c] sm:$0xf]
      %p268 = scmp.eq.s32.totalorder %s20, 0
      // Predicated region
      $region37: #{sppf_forward.3} parent=35 // pred_check
        %p269 = pneg %p268
      $region38: #{sppf_forward.3} parent=35 // pred_check_branch
        %271 = sbr.rel (%p269) target = $region40
      $region39: #{sppf_forward.3} parent=35 // pred_region
        %vm272 = vcmask 64512
        %273 = vst.msk [vmem:[#allocation2] sm:$0xff] %vm272, 0.0
        %274 = vst.msk [vmem:[#allocation2 + $0x8] sm:$0xff] %vm272, 0.0
        %275 = vst.msk [vmem:[#allocation2 + $0x10] sm:$0xff] %vm272, 0.0
        %276 = vst.msk [vmem:[#allocation2 + $0x18] sm:$0xff] %vm272, 0.0
        %277 = vst.msk [vmem:[#allocation2 + $0x20] sm:$0xff] %vm272, 0.0
        %278 = vst.msk [vmem:[#allocation2 + $0x28] sm:$0xff] %vm272, 0.0
        %279 = vst.msk [vmem:[#allocation2 + $0x30] sm:$0xff] %vm272, 0.0
        %280 = vst.msk [vmem:[#allocation2 + $0x38] sm:$0xff] %vm272, 0.0
        %281 = vst.msk [vmem:[#allocation2 + $0x40] sm:$0xff] %vm272, 0.0
        %282 = vst.msk [vmem:[#allocation2 + $0x48] sm:$0xff] %vm272, 0.0
        %283 = vst.msk [vmem:[#allocation2 + $0x50] sm:$0xff] %vm272, 0.0
        %284 = vst.msk [vmem:[#allocation2 + $0x58] sm:$0xff] %vm272, 0.0
        %285 = vst.msk [vmem:[#allocation2 + $0x60] sm:$0xff] %vm272, 0.0
        %286 = vst.msk [vmem:[#allocation2 + $0x68] sm:$0xff] %vm272, 0.0
        %287 = vst.msk [vmem:[#allocation2 + $0x70] sm:$0xff] %vm272, 0.0
        %288 = vst.msk [vmem:[#allocation2 + $0x78] sm:$0xff] %vm272, 0.0
        %289 = vst.msk [vmem:[#allocation2 + $0x80] sm:$0xff] %vm272, 0.0
        %290 = vst.msk [vmem:[#allocation2 + $0x88] sm:$0xff] %vm272, 0.0
        %291 = vst.msk [vmem:[#allocation2 + $0x90] sm:$0xff] %vm272, 0.0
        %292 = vst.msk [vmem:[#allocation2 + $0x98] sm:$0xff] %vm272, 0.0
        %293 = vst.msk [vmem:[#allocation2 + $0xa0] sm:$0xff] %vm272, 0.0
        %294 = vst.msk [vmem:[#allocation2 + $0xa8] sm:$0xff] %vm272, 0.0
        %295 = vst.msk [vmem:[#allocation2 + $0xb0] sm:$0xff] %vm272, 0.0
        %296 = vst.msk [vmem:[#allocation2 + $0xb8] sm:$0xff] %vm272, 0.0
        %297 = vst.msk [vmem:[#allocation2 + $0xc0] sm:$0xff] %vm272, 0.0
        %298 = vst.msk [vmem:[#allocation2 + $0xc8] sm:$0xff] %vm272, 0.0
        %299 = vst.msk [vmem:[#allocation2 + $0xd0] sm:$0xff] %vm272, 0.0
        %300 = vst.msk [vmem:[#allocation2 + $0xd8] sm:$0xff] %vm272, 0.0
        %301 = vst.msk [vmem:[#allocation2 + $0xe0] sm:$0xff] %vm272, 0.0
        %302 = vst.msk [vmem:[#allocation2 + $0xe8] sm:$0xff] %vm272, 0.0
        %303 = vst.msk [vmem:[#allocation2 + $0xf0] sm:$0xff] %vm272, 0.0
        %304 = vst.msk [vmem:[#allocation2 + $0xf8] sm:$0xff] %vm272, 0.0
      $region40: #{sppf_forward.3} parent=35 // pred_fallthru
        _
      %vm305 = vcmask 15360
      %306 = vst.msk [vmem:[#allocation3] sm:$0xff] %vm305, -inf
      %307 = vst.msk [vmem:[#allocation3 + $0x8] sm:$0xff] %vm305, -inf
      %308 = vst.msk [vmem:[#allocation3 + $0x10] sm:$0xff] %vm305, -inf
      %309 = vst.msk [vmem:[#allocation3 + $0x18] sm:$0xff] %vm305, -inf
      %s310 = scalar_lea.vmem [#allocation3], 288
      %311 = vst.msk [vmem:[%s310] sm:$0xff] %vm305, -inf
      %312 = vst.msk [vmem:[%s310 + $0x8] sm:$0xff] %vm305, -inf
      %313 = vst.msk [vmem:[%s310 + $0x10] sm:$0xff] %vm305, -inf
      %314 = vst.msk [vmem:[%s310 + $0x18] sm:$0xff] %vm305, -inf
      %v315 = vlaneseq
      %v316 = vshrl.u32 %v315, 7
      %v317 = vadd.s32 %v316, 8
      %vm318 = vcmp.ge.s32.totalorder %v316, 1
      %vm319 = vcmp.ge.s32.totalorder %v317, 1
      %vm320 = vcmp.ge.s32.totalorder %v316, 2
      %vm321 = vcmp.ge.s32.totalorder %v317, 2
      %vm322 = vcmp.lt.s32.totalorder %v316, 14
      %vm323 = vcmp.lt.s32.totalorder %v317, 14
      %vm324 = vcmp.lt.s32.totalorder %v316, 15
      %vm325 = vcmp.lt.s32.totalorder %v317, 15
      %v326 = vunpack.c.l.bf16 %v236
      %v327 = vunpack.c.l.bf16 %v237
      %v328 = vunpack.c.l.bf16 %v238
      %v329 = vunpack.c.l.bf16 %v239
      %v330 = vunpack.c.l.bf16 %v240
      %v331 = vunpack.c.l.bf16 %v241
      %v332 = vunpack.c.l.bf16 %v242
      %v333 = vunpack.c.l.bf16 %v243
      %v334 = vunpack.c.l.bf16 %v244
      %v335 = vunpack.c.l.bf16 %v245
      %v336 = vunpack.c.l.bf16 %v246
      %v337 = vunpack.c.l.bf16 %v247
      %v338 = vunpack.c.l.bf16 %v248
      %v339 = vunpack.c.l.bf16 %v249
      %v340 = vunpack.c.l.bf16 %v250
      %v341 = vunpack.c.l.bf16 %v251
      %v342 = vunpack.c.l.bf16 %v252
      %v343 = vunpack.c.l.bf16 %v253
      %v344 = vunpack.c.l.bf16 %v254
      %v345 = vunpack.c.l.bf16 %v255
      %v346 = vunpack.c.l.bf16 %v256
      %v347 = vunpack.c.l.bf16 %v257
      %v348 = vunpack.c.l.bf16 %v258
      %v349 = vunpack.c.l.bf16 %v259
      %v350 = vunpack.c.l.bf16 %v260
      %v351 = vunpack.c.l.bf16 %v261
      %v352 = vunpack.c.l.bf16 %v262
      %v353 = vunpack.c.l.bf16 %v263
      %v354 = vunpack.c.l.bf16 %v264
      %v355 = vunpack.c.l.bf16 %v265
      %v356 = vunpack.c.l.bf16 %v266
      %v357 = vunpack.c.l.bf16 %v267
      %v358 = vrot.slane %v326, 7
      %v359 = vrot.slane %v328, 7
      %v360 = vrot.slane %v330, 7
      %v361 = vrot.slane %v332, 7
      %v362 = vrot.slane %v334, 7
      %v363 = vrot.slane %v336, 7
      %v364 = vrot.slane %v338, 7
      %v365 = vrot.slane %v340, 7
      %v366 = vrot.slane %v342, 7
      %v367 = vrot.slane %v344, 7
      %v368 = vrot.slane %v346, 7
      %v369 = vrot.slane %v348, 7
      %v370 = vrot.slane %v350, 7
      %v371 = vrot.slane %v352, 7
      %v372 = vrot.slane %v354, 7
      %v373 = vrot.slane %v356, 7
      %v374 = vrot.slane %v327, 7
      %v375 = vrot.slane %v329, 7
      %v376 = vrot.slane %v331, 7
      %v377 = vrot.slane %v333, 7
      %v378 = vrot.slane %v335, 7
      %v379 = vrot.slane %v337, 7
      %v380 = vrot.slane %v339, 7
      %v381 = vrot.slane %v341, 7
      %v382 = vrot.slane %v343, 7
      %v383 = vrot.slane %v345, 7
      %v384 = vrot.slane %v347, 7
      %v385 = vrot.slane %v349, 7
      %v386 = vrot.slane %v351, 7
      %v387 = vrot.slane %v353, 7
      %v388 = vrot.slane %v355, 7
      %v389 = vrot.slane %v357, 7
      %vm390 = vcmp.lt.s32.totalorder %v316, 1
      %v391 = vsel %vm390, %v358, %v374
      %v392 = vsel %vm390, %v359, %v375
      %v393 = vsel %vm390, %v360, %v376
      %v394 = vsel %vm390, %v361, %v377
      %v395 = vsel %vm390, %v362, %v378
      %v396 = vsel %vm390, %v363, %v379
      %v397 = vsel %vm390, %v364, %v380
      %v398 = vsel %vm390, %v365, %v381
      %v399 = vsel %vm390, %v366, %v382
      %v400 = vsel %vm390, %v367, %v383
      %v401 = vsel %vm390, %v368, %v384
      %v402 = vsel %vm390, %v369, %v385
      %v403 = vsel %vm390, %v370, %v386
      %v404 = vsel %vm390, %v371, %v387
      %v405 = vsel %vm390, %v372, %v388
      %v406 = vsel %vm390, %v373, %v389
      %v407 = vsel %vm390, %v374, %v358
      %v408 = vsel %vm390, %v375, %v359
      %v409 = vsel %vm390, %v376, %v360
      %v410 = vsel %vm390, %v377, %v361
      %v411 = vsel %vm390, %v378, %v362
      %v412 = vsel %vm390, %v379, %v363
      %v413 = vsel %vm390, %v380, %v364
      %v414 = vsel %vm390, %v381, %v365
      %v415 = vsel %vm390, %v382, %v366
      %v416 = vsel %vm390, %v383, %v367
      %v417 = vsel %vm390, %v384, %v368
      %v418 = vsel %vm390, %v385, %v369
      %v419 = vsel %vm390, %v386, %v370
      %v420 = vsel %vm390, %v387, %v371
      %v421 = vsel %vm390, %v388, %v372
      %v422 = vsel %vm390, %v389, %v373
      %v423 = vsel %vm318, %v407, -inf
      %v424 = vsel %vm319, %v391, -inf
      %v425 = vsel %vm318, %v408, -inf
      %v426 = vsel %vm319, %v392, -inf
      %v427 = vsel %vm318, %v409, -inf
      %v428 = vsel %vm319, %v393, -inf
      %v429 = vsel %vm318, %v410, -inf
      %v430 = vsel %vm319, %v394, -inf
      %v431 = vsel %vm318, %v411, -inf
      %v432 = vsel %vm319, %v395, -inf
      %v433 = vsel %vm318, %v412, -inf
      %v434 = vsel %vm319, %v396, -inf
      %v435 = vsel %vm318, %v413, -inf
      %v436 = vsel %vm319, %v397, -inf
      %v437 = vsel %vm318, %v414, -inf
      %v438 = vsel %vm319, %v398, -inf
      %v439 = vsel %vm318, %v415, -inf
      %v440 = vsel %vm319, %v399, -inf
      %v441 = vsel %vm318, %v416, -inf
      %v442 = vsel %vm319, %v400, -inf
      %v443 = vsel %vm318, %v417, -inf
      %v444 = vsel %vm319, %v401, -inf
      %v445 = vsel %vm318, %v418, -inf
      %v446 = vsel %vm319, %v402, -inf
      %v447 = vsel %vm318, %v419, -inf
      %v448 = vsel %vm319, %v403, -inf
      %v449 = vsel %vm318, %v420, -inf
      %v450 = vsel %vm319, %v404, -inf
      %v451 = vsel %vm318, %v421, -inf
      %v452 = vsel %vm319, %v405, -inf
      %v453 = vsel %vm318, %v422, -inf
      %v454 = vsel %vm319, %v406, -inf
      %v455 = vmax.f32 %v326, %v423
      %v456 = vmax.f32 %v327, %v424
      %v457 = vmax.f32 %v328, %v425
      %v458 = vmax.f32 %v329, %v426
      %v459 = vmax.f32 %v330, %v427
      %v460 = vmax.f32 %v331, %v428
      %v461 = vmax.f32 %v332, %v429
      %v462 = vmax.f32 %v333, %v430
      %v463 = vmax.f32 %v334, %v431
      %v464 = vmax.f32 %v335, %v432
      %v465 = vmax.f32 %v336, %v433
      %v466 = vmax.f32 %v337, %v434
      %v467 = vmax.f32 %v338, %v435
      %v468 = vmax.f32 %v339, %v436
      %v469 = vmax.f32 %v340, %v437
      %v470 = vmax.f32 %v341, %v438
      %v471 = vmax.f32 %v342, %v439
      %v472 = vmax.f32 %v343, %v440
      %v473 = vmax.f32 %v344, %v441
      %v474 = vmax.f32 %v345, %v442
      %v475 = vmax.f32 %v346, %v443
      %v476 = vmax.f32 %v347, %v444
      %v477 = vmax.f32 %v348, %v445
      %v478 = vmax.f32 %v349, %v446
      %v479 = vmax.f32 %v350, %v447
      %v480 = vmax.f32 %v351, %v448
      %v481 = vmax.f32 %v352, %v449
      %v482 = vmax.f32 %v353, %v450
      %v483 = vmax.f32 %v354, %v451
      %v484 = vmax.f32 %v355, %v452
      %v485 = vmax.f32 %v356, %v453
      %v486 = vmax.f32 %v357, %v454
      %v487 = vrot.slane %v326, 6
      %v488 = vrot.slane %v328, 6
      %v489 = vrot.slane %v330, 6
      %v490 = vrot.slane %v332, 6
      %v491 = vrot.slane %v334, 6
      %v492 = vrot.slane %v336, 6
      %v493 = vrot.slane %v338, 6
      %v494 = vrot.slane %v340, 6
      %v495 = vrot.slane %v342, 6
      %v496 = vrot.slane %v344, 6
      %v497 = vrot.slane %v346, 6
      %v498 = vrot.slane %v348, 6
      %v499 = vrot.slane %v350, 6
      %v500 = vrot.slane %v352, 6
      %v501 = vrot.slane %v354, 6
      %v502 = vrot.slane %v356, 6
      %v503 = vrot.slane %v327, 6
      %v504 = vrot.slane %v329, 6
      %v505 = vrot.slane %v331, 6
      %v506 = vrot.slane %v333, 6
      %v507 = vrot.slane %v335, 6
      %v508 = vrot.slane %v337, 6
      %v509 = vrot.slane %v339, 6
      %v510 = vrot.slane %v341, 6
      %v511 = vrot.slane %v343, 6
      %v512 = vrot.slane %v345, 6
      %v513 = vrot.slane %v347, 6
      %v514 = vrot.slane %v349, 6
      %v515 = vrot.slane %v351, 6
      %v516 = vrot.slane %v353, 6
      %v517 = vrot.slane %v355, 6
      %v518 = vrot.slane %v357, 6
      %vm519 = vcmp.lt.s32.totalorder %v316, 2
      %v520 = vsel %vm519, %v487, %v503
      %v521 = vsel %vm519, %v488, %v504
      %v522 = vsel %vm519, %v489, %v505
      %v523 = vsel %vm519, %v490, %v506
      %v524 = vsel %vm519, %v491, %v507
      %v525 = vsel %vm519, %v492, %v508
      %v526 = vsel %vm519, %v493, %v509
      %v527 = vsel %vm519, %v494, %v510
      %v528 = vsel %vm519, %v495, %v511
      %v529 = vsel %vm519, %v496, %v512
      %v530 = vsel %vm519, %v497, %v513
      %v531 = vsel %vm519, %v498, %v514
      %v532 = vsel %vm519, %v499, %v515
      %v533 = vsel %vm519, %v500, %v516
      %v534 = vsel %vm519, %v501, %v517
      %v535 = vsel %vm519, %v502, %v518
      %v536 = vsel %vm519, %v503, %v487
      %v537 = vsel %vm519, %v504, %v488
      %v538 = vsel %vm519, %v505, %v489
      %v539 = vsel %vm519, %v506, %v490
      %v540 = vsel %vm519, %v507, %v491
      %v541 = vsel %vm519, %v508, %v492
      %v542 = vsel %vm519, %v509, %v493
      %v543 = vsel %vm519, %v510, %v494
      %v544 = vsel %vm519, %v511, %v495
      %v545 = vsel %vm519, %v512, %v496
      %v546 = vsel %vm519, %v513, %v497
      %v547 = vsel %vm519, %v514, %v498
      %v548 = vsel %vm519, %v515, %v499
      %v549 = vsel %vm519, %v516, %v500
      %v550 = vsel %vm519, %v517, %v501
      %v551 = vsel %vm519, %v518, %v502
      %v552 = vsel %vm320, %v536, -inf
      %v553 = vsel %vm321, %v520, -inf
      %v554 = vsel %vm320, %v537, -inf
      %v555 = vsel %vm321, %v521, -inf
      %v556 = vsel %vm320, %v538, -inf
      %v557 = vsel %vm321, %v522, -inf
      %v558 = vsel %vm320, %v539, -inf
      %v559 = vsel %vm321, %v523, -inf
      %v560 = vsel %vm320, %v540, -inf
      %v561 = vsel %vm321, %v524, -inf
      %v562 = vsel %vm320, %v541, -inf
      %v563 = vsel %vm321, %v525, -inf
      %v564 = vsel %vm320, %v542, -inf
      %v565 = vsel %vm321, %v526, -inf
      %v566 = vsel %vm320, %v543, -inf
      %v567 = vsel %vm321, %v527, -inf
      %v568 = vsel %vm320, %v544, -inf
      %v569 = vsel %vm321, %v528, -inf
      %v570 = vsel %vm320, %v545, -inf
      %v571 = vsel %vm321, %v529, -inf
      %v572 = vsel %vm320, %v546, -inf
      %v573 = vsel %vm321, %v530, -inf
      %v574 = vsel %vm320, %v547, -inf
      %v575 = vsel %vm321, %v531, -inf
      %v576 = vsel %vm320, %v548, -inf
      %v577 = vsel %vm321, %v532, -inf
      %v578 = vsel %vm320, %v549, -inf
      %v579 = vsel %vm321, %v533, -inf
      %v580 = vsel %vm320, %v550, -inf
      %v581 = vsel %vm321, %v534, -inf
      %v582 = vsel %vm320, %v551, -inf
      %v583 = vsel %vm321, %v535, -inf
      %v584 = vmax.f32 %v455, %v552
      %v585 = vmax.f32 %v456, %v553
      %v586 = vmax.f32 %v457, %v554
      %v587 = vmax.f32 %v458, %v555
      %v588 = vmax.f32 %v459, %v556
      %v589 = vmax.f32 %v460, %v557
      %v590 = vmax.f32 %v461, %v558
      %v591 = vmax.f32 %v462, %v559
      %v592 = vmax.f32 %v463, %v560
      %v593 = vmax.f32 %v464, %v561
      %v594 = vmax.f32 %v465, %v562
      %v595 = vmax.f32 %v466, %v563
      %v596 = vmax.f32 %v467, %v564
      %v597 = vmax.f32 %v468, %v565
      %v598 = vmax.f32 %v469, %v566
      %v599 = vmax.f32 %v470, %v567
      %v600 = vmax.f32 %v471, %v568
      %v601 = vmax.f32 %v472, %v569
      %v602 = vmax.f32 %v473, %v570
      %v603 = vmax.f32 %v474, %v571
      %v604 = vmax.f32 %v475, %v572
      %v605 = vmax.f32 %v476, %v573
      %v606 = vmax.f32 %v477, %v574
      %v607 = vmax.f32 %v478, %v575
      %v608 = vmax.f32 %v479, %v576
      %v609 = vmax.f32 %v480, %v577
      %v610 = vmax.f32 %v481, %v578
      %v611 = vmax.f32 %v482, %v579
      %v612 = vmax.f32 %v483, %v580
      %v613 = vmax.f32 %v484, %v581
      %v614 = vmax.f32 %v485, %v582
      %v615 = vmax.f32 %v486, %v583
      %v616 = vrot.slane %v326, 2
      %v617 = vrot.slane %v328, 2
      %v618 = vrot.slane %v330, 2
      %v619 = vrot.slane %v332, 2
      %v620 = vrot.slane %v334, 2
      %v621 = vrot.slane %v336, 2
      %v622 = vrot.slane %v338, 2
      %v623 = vrot.slane %v340, 2
      %v624 = vrot.slane %v342, 2
      %v625 = vrot.slane %v344, 2
      %v626 = vrot.slane %v346, 2
      %v627 = vrot.slane %v348, 2
      %v628 = vrot.slane %v350, 2
      %v629 = vrot.slane %v352, 2
      %v630 = vrot.slane %v354, 2
      %v631 = vrot.slane %v356, 2
      %v632 = vrot.slane %v327, 2
      %v633 = vrot.slane %v329, 2
      %v634 = vrot.slane %v331, 2
      %v635 = vrot.slane %v333, 2
      %v636 = vrot.slane %v335, 2
      %v637 = vrot.slane %v337, 2
      %v638 = vrot.slane %v339, 2
      %v639 = vrot.slane %v341, 2
      %v640 = vrot.slane %v343, 2
      %v641 = vrot.slane %v345, 2
      %v642 = vrot.slane %v347, 2
      %v643 = vrot.slane %v349, 2
      %v644 = vrot.slane %v351, 2
      %v645 = vrot.slane %v353, 2
      %v646 = vrot.slane %v355, 2
      %v647 = vrot.slane %v357, 2
      %vm648 = vcmp.lt.s32.totalorder %v316, 6
      %v649 = vsel %vm648, %v616, %v632
      %v650 = vsel %vm648, %v617, %v633
      %v651 = vsel %vm648, %v618, %v634
      %v652 = vsel %vm648, %v619, %v635
      %v653 = vsel %vm648, %v620, %v636
      %v654 = vsel %vm648, %v621, %v637
      %v655 = vsel %vm648, %v622, %v638
      %v656 = vsel %vm648, %v623, %v639
      %v657 = vsel %vm648, %v624, %v640
      %v658 = vsel %vm648, %v625, %v641
      %v659 = vsel %vm648, %v626, %v642
      %v660 = vsel %vm648, %v627, %v643
      %v661 = vsel %vm648, %v628, %v644
      %v662 = vsel %vm648, %v629, %v645
      %v663 = vsel %vm648, %v630, %v646
      %v664 = vsel %vm648, %v631, %v647
      %v665 = vsel %vm648, %v632, %v616
      %v666 = vsel %vm648, %v633, %v617
      %v667 = vsel %vm648, %v634, %v618
      %v668 = vsel %vm648, %v635, %v619
      %v669 = vsel %vm648, %v636, %v620
      %v670 = vsel %vm648, %v637, %v621
      %v671 = vsel %vm648, %v638, %v622
      %v672 = vsel %vm648, %v639, %v623
      %v673 = vsel %vm648, %v640, %v624
      %v674 = vsel %vm648, %v641, %v625
      %v675 = vsel %vm648, %v642, %v626
      %v676 = vsel %vm648, %v643, %v627
      %v677 = vsel %vm648, %v644, %v628
      %v678 = vsel %vm648, %v645, %v629
      %v679 = vsel %vm648, %v646, %v630
      %v680 = vsel %vm648, %v647, %v631
      %v681 = vsel %vm322, %v649, -inf
      %v682 = vsel %vm323, %v665, -inf
      %v683 = vsel %vm322, %v650, -inf
      %v684 = vsel %vm323, %v666, -inf
      %v685 = vsel %vm322, %v651, -inf
      %v686 = vsel %vm323, %v667, -inf
      %v687 = vsel %vm322, %v652, -inf
      %v688 = vsel %vm323, %v668, -inf
      %v689 = vsel %vm322, %v653, -inf
      %v690 = vsel %vm323, %v669, -inf
      %v691 = vsel %vm322, %v654, -inf
      %v692 = vsel %vm323, %v670, -inf
      %v693 = vsel %vm322, %v655, -inf
      %v694 = vsel %vm323, %v671, -inf
      %v695 = vsel %vm322, %v656, -inf
      %v696 = vsel %vm323, %v672, -inf
      %v697 = vsel %vm322, %v657, -inf
      %v698 = vsel %vm323, %v673, -inf
      %v699 = vsel %vm322, %v658, -inf
      %v700 = vsel %vm323, %v674, -inf
      %v701 = vsel %vm322, %v659, -inf
      %v702 = vsel %vm323, %v675, -inf
      %v703 = vsel %vm322, %v660, -inf
      %v704 = vsel %vm323, %v676, -inf
      %v705 = vsel %vm322, %v661, -inf
      %v706 = vsel %vm323, %v677, -inf
      %v707 = vsel %vm322, %v662, -inf
      %v708 = vsel %vm323, %v678, -inf
      %v709 = vsel %vm322, %v663, -inf
      %v710 = vsel %vm323, %v679, -inf
      %v711 = vsel %vm322, %v664, -inf
      %v712 = vsel %vm323, %v680, -inf
      %v713 = vmax.f32 %v584, %v681
      %v714 = vmax.f32 %v585, %v682
      %v715 = vmax.f32 %v586, %v683
      %v716 = vmax.f32 %v587, %v684
      %v717 = vmax.f32 %v588, %v685
      %v718 = vmax.f32 %v589, %v686
      %v719 = vmax.f32 %v590, %v687
      %v720 = vmax.f32 %v591, %v688
      %v721 = vmax.f32 %v592, %v689
      %v722 = vmax.f32 %v593, %v690
      %v723 = vmax.f32 %v594, %v691
      %v724 = vmax.f32 %v595, %v692
      %v725 = vmax.f32 %v596, %v693
      %v726 = vmax.f32 %v597, %v694
      %v727 = vmax.f32 %v598, %v695
      %v728 = vmax.f32 %v599, %v696
      %v729 = vmax.f32 %v600, %v697
      %v730 = vmax.f32 %v601, %v698
      %v731 = vmax.f32 %v602, %v699
      %v732 = vmax.f32 %v603, %v700
      %v733 = vmax.f32 %v604, %v701
      %v734 = vmax.f32 %v605, %v702
      %v735 = vmax.f32 %v606, %v703
      %v736 = vmax.f32 %v607, %v704
      %v737 = vmax.f32 %v608, %v705
      %v738 = vmax.f32 %v609, %v706
      %v739 = vmax.f32 %v610, %v707
      %v740 = vmax.f32 %v611, %v708
      %v741 = vmax.f32 %v612, %v709
      %v742 = vmax.f32 %v613, %v710
      %v743 = vmax.f32 %v614, %v711
      %v744 = vmax.f32 %v615, %v712
      %v745 = vrot.slane %v326, 1
      %v746 = vrot.slane %v328, 1
      %v747 = vrot.slane %v330, 1
      %v748 = vrot.slane %v332, 1
      %v749 = vrot.slane %v334, 1
      %v750 = vrot.slane %v336, 1
      %v751 = vrot.slane %v338, 1
      %v752 = vrot.slane %v340, 1
      %v753 = vrot.slane %v342, 1
      %v754 = vrot.slane %v344, 1
      %v755 = vrot.slane %v346, 1
      %v756 = vrot.slane %v348, 1
      %v757 = vrot.slane %v350, 1
      %v758 = vrot.slane %v352, 1
      %v759 = vrot.slane %v354, 1
      %v760 = vrot.slane %v356, 1
      %v761 = vrot.slane %v327, 1
      %v762 = vrot.slane %v329, 1
      %v763 = vrot.slane %v331, 1
      %v764 = vrot.slane %v333, 1
      %v765 = vrot.slane %v335, 1
      %v766 = vrot.slane %v337, 1
      %v767 = vrot.slane %v339, 1
      %v768 = vrot.slane %v341, 1
      %v769 = vrot.slane %v343, 1
      %v770 = vrot.slane %v345, 1
      %v771 = vrot.slane %v347, 1
      %v772 = vrot.slane %v349, 1
      %v773 = vrot.slane %v351, 1
      %v774 = vrot.slane %v353, 1
      %v775 = vrot.slane %v355, 1
      %v776 = vrot.slane %v357, 1
      %vm777 = vcmp.lt.s32.totalorder %v316, 7
      %v778 = vsel %vm777, %v745, %v761
      %v779 = vsel %vm777, %v746, %v762
      %v780 = vsel %vm777, %v747, %v763
      %v781 = vsel %vm777, %v748, %v764
      %v782 = vsel %vm777, %v749, %v765
      %v783 = vsel %vm777, %v750, %v766
      %v784 = vsel %vm777, %v751, %v767
      %v785 = vsel %vm777, %v752, %v768
      %v786 = vsel %vm777, %v753, %v769
      %v787 = vsel %vm777, %v754, %v770
      %v788 = vsel %vm777, %v755, %v771
      %v789 = vsel %vm777, %v756, %v772
      %v790 = vsel %vm777, %v757, %v773
      %v791 = vsel %vm777, %v758, %v774
      %v792 = vsel %vm777, %v759, %v775
      %v793 = vsel %vm777, %v760, %v776
      %v794 = vsel %vm777, %v761, %v745
      %v795 = vsel %vm777, %v762, %v746
      %v796 = vsel %vm777, %v763, %v747
      %v797 = vsel %vm777, %v764, %v748
      %v798 = vsel %vm777, %v765, %v749
      %v799 = vsel %vm777, %v766, %v750
      %v800 = vsel %vm777, %v767, %v751
      %v801 = vsel %vm777, %v768, %v752
      %v802 = vsel %vm777, %v769, %v753
      %v803 = vsel %vm777, %v770, %v754
      %v804 = vsel %vm777, %v771, %v755
      %v805 = vsel %vm777, %v772, %v756
      %v806 = vsel %vm777, %v773, %v757
      %v807 = vsel %vm777, %v774, %v758
      %v808 = vsel %vm777, %v775, %v759
      %v809 = vsel %vm777, %v776, %v760
      %v810 = vsel %vm324, %v778, -inf
      %v811 = vsel %vm325, %v794, -inf
      %v812 = vsel %vm324, %v779, -inf
      %v813 = vsel %vm325, %v795, -inf
      %v814 = vsel %vm324, %v780, -inf
      %v815 = vsel %vm325, %v796, -inf
      %v816 = vsel %vm324, %v781, -inf
      %v817 = vsel %vm325, %v797, -inf
      %v818 = vsel %vm324, %v782, -inf
      %v819 = vsel %vm325, %v798, -inf
      %v820 = vsel %vm324, %v783, -inf
      %v821 = vsel %vm325, %v799, -inf
      %v822 = vsel %vm324, %v784, -inf
      %v823 = vsel %vm325, %v800, -inf
      %v824 = vsel %vm324, %v785, -inf
      %v825 = vsel %vm325, %v801, -inf
      %v826 = vsel %vm324, %v786, -inf
      %v827 = vsel %vm325, %v802, -inf
      %v828 = vsel %vm324, %v787, -inf
      %v829 = vsel %vm325, %v803, -inf
      %v830 = vsel %vm324, %v788, -inf
      %v831 = vsel %vm325, %v804, -inf
      %v832 = vsel %vm324, %v789, -inf
      %v833 = vsel %vm325, %v805, -inf
      %v834 = vsel %vm324, %v790, -inf
      %v835 = vsel %vm325, %v806, -inf
      %v836 = vsel %vm324, %v791, -inf
      %v837 = vsel %vm325, %v807, -inf
      %v838 = vsel %vm324, %v792, -inf
      %v839 = vsel %vm325, %v808, -inf
      %v840 = vsel %vm324, %v793, -inf
      %v841 = vsel %vm325, %v809, -inf
      %v842 = vmax.f32 %v713, %v810
      %v843 = vmax.f32 %v714, %v811
      %v844 = vmax.f32 %v715, %v812
      %v845 = vmax.f32 %v716, %v813
      %v846 = vmax.f32 %v717, %v814
      %v847 = vmax.f32 %v718, %v815
      %v848 = vmax.f32 %v719, %v816
      %v849 = vmax.f32 %v720, %v817
      %v850 = vmax.f32 %v721, %v818
      %v851 = vmax.f32 %v722, %v819
      %v852 = vmax.f32 %v723, %v820
      %v853 = vmax.f32 %v724, %v821
      %v854 = vmax.f32 %v725, %v822
      %v855 = vmax.f32 %v726, %v823
      %v856 = vmax.f32 %v727, %v824
      %v857 = vmax.f32 %v728, %v825
      %v858 = vmax.f32 %v729, %v826
      %v859 = vmax.f32 %v730, %v827
      %v860 = vmax.f32 %v731, %v828
      %v861 = vmax.f32 %v732, %v829
      %v862 = vmax.f32 %v733, %v830
      %v863 = vmax.f32 %v734, %v831
      %v864 = vmax.f32 %v735, %v832
      %v865 = vmax.f32 %v736, %v833
      %v866 = vmax.f32 %v737, %v834
      %v867 = vmax.f32 %v738, %v835
      %v868 = vmax.f32 %v739, %v836
      %v869 = vmax.f32 %v740, %v837
      %v870 = vmax.f32 %v741, %v838
      %v871 = vmax.f32 %v742, %v839
      %v872 = vmax.f32 %v743, %v840
      %v873 = vmax.f32 %v744, %v841
      %s874 = scalar_lea.vmem [#allocation3], 32
      %875 = vst.msk [vmem:[%s874] sm:$0xff] %vm305, %v842
      %876 = vst.msk [vmem:[%s874 + $0x8] sm:$0xff] %vm305, %v843
      %877 = vst.msk [vmem:[%s874 + $0x10] sm:$0xff] %vm305, %v844
      %878 = vst.msk [vmem:[%s874 + $0x18] sm:$0xff] %vm305, %v845
      %879 = vst.msk [vmem:[%s874 + $0x20] sm:$0xff] %vm305, %v846
      %880 = vst.msk [vmem:[%s874 + $0x28] sm:$0xff] %vm305, %v847
      %881 = vst.msk [vmem:[%s874 + $0x30] sm:$0xff] %vm305, %v848
      %882 = vst.msk [vmem:[%s874 + $0x38] sm:$0xff] %vm305, %v849
      %883 = vst.msk [vmem:[%s874 + $0x40] sm:$0xff] %vm305, %v850
      %884 = vst.msk [vmem:[%s874 + $0x48] sm:$0xff] %vm305, %v851
      %885 = vst.msk [vmem:[%s874 + $0x50] sm:$0xff] %vm305, %v852
      %886 = vst.msk [vmem:[%s874 + $0x58] sm:$0xff] %vm305, %v853
      %887 = vst.msk [vmem:[%s874 + $0x60] sm:$0xff] %vm305, %v854
      %888 = vst.msk [vmem:[%s874 + $0x68] sm:$0xff] %vm305, %v855
      %889 = vst.msk [vmem:[%s874 + $0x70] sm:$0xff] %vm305, %v856
      %890 = vst.msk [vmem:[%s874 + $0x78] sm:$0xff] %vm305, %v857
      %891 = vst.msk [vmem:[%s874 + $0x80] sm:$0xff] %vm305, %v858
      %892 = vst.msk [vmem:[%s874 + $0x88] sm:$0xff] %vm305, %v859
      %893 = vst.msk [vmem:[%s874 + $0x90] sm:$0xff] %vm305, %v860
      %894 = vst.msk [vmem:[%s874 + $0x98] sm:$0xff] %vm305, %v861
      %895 = vst.msk [vmem:[%s874 + $0xa0] sm:$0xff] %vm305, %v862
      %896 = vst.msk [vmem:[%s874 + $0xa8] sm:$0xff] %vm305, %v863
      %897 = vst.msk [vmem:[%s874 + $0xb0] sm:$0xff] %vm305, %v864
      %898 = vst.msk [vmem:[%s874 + $0xb8] sm:$0xff] %vm305, %v865
      %899 = vst.msk [vmem:[%s874 + $0xc0] sm:$0xff] %vm305, %v866
      %900 = vst.msk [vmem:[%s874 + $0xc8] sm:$0xff] %vm305, %v867
      %901 = vst.msk [vmem:[%s874 + $0xd0] sm:$0xff] %vm305, %v868
      %902 = vst.msk [vmem:[%s874 + $0xd8] sm:$0xff] %vm305, %v869
      %903 = vst.msk [vmem:[%s874 + $0xe0] sm:$0xff] %vm305, %v870
      %904 = vst.msk [vmem:[%s874 + $0xe8] sm:$0xff] %vm305, %v871
      %905 = vst.msk [vmem:[%s874 + $0xf0] sm:$0xff] %vm305, %v872
      %906 = vst.msk [vmem:[%s874 + $0xf8] sm:$0xff] %vm305, %v873
      %v907 = vld [vmem:[#allocation3] sm:$0xff]
      %v908 = vld [vmem:[#allocation3 + $0x8] sm:$0xff]
      %v909 = vld [vmem:[#allocation3 + $0x10] sm:$0xff]
      %v910 = vld [vmem:[#allocation3 + $0x18] sm:$0xff]
      %v911 = vld [vmem:[#allocation3 + $0x20] sm:$0xff]
      %v912 = vld [vmem:[#allocation3 + $0x28] sm:$0xff]
      %v913 = vld [vmem:[#allocation3 + $0x30] sm:$0xff]
      %v914 = vld [vmem:[#allocation3 + $0x38] sm:$0xff]
      %v915 = vld [vmem:[#allocation3 + $0x40] sm:$0xff]
      %v916 = vld [vmem:[#allocation3 + $0x48] sm:$0xff]
      %v917 = vld [vmem:[#allocation3 + $0x50] sm:$0xff]
      %v918 = vld [vmem:[#allocation3 + $0x58] sm:$0xff]
      %v919 = vld [vmem:[#allocation3 + $0x60] sm:$0xff]
      %v920 = vld [vmem:[#allocation3 + $0x68] sm:$0xff]
      %v921 = vld [vmem:[#allocation3 + $0x70] sm:$0xff]
      %v922 = vld [vmem:[#allocation3 + $0x78] sm:$0xff]
      %v923 = vld [vmem:[#allocation3 + $0x80] sm:$0xff]
      %v924 = vld [vmem:[#allocation3 + $0x88] sm:$0xff]
      %v925 = vld [vmem:[#allocation3 + $0x90] sm:$0xff]
      %v926 = vld [vmem:[#allocation3 + $0x98] sm:$0xff]
      %v927 = vld [vmem:[#allocation3 + $0xa0] sm:$0xff]
      %v928 = vld [vmem:[#allocation3 + $0xa8] sm:$0xff]
      %v929 = vld [vmem:[#allocation3 + $0xb0] sm:$0xff]
      %v930 = vld [vmem:[#allocation3 + $0xb8] sm:$0xff]
      %v931 = vld [vmem:[#allocation3 + $0xc0] sm:$0xff]
      %v932 = vld [vmem:[#allocation3 + $0xc8] sm:$0xff]
      %v933 = vld [vmem:[#allocation3 + $0xd0] sm:$0xff]
      %v934 = vld [vmem:[#allocation3 + $0xd8] sm:$0xff]
      %v935 = vld [vmem:[#allocation3 + $0xe0] sm:$0xff]
      %v936 = vld [vmem:[#allocation3 + $0xe8] sm:$0xff]
      %v937 = vld [vmem:[#allocation3 + $0xf0] sm:$0xff]
      %v938 = vld [vmem:[#allocation3 + $0xf8] sm:$0xff]
      %s939 = scalar_lea.vmem [#allocation3], 16
      %v940 = vld [vmem:[%s939] sm:$0xff]
      %v941 = vld [vmem:[%s939 + $0x8] sm:$0xff]
      %v942 = vld [vmem:[%s939 + $0x10] sm:$0xff]
      %v943 = vld [vmem:[%s939 + $0x18] sm:$0xff]
      %v944 = vld [vmem:[%s939 + $0x20] sm:$0xff]
      %v945 = vld [vmem:[%s939 + $0x28] sm:$0xff]
      %v946 = vld [vmem:[%s939 + $0x30] sm:$0xff]
      %v947 = vld [vmem:[%s939 + $0x38] sm:$0xff]
      %v948 = vld [vmem:[%s939 + $0x40] sm:$0xff]
      %v949 = vld [vmem:[%s939 + $0x48] sm:$0xff]
      %v950 = vld [vmem:[%s939 + $0x50] sm:$0xff]
      %v951 = vld [vmem:[%s939 + $0x58] sm:$0xff]
      %v952 = vld [vmem:[%s939 + $0x60] sm:$0xff]
      %v953 = vld [vmem:[%s939 + $0x68] sm:$0xff]
      %v954 = vld [vmem:[%s939 + $0x70] sm:$0xff]
      %v955 = vld [vmem:[%s939 + $0x78] sm:$0xff]
      %v956 = vld [vmem:[%s939 + $0x80] sm:$0xff]
      %v957 = vld [vmem:[%s939 + $0x88] sm:$0xff]
      %v958 = vld [vmem:[%s939 + $0x90] sm:$0xff]
      %v959 = vld [vmem:[%s939 + $0x98] sm:$0xff]
      %v960 = vld [vmem:[%s939 + $0xa0] sm:$0xff]
      %v961 = vld [vmem:[%s939 + $0xa8] sm:$0xff]
      %v962 = vld [vmem:[%s939 + $0xb0] sm:$0xff]
      %v963 = vld [vmem:[%s939 + $0xb8] sm:$0xff]
      %v964 = vld [vmem:[%s939 + $0xc0] sm:$0xff]
      %v965 = vld [vmem:[%s939 + $0xc8] sm:$0xff]
      %v966 = vld [vmem:[%s939 + $0xd0] sm:$0xff]
      %v967 = vld [vmem:[%s939 + $0xd8] sm:$0xff]
      %v968 = vld [vmem:[%s939 + $0xe0] sm:$0xff]
      %v969 = vld [vmem:[%s939 + $0xe8] sm:$0xff]
      %v970 = vld [vmem:[%s939 + $0xf0] sm:$0xff]
      %v971 = vld [vmem:[%s939 + $0xf8] sm:$0xff]
      %v972 = vmax.f32 %v907, %v940
      %v973 = vmax.f32 %v908, %v941
      %v974 = vmax.f32 %v909, %v942
      %v975 = vmax.f32 %v910, %v943
      %v976 = vmax.f32 %v911, %v944
      %v977 = vmax.f32 %v912, %v945
      %v978 = vmax.f32 %v913, %v946
      %v979 = vmax.f32 %v914, %v947
      %v980 = vmax.f32 %v915, %v948
      %v981 = vmax.f32 %v916, %v949
      %v982 = vmax.f32 %v917, %v950
      %v983 = vmax.f32 %v918, %v951
      %v984 = vmax.f32 %v919, %v952
      %v985 = vmax.f32 %v920, %v953
      %v986 = vmax.f32 %v921, %v954
      %v987 = vmax.f32 %v922, %v955
      %v988 = vmax.f32 %v923, %v956
      %v989 = vmax.f32 %v924, %v957
      %v990 = vmax.f32 %v925, %v958
      %v991 = vmax.f32 %v926, %v959
      %v992 = vmax.f32 %v927, %v960
      %v993 = vmax.f32 %v928, %v961
      %v994 = vmax.f32 %v929, %v962
      %v995 = vmax.f32 %v930, %v963
      %v996 = vmax.f32 %v931, %v964
      %v997 = vmax.f32 %v932, %v965
      %v998 = vmax.f32 %v933, %v966
      %v999 = vmax.f32 %v934, %v967
      %v1000 = vmax.f32 %v935, %v968
      %v1001 = vmax.f32 %v936, %v969
      %v1002 = vmax.f32 %v937, %v970
      %v1003 = vmax.f32 %v938, %v971
      %v1004 = vld [vmem:[%s874] sm:$0xff]
      %v1005 = vld [vmem:[%s874 + $0x8] sm:$0xff]
      %v1006 = vld [vmem:[%s874 + $0x10] sm:$0xff]
      %v1007 = vld [vmem:[%s874 + $0x18] sm:$0xff]
      %v1008 = vld [vmem:[%s874 + $0x20] sm:$0xff]
      %v1009 = vld [vmem:[%s874 + $0x28] sm:$0xff]
      %v1010 = vld [vmem:[%s874 + $0x30] sm:$0xff]
      %v1011 = vld [vmem:[%s874 + $0x38] sm:$0xff]
      %v1012 = vld [vmem:[%s874 + $0x40] sm:$0xff]
      %v1013 = vld [vmem:[%s874 + $0x48] sm:$0xff]
      %v1014 = vld [vmem:[%s874 + $0x50] sm:$0xff]
      %v1015 = vld [vmem:[%s874 + $0x58] sm:$0xff]
      %v1016 = vld [vmem:[%s874 + $0x60] sm:$0xff]
      %v1017 = vld [vmem:[%s874 + $0x68] sm:$0xff]
      %v1018 = vld [vmem:[%s874 + $0x70] sm:$0xff]
      %v1019 = vld [vmem:[%s874 + $0x78] sm:$0xff]
      %v1020 = vld [vmem:[%s874 + $0x80] sm:$0xff]
      %v1021 = vld [vmem:[%s874 + $0x88] sm:$0xff]
      %v1022 = vld [vmem:[%s874 + $0x90] sm:$0xff]
      %v1023 = vld [vmem:[%s874 + $0x98] sm:$0xff]
      %v1024 = vld [vmem:[%s874 + $0xa0] sm:$0xff]
      %v1025 = vld [vmem:[%s874 + $0xa8] sm:$0xff]
      %v1026 = vld [vmem:[%s874 + $0xb0] sm:$0xff]
      %v1027 = vld [vmem:[%s874 + $0xb8] sm:$0xff]
      %v1028 = vld [vmem:[%s874 + $0xc0] sm:$0xff]
      %v1029 = vld [vmem:[%s874 + $0xc8] sm:$0xff]
      %v1030 = vld [vmem:[%s874 + $0xd0] sm:$0xff]
      %v1031 = vld [vmem:[%s874 + $0xd8] sm:$0xff]
      %v1032 = vld [vmem:[%s874 + $0xe0] sm:$0xff]
      %v1033 = vld [vmem:[%s874 + $0xe8] sm:$0xff]
      %v1034 = vld [vmem:[%s874 + $0xf0] sm:$0xff]
      %v1035 = vld [vmem:[%s874 + $0xf8] sm:$0xff]
      %v1036 = vmax.f32 %v972, %v1004
      %v1037 = vmax.f32 %v973, %v1005
      %v1038 = vmax.f32 %v974, %v1006
      %v1039 = vmax.f32 %v975, %v1007
      %v1040 = vmax.f32 %v976, %v1008
      %v1041 = vmax.f32 %v977, %v1009
      %v1042 = vmax.f32 %v978, %v1010
      %v1043 = vmax.f32 %v979, %v1011
      %v1044 = vmax.f32 %v980, %v1012
      %v1045 = vmax.f32 %v981, %v1013
      %v1046 = vmax.f32 %v982, %v1014
      %v1047 = vmax.f32 %v983, %v1015
      %v1048 = vmax.f32 %v984, %v1016
      %v1049 = vmax.f32 %v985, %v1017
      %v1050 = vmax.f32 %v986, %v1018
      %v1051 = vmax.f32 %v987, %v1019
      %v1052 = vmax.f32 %v988, %v1020
      %v1053 = vmax.f32 %v989, %v1021
      %v1054 = vmax.f32 %v990, %v1022
      %v1055 = vmax.f32 %v991, %v1023
      %v1056 = vmax.f32 %v992, %v1024
      %v1057 = vmax.f32 %v993, %v1025
      %v1058 = vmax.f32 %v994, %v1026
      %v1059 = vmax.f32 %v995, %v1027
      %v1060 = vmax.f32 %v996, %v1028
      %v1061 = vmax.f32 %v997, %v1029
      %v1062 = vmax.f32 %v998, %v1030
      %v1063 = vmax.f32 %v999, %v1031
      %v1064 = vmax.f32 %v1000, %v1032
      %v1065 = vmax.f32 %v1001, %v1033
      %v1066 = vmax.f32 %v1002, %v1034
      %v1067 = vmax.f32 %v1003, %v1035
      %s1068 = scalar_lea.vmem [#allocation3], 48
      %v1069 = vld [vmem:[%s1068] sm:$0xff]
      %v1070 = vld [vmem:[%s1068 + $0x8] sm:$0xff]
      %v1071 = vld [vmem:[%s1068 + $0x10] sm:$0xff]
      %v1072 = vld [vmem:[%s1068 + $0x18] sm:$0xff]
      %v1073 = vld [vmem:[%s1068 + $0x20] sm:$0xff]
      %v1074 = vld [vmem:[%s1068 + $0x28] sm:$0xff]
      %v1075 = vld [vmem:[%s1068 + $0x30] sm:$0xff]
      %v1076 = vld [vmem:[%s1068 + $0x38] sm:$0xff]
      %v1077 = vld [vmem:[%s1068 + $0x40] sm:$0xff]
      %v1078 = vld [vmem:[%s1068 + $0x48] sm:$0xff]
      %v1079 = vld [vmem:[%s1068 + $0x50] sm:$0xff]
      %v1080 = vld [vmem:[%s1068 + $0x58] sm:$0xff]
      %v1081 = vld [vmem:[%s1068 + $0x60] sm:$0xff]
      %v1082 = vld [vmem:[%s1068 + $0x68] sm:$0xff]
      %v1083 = vld [vmem:[%s1068 + $0x70] sm:$0xff]
      %v1084 = vld [vmem:[%s1068 + $0x78] sm:$0xff]
      %v1085 = vld [vmem:[%s1068 + $0x80] sm:$0xff]
      %v1086 = vld [vmem:[%s1068 + $0x88] sm:$0xff]
      %v1087 = vld [vmem:[%s1068 + $0x90] sm:$0xff]
      %v1088 = vld [vmem:[%s1068 + $0x98] sm:$0xff]
      %v1089 = vld [vmem:[%s1068 + $0xa0] sm:$0xff]
      %v1090 = vld [vmem:[%s1068 + $0xa8] sm:$0xff]
      %v1091 = vld [vmem:[%s1068 + $0xb0] sm:$0xff]
      %v1092 = vld [vmem:[%s1068 + $0xb8] sm:$0xff]
      %v1093 = vld [vmem:[%s1068 + $0xc0] sm:$0xff]
      %v1094 = vld [vmem:[%s1068 + $0xc8] sm:$0xff]
      %v1095 = vld [vmem:[%s1068 + $0xd0] sm:$0xff]
      %v1096 = vld [vmem:[%s1068 + $0xd8] sm:$0xff]
      %v1097 = vld [vmem:[%s1068 + $0xe0] sm:$0xff]
      %v1098 = vld [vmem:[%s1068 + $0xe8] sm:$0xff]
      %v1099 = vld [vmem:[%s1068 + $0xf0] sm:$0xff]
      %v1100 = vld [vmem:[%s1068 + $0xf8] sm:$0xff]
      %v1101 = vmax.f32 %v1036, %v1069
      %v1102 = vmax.f32 %v1037, %v1070
      %v1103 = vmax.f32 %v1038, %v1071
      %v1104 = vmax.f32 %v1039, %v1072
      %v1105 = vmax.f32 %v1040, %v1073
      %v1106 = vmax.f32 %v1041, %v1074
      %v1107 = vmax.f32 %v1042, %v1075
      %v1108 = vmax.f32 %v1043, %v1076
      %v1109 = vmax.f32 %v1044, %v1077
      %v1110 = vmax.f32 %v1045, %v1078
      %v1111 = vmax.f32 %v1046, %v1079
      %v1112 = vmax.f32 %v1047, %v1080
      %v1113 = vmax.f32 %v1048, %v1081
      %v1114 = vmax.f32 %v1049, %v1082
      %v1115 = vmax.f32 %v1050, %v1083
      %v1116 = vmax.f32 %v1051, %v1084
      %v1117 = vmax.f32 %v1052, %v1085
      %v1118 = vmax.f32 %v1053, %v1086
      %v1119 = vmax.f32 %v1054, %v1087
      %v1120 = vmax.f32 %v1055, %v1088
      %v1121 = vmax.f32 %v1056, %v1089
      %v1122 = vmax.f32 %v1057, %v1090
      %v1123 = vmax.f32 %v1058, %v1091
      %v1124 = vmax.f32 %v1059, %v1092
      %v1125 = vmax.f32 %v1060, %v1093
      %v1126 = vmax.f32 %v1061, %v1094
      %v1127 = vmax.f32 %v1062, %v1095
      %v1128 = vmax.f32 %v1063, %v1096
      %v1129 = vmax.f32 %v1064, %v1097
      %v1130 = vmax.f32 %v1065, %v1098
      %v1131 = vmax.f32 %v1066, %v1099
      %v1132 = vmax.f32 %v1067, %v1100
      %s1133 = scalar_lea.vmem [#allocation3], 64
      %v1134 = vld [vmem:[%s1133] sm:$0xff]
      %v1135 = vld [vmem:[%s1133 + $0x8] sm:$0xff]
      %v1136 = vld [vmem:[%s1133 + $0x10] sm:$0xff]
      %v1137 = vld [vmem:[%s1133 + $0x18] sm:$0xff]
      %v1138 = vld [vmem:[%s1133 + $0x20] sm:$0xff]
      %v1139 = vld [vmem:[%s1133 + $0x28] sm:$0xff]
      %v1140 = vld [vmem:[%s1133 + $0x30] sm:$0xff]
      %v1141 = vld [vmem:[%s1133 + $0x38] sm:$0xff]
      %v1142 = vld [vmem:[%s1133 + $0x40] sm:$0xff]
      %v1143 = vld [vmem:[%s1133 + $0x48] sm:$0xff]
      %v1144 = vld [vmem:[%s1133 + $0x50] sm:$0xff]
      %v1145 = vld [vmem:[%s1133 + $0x58] sm:$0xff]
      %v1146 = vld [vmem:[%s1133 + $0x60] sm:$0xff]
      %v1147 = vld [vmem:[%s1133 + $0x68] sm:$0xff]
      %v1148 = vld [vmem:[%s1133 + $0x70] sm:$0xff]
      %v1149 = vld [vmem:[%s1133 + $0x78] sm:$0xff]
      %v1150 = vld [vmem:[%s1133 + $0x80] sm:$0xff]
      %v1151 = vld [vmem:[%s1133 + $0x88] sm:$0xff]
      %v1152 = vld [vmem:[%s1133 + $0x90] sm:$0xff]
      %v1153 = vld [vmem:[%s1133 + $0x98] sm:$0xff]
      %v1154 = vld [vmem:[%s1133 + $0xa0] sm:$0xff]
      %v1155 = vld [vmem:[%s1133 + $0xa8] sm:$0xff]
      %v1156 = vld [vmem:[%s1133 + $0xb0] sm:$0xff]
      %v1157 = vld [vmem:[%s1133 + $0xb8] sm:$0xff]
      %v1158 = vld [vmem:[%s1133 + $0xc0] sm:$0xff]
      %v1159 = vld [vmem:[%s1133 + $0xc8] sm:$0xff]
      %v1160 = vld [vmem:[%s1133 + $0xd0] sm:$0xff]
      %v1161 = vld [vmem:[%s1133 + $0xd8] sm:$0xff]
      %v1162 = vld [vmem:[%s1133 + $0xe0] sm:$0xff]
      %v1163 = vld [vmem:[%s1133 + $0xe8] sm:$0xff]
      %v1164 = vld [vmem:[%s1133 + $0xf0] sm:$0xff]
      %v1165 = vld [vmem:[%s1133 + $0xf8] sm:$0xff]
      %v1166 = vmax.f32 %v1101, %v1134
      %v1167 = vmax.f32 %v1102, %v1135
      %v1168 = vmax.f32 %v1103, %v1136
      %v1169 = vmax.f32 %v1104, %v1137
      %v1170 = vmax.f32 %v1105, %v1138
      %v1171 = vmax.f32 %v1106, %v1139
      %v1172 = vmax.f32 %v1107, %v1140
      %v1173 = vmax.f32 %v1108, %v1141
      %v1174 = vmax.f32 %v1109, %v1142
      %v1175 = vmax.f32 %v1110, %v1143
      %v1176 = vmax.f32 %v1111, %v1144
      %v1177 = vmax.f32 %v1112, %v1145
      %v1178 = vmax.f32 %v1113, %v1146
      %v1179 = vmax.f32 %v1114, %v1147
      %v1180 = vmax.f32 %v1115, %v1148
      %v1181 = vmax.f32 %v1116, %v1149
      %v1182 = vmax.f32 %v1117, %v1150
      %v1183 = vmax.f32 %v1118, %v1151
      %v1184 = vmax.f32 %v1119, %v1152
      %v1185 = vmax.f32 %v1120, %v1153
      %v1186 = vmax.f32 %v1121, %v1154
      %v1187 = vmax.f32 %v1122, %v1155
      %v1188 = vmax.f32 %v1123, %v1156
      %v1189 = vmax.f32 %v1124, %v1157
      %v1190 = vmax.f32 %v1125, %v1158
      %v1191 = vmax.f32 %v1126, %v1159
      %v1192 = vmax.f32 %v1127, %v1160
      %v1193 = vmax.f32 %v1128, %v1161
      %v1194 = vmax.f32 %v1129, %v1162
      %v1195 = vmax.f32 %v1130, %v1163
      %v1196 = vmax.f32 %v1131, %v1164
      %v1197 = vmax.f32 %v1132, %v1165
      %v1198 = vrot.slane %v1166, 7
      %v1199 = vrot.slane %v1168, 7
      %v1200 = vrot.slane %v1170, 7
      %v1201 = vrot.slane %v1172, 7
      %v1202 = vrot.slane %v1174, 7
      %v1203 = vrot.slane %v1176, 7
      %v1204 = vrot.slane %v1178, 7
      %v1205 = vrot.slane %v1180, 7
      %v1206 = vrot.slane %v1182, 7
      %v1207 = vrot.slane %v1184, 7
      %v1208 = vrot.slane %v1186, 7
      %v1209 = vrot.slane %v1188, 7
      %v1210 = vrot.slane %v1190, 7
      %v1211 = vrot.slane %v1192, 7
      %v1212 = vrot.slane %v1194, 7
      %v1213 = vrot.slane %v1196, 7
      %v1214 = vrot.slane %v1167, 7
      %v1215 = vrot.slane %v1169, 7
      %v1216 = vrot.slane %v1171, 7
      %v1217 = vrot.slane %v1173, 7
      %v1218 = vrot.slane %v1175, 7
      %v1219 = vrot.slane %v1177, 7
      %v1220 = vrot.slane %v1179, 7
      %v1221 = vrot.slane %v1181, 7
      %v1222 = vrot.slane %v1183, 7
      %v1223 = vrot.slane %v1185, 7
      %v1224 = vrot.slane %v1187, 7
      %v1225 = vrot.slane %v1189, 7
      %v1226 = vrot.slane %v1191, 7
      %v1227 = vrot.slane %v1193, 7
      %v1228 = vrot.slane %v1195, 7
      %v1229 = vrot.slane %v1197, 7
      %v1230 = vsel %vm390, %v1198, %v1214
      %v1231 = vsel %vm390, %v1199, %v1215
      %v1232 = vsel %vm390, %v1200, %v1216
      %v1233 = vsel %vm390, %v1201, %v1217
      %v1234 = vsel %vm390, %v1202, %v1218
      %v1235 = vsel %vm390, %v1203, %v1219
      %v1236 = vsel %vm390, %v1204, %v1220
      %v1237 = vsel %vm390, %v1205, %v1221
      %v1238 = vsel %vm390, %v1206, %v1222
      %v1239 = vsel %vm390, %v1207, %v1223
      %v1240 = vsel %vm390, %v1208, %v1224
      %v1241 = vsel %vm390, %v1209, %v1225
      %v1242 = vsel %vm390, %v1210, %v1226
      %v1243 = vsel %vm390, %v1211, %v1227
      %v1244 = vsel %vm390, %v1212, %v1228
      %v1245 = vsel %vm390, %v1213, %v1229
      %v1246 = vsel %vm390, %v1214, %v1198
      %v1247 = vsel %vm390, %v1215, %v1199
      %v1248 = vsel %vm390, %v1216, %v1200
      %v1249 = vsel %vm390, %v1217, %v1201
      %v1250 = vsel %vm390, %v1218, %v1202
      %v1251 = vsel %vm390, %v1219, %v1203
      %v1252 = vsel %vm390, %v1220, %v1204
      %v1253 = vsel %vm390, %v1221, %v1205
      %v1254 = vsel %vm390, %v1222, %v1206
      %v1255 = vsel %vm390, %v1223, %v1207
      %v1256 = vsel %vm390, %v1224, %v1208
      %v1257 = vsel %vm390, %v1225, %v1209
      %v1258 = vsel %vm390, %v1226, %v1210
      %v1259 = vsel %vm390, %v1227, %v1211
      %v1260 = vsel %vm390, %v1228, %v1212
      %v1261 = vsel %vm390, %v1229, %v1213
      %v1262 = vsel %vm318, %v1246, -inf
      %v1263 = vsel %vm319, %v1230, -inf
      %v1264 = vsel %vm318, %v1247, -inf
      %v1265 = vsel %vm319, %v1231, -inf
      %v1266 = vsel %vm318, %v1248, -inf
      %v1267 = vsel %vm319, %v1232, -inf
      %v1268 = vsel %vm318, %v1249, -inf
      %v1269 = vsel %vm319, %v1233, -inf
      %v1270 = vsel %vm318, %v1250, -inf
      %v1271 = vsel %vm319, %v1234, -inf
      %v1272 = vsel %vm318, %v1251, -inf
      %v1273 = vsel %vm319, %v1235, -inf
      %v1274 = vsel %vm318, %v1252, -inf
      %v1275 = vsel %vm319, %v1236, -inf
      %v1276 = vsel %vm318, %v1253, -inf
      %v1277 = vsel %vm319, %v1237, -inf
      %v1278 = vsel %vm318, %v1254, -inf
      %v1279 = vsel %vm319, %v1238, -inf
      %v1280 = vsel %vm318, %v1255, -inf
      %v1281 = vsel %vm319, %v1239, -inf
      %v1282 = vsel %vm318, %v1256, -inf
      %v1283 = vsel %vm319, %v1240, -inf
      %v1284 = vsel %vm318, %v1257, -inf
      %v1285 = vsel %vm319, %v1241, -inf
      %v1286 = vsel %vm318, %v1258, -inf
      %v1287 = vsel %vm319, %v1242, -inf
      %v1288 = vsel %vm318, %v1259, -inf
      %v1289 = vsel %vm319, %v1243, -inf
      %v1290 = vsel %vm318, %v1260, -inf
      %v1291 = vsel %vm319, %v1244, -inf
      %v1292 = vsel %vm318, %v1261, -inf
      %v1293 = vsel %vm319, %v1245, -inf
      %v1294 = vmax.f32 %v1166, %v1262
      %v1295 = vmax.f32 %v1167, %v1263
      %v1296 = vmax.f32 %v1168, %v1264
      %v1297 = vmax.f32 %v1169, %v1265
      %v1298 = vmax.f32 %v1170, %v1266
      %v1299 = vmax.f32 %v1171, %v1267
      %v1300 = vmax.f32 %v1172, %v1268
      %v1301 = vmax.f32 %v1173, %v1269
      %v1302 = vmax.f32 %v1174, %v1270
      %v1303 = vmax.f32 %v1175, %v1271
      %v1304 = vmax.f32 %v1176, %v1272
      %v1305 = vmax.f32 %v1177, %v1273
      %v1306 = vmax.f32 %v1178, %v1274
      %v1307 = vmax.f32 %v1179, %v1275
      %v1308 = vmax.f32 %v1180, %v1276
      %v1309 = vmax.f32 %v1181, %v1277
      %v1310 = vmax.f32 %v1182, %v1278
      %v1311 = vmax.f32 %v1183, %v1279
      %v1312 = vmax.f32 %v1184, %v1280
      %v1313 = vmax.f32 %v1185, %v1281
      %v1314 = vmax.f32 %v1186, %v1282
      %v1315 = vmax.f32 %v1187, %v1283
      %v1316 = vmax.f32 %v1188, %v1284
      %v1317 = vmax.f32 %v1189, %v1285
      %v1318 = vmax.f32 %v1190, %v1286
      %v1319 = vmax.f32 %v1191, %v1287
      %v1320 = vmax.f32 %v1192, %v1288
      %v1321 = vmax.f32 %v1193, %v1289
      %v1322 = vmax.f32 %v1194, %v1290
      %v1323 = vmax.f32 %v1195, %v1291
      %v1324 = vmax.f32 %v1196, %v1292
      %v1325 = vmax.f32 %v1197, %v1293
      %v1326 = vrot.slane %v1166, 6
      %v1327 = vrot.slane %v1168, 6
      %v1328 = vrot.slane %v1170, 6
      %v1329 = vrot.slane %v1172, 6
      %v1330 = vrot.slane %v1174, 6
      %v1331 = vrot.slane %v1176, 6
      %v1332 = vrot.slane %v1178, 6
      %v1333 = vrot.slane %v1180, 6
      %v1334 = vrot.slane %v1182, 6
      %v1335 = vrot.slane %v1184, 6
      %v1336 = vrot.slane %v1186, 6
      %v1337 = vrot.slane %v1188, 6
      %v1338 = vrot.slane %v1190, 6
      %v1339 = vrot.slane %v1192, 6
      %v1340 = vrot.slane %v1194, 6
      %v1341 = vrot.slane %v1196, 6
      %v1342 = vrot.slane %v1167, 6
      %v1343 = vrot.slane %v1169, 6
      %v1344 = vrot.slane %v1171, 6
      %v1345 = vrot.slane %v1173, 6
      %v1346 = vrot.slane %v1175, 6
      %v1347 = vrot.slane %v1177, 6
      %v1348 = vrot.slane %v1179, 6
      %v1349 = vrot.slane %v1181, 6
      %v1350 = vrot.slane %v1183, 6
      %v1351 = vrot.slane %v1185, 6
      %v1352 = vrot.slane %v1187, 6
      %v1353 = vrot.slane %v1189, 6
      %v1354 = vrot.slane %v1191, 6
      %v1355 = vrot.slane %v1193, 6
      %v1356 = vrot.slane %v1195, 6
      %v1357 = vrot.slane %v1197, 6
      %v1358 = vsel %vm519, %v1326, %v1342
      %v1359 = vsel %vm519, %v1327, %v1343
      %v1360 = vsel %vm519, %v1328, %v1344
      %v1361 = vsel %vm519, %v1329, %v1345
      %v1362 = vsel %vm519, %v1330, %v1346
      %v1363 = vsel %vm519, %v1331, %v1347
      %v1364 = vsel %vm519, %v1332, %v1348
      %v1365 = vsel %vm519, %v1333, %v1349
      %v1366 = vsel %vm519, %v1334, %v1350
      %v1367 = vsel %vm519, %v1335, %v1351
      %v1368 = vsel %vm519, %v1336, %v1352
      %v1369 = vsel %vm519, %v1337, %v1353
      %v1370 = vsel %vm519, %v1338, %v1354
      %v1371 = vsel %vm519, %v1339, %v1355
      %v1372 = vsel %vm519, %v1340, %v1356
      %v1373 = vsel %vm519, %v1341, %v1357
      %v1374 = vsel %vm519, %v1342, %v1326
      %v1375 = vsel %vm519, %v1343, %v1327
      %v1376 = vsel %vm519, %v1344, %v1328
      %v1377 = vsel %vm519, %v1345, %v1329
      %v1378 = vsel %vm519, %v1346, %v1330
      %v1379 = vsel %vm519, %v1347, %v1331
      %v1380 = vsel %vm519, %v1348, %v1332
      %v1381 = vsel %vm519, %v1349, %v1333
      %v1382 = vsel %vm519, %v1350, %v1334
      %v1383 = vsel %vm519, %v1351, %v1335
      %v1384 = vsel %vm519, %v1352, %v1336
      %v1385 = vsel %vm519, %v1353, %v1337
      %v1386 = vsel %vm519, %v1354, %v1338
      %v1387 = vsel %vm519, %v1355, %v1339
      %v1388 = vsel %vm519, %v1356, %v1340
      %v1389 = vsel %vm519, %v1357, %v1341
      %v1390 = vsel %vm320, %v1374, -inf
      %v1391 = vsel %vm321, %v1358, -inf
      %v1392 = vsel %vm320, %v1375, -inf
      %v1393 = vsel %vm321, %v1359, -inf
      %v1394 = vsel %vm320, %v1376, -inf
      %v1395 = vsel %vm321, %v1360, -inf
      %v1396 = vsel %vm320, %v1377, -inf
      %v1397 = vsel %vm321, %v1361, -inf
      %v1398 = vsel %vm320, %v1378, -inf
      %v1399 = vsel %vm321, %v1362, -inf
      %v1400 = vsel %vm320, %v1379, -inf
      %v1401 = vsel %vm321, %v1363, -inf
      %v1402 = vsel %vm320, %v1380, -inf
      %v1403 = vsel %vm321, %v1364, -inf
      %v1404 = vsel %vm320, %v1381, -inf
      %v1405 = vsel %vm321, %v1365, -inf
      %v1406 = vsel %vm320, %v1382, -inf
      %v1407 = vsel %vm321, %v1366, -inf
      %v1408 = vsel %vm320, %v1383, -inf
      %v1409 = vsel %vm321, %v1367, -inf
      %v1410 = vsel %vm320, %v1384, -inf
      %v1411 = vsel %vm321, %v1368, -inf
      %v1412 = vsel %vm320, %v1385, -inf
      %v1413 = vsel %vm321, %v1369, -inf
      %v1414 = vsel %vm320, %v1386, -inf
      %v1415 = vsel %vm321, %v1370, -inf
      %v1416 = vsel %vm320, %v1387, -inf
      %v1417 = vsel %vm321, %v1371, -inf
      %v1418 = vsel %vm320, %v1388, -inf
      %v1419 = vsel %vm321, %v1372, -inf
      %v1420 = vsel %vm320, %v1389, -inf
      %v1421 = vsel %vm321, %v1373, -inf
      %v1422 = vmax.f32 %v1294, %v1390
      %v1423 = vmax.f32 %v1295, %v1391
      %v1424 = vmax.f32 %v1296, %v1392
      %v1425 = vmax.f32 %v1297, %v1393
      %v1426 = vmax.f32 %v1298, %v1394
      %v1427 = vmax.f32 %v1299, %v1395
      %v1428 = vmax.f32 %v1300, %v1396
      %v1429 = vmax.f32 %v1301, %v1397
      %v1430 = vmax.f32 %v1302, %v1398
      %v1431 = vmax.f32 %v1303, %v1399
      %v1432 = vmax.f32 %v1304, %v1400
      %v1433 = vmax.f32 %v1305, %v1401
      %v1434 = vmax.f32 %v1306, %v1402
      %v1435 = vmax.f32 %v1307, %v1403
      %v1436 = vmax.f32 %v1308, %v1404
      %v1437 = vmax.f32 %v1309, %v1405
      %v1438 = vmax.f32 %v1310, %v1406
      %v1439 = vmax.f32 %v1311, %v1407
      %v1440 = vmax.f32 %v1312, %v1408
      %v1441 = vmax.f32 %v1313, %v1409
      %v1442 = vmax.f32 %v1314, %v1410
      %v1443 = vmax.f32 %v1315, %v1411
      %v1444 = vmax.f32 %v1316, %v1412
      %v1445 = vmax.f32 %v1317, %v1413
      %v1446 = vmax.f32 %v1318, %v1414
      %v1447 = vmax.f32 %v1319, %v1415
      %v1448 = vmax.f32 %v1320, %v1416
      %v1449 = vmax.f32 %v1321, %v1417
      %v1450 = vmax.f32 %v1322, %v1418
      %v1451 = vmax.f32 %v1323, %v1419
      %v1452 = vmax.f32 %v1324, %v1420
      %v1453 = vmax.f32 %v1325, %v1421
      %v1454 = vrot.slane %v1166, 2
      %v1455 = vrot.slane %v1168, 2
      %v1456 = vrot.slane %v1170, 2
      %v1457 = vrot.slane %v1172, 2
      %v1458 = vrot.slane %v1174, 2
      %v1459 = vrot.slane %v1176, 2
      %v1460 = vrot.slane %v1178, 2
      %v1461 = vrot.slane %v1180, 2
      %v1462 = vrot.slane %v1182, 2
      %v1463 = vrot.slane %v1184, 2
      %v1464 = vrot.slane %v1186, 2
      %v1465 = vrot.slane %v1188, 2
      %v1466 = vrot.slane %v1190, 2
      %v1467 = vrot.slane %v1192, 2
      %v1468 = vrot.slane %v1194, 2
      %v1469 = vrot.slane %v1196, 2
      %v1470 = vrot.slane %v1167, 2
      %v1471 = vrot.slane %v1169, 2
      %v1472 = vrot.slane %v1171, 2
      %v1473 = vrot.slane %v1173, 2
      %v1474 = vrot.slane %v1175, 2
      %v1475 = vrot.slane %v1177, 2
      %v1476 = vrot.slane %v1179, 2
      %v1477 = vrot.slane %v1181, 2
      %v1478 = vrot.slane %v1183, 2
      %v1479 = vrot.slane %v1185, 2
      %v1480 = vrot.slane %v1187, 2
      %v1481 = vrot.slane %v1189, 2
      %v1482 = vrot.slane %v1191, 2
      %v1483 = vrot.slane %v1193, 2
      %v1484 = vrot.slane %v1195, 2
      %v1485 = vrot.slane %v1197, 2
      %v1486 = vsel %vm648, %v1454, %v1470
      %v1487 = vsel %vm648, %v1455, %v1471
      %v1488 = vsel %vm648, %v1456, %v1472
      %v1489 = vsel %vm648, %v1457, %v1473
      %v1490 = vsel %vm648, %v1458, %v1474
      %v1491 = vsel %vm648, %v1459, %v1475
      %v1492 = vsel %vm648, %v1460, %v1476
      %v1493 = vsel %vm648, %v1461, %v1477
      %v1494 = vsel %vm648, %v1462, %v1478
      %v1495 = vsel %vm648, %v1463, %v1479
      %v1496 = vsel %vm648, %v1464, %v1480
      %v1497 = vsel %vm648, %v1465, %v1481
      %v1498 = vsel %vm648, %v1466, %v1482
      %v1499 = vsel %vm648, %v1467, %v1483
      %v1500 = vsel %vm648, %v1468, %v1484
      %v1501 = vsel %vm648, %v1469, %v1485
      %v1502 = vsel %vm648, %v1470, %v1454
      %v1503 = vsel %vm648, %v1471, %v1455
      %v1504 = vsel %vm648, %v1472, %v1456
      %v1505 = vsel %vm648, %v1473, %v1457
      %v1506 = vsel %vm648, %v1474, %v1458
      %v1507 = vsel %vm648, %v1475, %v1459
      %v1508 = vsel %vm648, %v1476, %v1460
      %v1509 = vsel %vm648, %v1477, %v1461
      %v1510 = vsel %vm648, %v1478, %v1462
      %v1511 = vsel %vm648, %v1479, %v1463
      %v1512 = vsel %vm648, %v1480, %v1464
      %v1513 = vsel %vm648, %v1481, %v1465
      %v1514 = vsel %vm648, %v1482, %v1466
      %v1515 = vsel %vm648, %v1483, %v1467
      %v1516 = vsel %vm648, %v1484, %v1468
      %v1517 = vsel %vm648, %v1485, %v1469
      %v1518 = vsel %vm322, %v1486, -inf
      %v1519 = vsel %vm323, %v1502, -inf
      %v1520 = vsel %vm322, %v1487, -inf
      %v1521 = vsel %vm323, %v1503, -inf
      %v1522 = vsel %vm322, %v1488, -inf
      %v1523 = vsel %vm323, %v1504, -inf
      %v1524 = vsel %vm322, %v1489, -inf
      %v1525 = vsel %vm323, %v1505, -inf
      %v1526 = vsel %vm322, %v1490, -inf
      %v1527 = vsel %vm323, %v1506, -inf
      %v1528 = vsel %vm322, %v1491, -inf
      %v1529 = vsel %vm323, %v1507, -inf
      %v1530 = vsel %vm322, %v1492, -inf
      %v1531 = vsel %vm323, %v1508, -inf
      %v1532 = vsel %vm322, %v1493, -inf
      %v1533 = vsel %vm323, %v1509, -inf
      %v1534 = vsel %vm322, %v1494, -inf
      %v1535 = vsel %vm323, %v1510, -inf
      %v1536 = vsel %vm322, %v1495, -inf
      %v1537 = vsel %vm323, %v1511, -inf
      %v1538 = vsel %vm322, %v1496, -inf
      %v1539 = vsel %vm323, %v1512, -inf
      %v1540 = vsel %vm322, %v1497, -inf
      %v1541 = vsel %vm323, %v1513, -inf
      %v1542 = vsel %vm322, %v1498, -inf
      %v1543 = vsel %vm323, %v1514, -inf
      %v1544 = vsel %vm322, %v1499, -inf
      %v1545 = vsel %vm323, %v1515, -inf
      %v1546 = vsel %vm322, %v1500, -inf
      %v1547 = vsel %vm323, %v1516, -inf
      %v1548 = vsel %vm322, %v1501, -inf
      %v1549 = vsel %vm323, %v1517, -inf
      %v1550 = vmax.f32 %v1422, %v1518
      %v1551 = vmax.f32 %v1423, %v1519
      %v1552 = vmax.f32 %v1424, %v1520
      %v1553 = vmax.f32 %v1425, %v1521
      %v1554 = vmax.f32 %v1426, %v1522
      %v1555 = vmax.f32 %v1427, %v1523
      %v1556 = vmax.f32 %v1428, %v1524
      %v1557 = vmax.f32 %v1429, %v1525
      %v1558 = vmax.f32 %v1430, %v1526
      %v1559 = vmax.f32 %v1431, %v1527
      %v1560 = vmax.f32 %v1432, %v1528
      %v1561 = vmax.f32 %v1433, %v1529
      %v1562 = vmax.f32 %v1434, %v1530
      %v1563 = vmax.f32 %v1435, %v1531
      %v1564 = vmax.f32 %v1436, %v1532
      %v1565 = vmax.f32 %v1437, %v1533
      %v1566 = vmax.f32 %v1438, %v1534
      %v1567 = vmax.f32 %v1439, %v1535
      %v1568 = vmax.f32 %v1440, %v1536
      %v1569 = vmax.f32 %v1441, %v1537
      %v1570 = vmax.f32 %v1442, %v1538
      %v1571 = vmax.f32 %v1443, %v1539
      %v1572 = vmax.f32 %v1444, %v1540
      %v1573 = vmax.f32 %v1445, %v1541
      %v1574 = vmax.f32 %v1446, %v1542
      %v1575 = vmax.f32 %v1447, %v1543
      %v1576 = vmax.f32 %v1448, %v1544
      %v1577 = vmax.f32 %v1449, %v1545
      %v1578 = vmax.f32 %v1450, %v1546
      %v1579 = vmax.f32 %v1451, %v1547
      %v1580 = vmax.f32 %v1452, %v1548
      %v1581 = vmax.f32 %v1453, %v1549
      %v1582 = vrot.slane %v1166, 1
      %v1583 = vrot.slane %v1168, 1
      %v1584 = vrot.slane %v1170, 1
      %v1585 = vrot.slane %v1172, 1
      %v1586 = vrot.slane %v1174, 1
      %v1587 = vrot.slane %v1176, 1
      %v1588 = vrot.slane %v1178, 1
      %v1589 = vrot.slane %v1180, 1
      %v1590 = vrot.slane %v1182, 1
      %v1591 = vrot.slane %v1184, 1
      %v1592 = vrot.slane %v1186, 1
      %v1593 = vrot.slane %v1188, 1
      %v1594 = vrot.slane %v1190, 1
      %v1595 = vrot.slane %v1192, 1
      %v1596 = vrot.slane %v1194, 1
      %v1597 = vrot.slane %v1196, 1
      %v1598 = vrot.slane %v1167, 1
      %v1599 = vrot.slane %v1169, 1
      %v1600 = vrot.slane %v1171, 1
      %v1601 = vrot.slane %v1173, 1
      %v1602 = vrot.slane %v1175, 1
      %v1603 = vrot.slane %v1177, 1
      %v1604 = vrot.slane %v1179, 1
      %v1605 = vrot.slane %v1181, 1
      %v1606 = vrot.slane %v1183, 1
      %v1607 = vrot.slane %v1185, 1
      %v1608 = vrot.slane %v1187, 1
      %v1609 = vrot.slane %v1189, 1
      %v1610 = vrot.slane %v1191, 1
      %v1611 = vrot.slane %v1193, 1
      %v1612 = vrot.slane %v1195, 1
      %v1613 = vrot.slane %v1197, 1
      %v1614 = vsel %vm777, %v1582, %v1598
      %v1615 = vsel %vm777, %v1583, %v1599
      %v1616 = vsel %vm777, %v1584, %v1600
      %v1617 = vsel %vm777, %v1585, %v1601
      %v1618 = vsel %vm777, %v1586, %v1602
      %v1619 = vsel %vm777, %v1587, %v1603
      %v1620 = vsel %vm777, %v1588, %v1604
      %v1621 = vsel %vm777, %v1589, %v1605
      %v1622 = vsel %vm777, %v1590, %v1606
      %v1623 = vsel %vm777, %v1591, %v1607
      %v1624 = vsel %vm777, %v1592, %v1608
      %v1625 = vsel %vm777, %v1593, %v1609
      %v1626 = vsel %vm777, %v1594, %v1610
      %v1627 = vsel %vm777, %v1595, %v1611
      %v1628 = vsel %vm777, %v1596, %v1612
      %v1629 = vsel %vm777, %v1597, %v1613
      %v1630 = vsel %vm777, %v1598, %v1582
      %v1631 = vsel %vm777, %v1599, %v1583
      %v1632 = vsel %vm777, %v1600, %v1584
      %v1633 = vsel %vm777, %v1601, %v1585
      %v1634 = vsel %vm777, %v1602, %v1586
      %v1635 = vsel %vm777, %v1603, %v1587
      %v1636 = vsel %vm777, %v1604, %v1588
      %v1637 = vsel %vm777, %v1605, %v1589
      %v1638 = vsel %vm777, %v1606, %v1590
      %v1639 = vsel %vm777, %v1607, %v1591
      %v1640 = vsel %vm777, %v1608, %v1592
      %v1641 = vsel %vm777, %v1609, %v1593
      %v1642 = vsel %vm777, %v1610, %v1594
      %v1643 = vsel %vm777, %v1611, %v1595
      %v1644 = vsel %vm777, %v1612, %v1596
      %v1645 = vsel %vm777, %v1613, %v1597
      %v1646 = vsel %vm324, %v1614, -inf
      %v1647 = vsel %vm325, %v1630, -inf
      %v1648 = vsel %vm324, %v1615, -inf
      %v1649 = vsel %vm325, %v1631, -inf
      %v1650 = vsel %vm324, %v1616, -inf
      %v1651 = vsel %vm325, %v1632, -inf
      %v1652 = vsel %vm324, %v1617, -inf
      %v1653 = vsel %vm325, %v1633, -inf
      %v1654 = vsel %vm324, %v1618, -inf
      %v1655 = vsel %vm325, %v1634, -inf
      %v1656 = vsel %vm324, %v1619, -inf
      %v1657 = vsel %vm325, %v1635, -inf
      %v1658 = vsel %vm324, %v1620, -inf
      %v1659 = vsel %vm325, %v1636, -inf
      %v1660 = vsel %vm324, %v1621, -inf
      %v1661 = vsel %vm325, %v1637, -inf
      %v1662 = vsel %vm324, %v1622, -inf
      %v1663 = vsel %vm325, %v1638, -inf
      %v1664 = vsel %vm324, %v1623, -inf
      %v1665 = vsel %vm325, %v1639, -inf
      %v1666 = vsel %vm324, %v1624, -inf
      %v1667 = vsel %vm325, %v1640, -inf
      %v1668 = vsel %vm324, %v1625, -inf
      %v1669 = vsel %vm325, %v1641, -inf
      %v1670 = vsel %vm324, %v1626, -inf
      %v1671 = vsel %vm325, %v1642, -inf
      %v1672 = vsel %vm324, %v1627, -inf
      %v1673 = vsel %vm325, %v1643, -inf
      %v1674 = vsel %vm324, %v1628, -inf
      %v1675 = vsel %vm325, %v1644, -inf
      %v1676 = vsel %vm324, %v1629, -inf
      %v1677 = vsel %vm325, %v1645, -inf
      %v1678 = vmax.f32 %v1550, %v1646
      %v1679 = vmax.f32 %v1551, %v1647
      %v1680 = vmax.f32 %v1552, %v1648
      %v1681 = vmax.f32 %v1553, %v1649
      %v1682 = vmax.f32 %v1554, %v1650
      %v1683 = vmax.f32 %v1555, %v1651
      %v1684 = vmax.f32 %v1556, %v1652
      %v1685 = vmax.f32 %v1557, %v1653
      %v1686 = vmax.f32 %v1558, %v1654
      %v1687 = vmax.f32 %v1559, %v1655
      %v1688 = vmax.f32 %v1560, %v1656
      %v1689 = vmax.f32 %v1561, %v1657
      %v1690 = vmax.f32 %v1562, %v1658
      %v1691 = vmax.f32 %v1563, %v1659
      %v1692 = vmax.f32 %v1564, %v1660
      %v1693 = vmax.f32 %v1565, %v1661
      %v1694 = vmax.f32 %v1566, %v1662
      %v1695 = vmax.f32 %v1567, %v1663
      %v1696 = vmax.f32 %v1568, %v1664
      %v1697 = vmax.f32 %v1569, %v1665
      %v1698 = vmax.f32 %v1570, %v1666
      %v1699 = vmax.f32 %v1571, %v1667
      %v1700 = vmax.f32 %v1572, %v1668
      %v1701 = vmax.f32 %v1573, %v1669
      %v1702 = vmax.f32 %v1574, %v1670
      %v1703 = vmax.f32 %v1575, %v1671
      %v1704 = vmax.f32 %v1576, %v1672
      %v1705 = vmax.f32 %v1577, %v1673
      %v1706 = vmax.f32 %v1578, %v1674
      %v1707 = vmax.f32 %v1579, %v1675
      %v1708 = vmax.f32 %v1580, %v1676
      %v1709 = vmax.f32 %v1581, %v1677
      %1710 = vst.msk [vmem:[%s874] sm:$0xff] %vm305, %v1678
      %1711 = vst.msk [vmem:[%s874 + $0x8] sm:$0xff] %vm305, %v1679
      %1712 = vst.msk [vmem:[%s874 + $0x10] sm:$0xff] %vm305, %v1680
      %1713 = vst.msk [vmem:[%s874 + $0x18] sm:$0xff] %vm305, %v1681
      %1714 = vst.msk [vmem:[%s874 + $0x20] sm:$0xff] %vm305, %v1682
      %1715 = vst.msk [vmem:[%s874 + $0x28] sm:$0xff] %vm305, %v1683
      %1716 = vst.msk [vmem:[%s874 + $0x30] sm:$0xff] %vm305, %v1684
      %1717 = vst.msk [vmem:[%s874 + $0x38] sm:$0xff] %vm305, %v1685
      %1718 = vst.msk [vmem:[%s874 + $0x40] sm:$0xff] %vm305, %v1686
      %1719 = vst.msk [vmem:[%s874 + $0x48] sm:$0xff] %vm305, %v1687
      %1720 = vst.msk [vmem:[%s874 + $0x50] sm:$0xff] %vm305, %v1688
      %1721 = vst.msk [vmem:[%s874 + $0x58] sm:$0xff] %vm305, %v1689
      %1722 = vst.msk [vmem:[%s874 + $0x60] sm:$0xff] %vm305, %v1690
      %1723 = vst.msk [vmem:[%s874 + $0x68] sm:$0xff] %vm305, %v1691
      %1724 = vst.msk [vmem:[%s874 + $0x70] sm:$0xff] %vm305, %v1692
      %1725 = vst.msk [vmem:[%s874 + $0x78] sm:$0xff] %vm305, %v1693
      %1726 = vst.msk [vmem:[%s874 + $0x80] sm:$0xff] %vm305, %v1694
      %1727 = vst.msk [vmem:[%s874 + $0x88] sm:$0xff] %vm305, %v1695
      %1728 = vst.msk [vmem:[%s874 + $0x90] sm:$0xff] %vm305, %v1696
      %1729 = vst.msk [vmem:[%s874 + $0x98] sm:$0xff] %vm305, %v1697
      %1730 = vst.msk [vmem:[%s874 + $0xa0] sm:$0xff] %vm305, %v1698
      %1731 = vst.msk [vmem:[%s874 + $0xa8] sm:$0xff] %vm305, %v1699
      %1732 = vst.msk [vmem:[%s874 + $0xb0] sm:$0xff] %vm305, %v1700
      %1733 = vst.msk [vmem:[%s874 + $0xb8] sm:$0xff] %vm305, %v1701
      %1734 = vst.msk [vmem:[%s874 + $0xc0] sm:$0xff] %vm305, %v1702
      %1735 = vst.msk [vmem:[%s874 + $0xc8] sm:$0xff] %vm305, %v1703
      %1736 = vst.msk [vmem:[%s874 + $0xd0] sm:$0xff] %vm305, %v1704
      %1737 = vst.msk [vmem:[%s874 + $0xd8] sm:$0xff] %vm305, %v1705
      %1738 = vst.msk [vmem:[%s874 + $0xe0] sm:$0xff] %vm305, %v1706
      %1739 = vst.msk [vmem:[%s874 + $0xe8] sm:$0xff] %vm305, %v1707
      %1740 = vst.msk [vmem:[%s874 + $0xf0] sm:$0xff] %vm305, %v1708
      %1741 = vst.msk [vmem:[%s874 + $0xf8] sm:$0xff] %vm305, %v1709
      %v1742 = vld [vmem:[#allocation3] sm:$0xff]
      %v1743 = vld [vmem:[#allocation3 + $0x8] sm:$0xff]
      %v1744 = vld [vmem:[#allocation3 + $0x10] sm:$0xff]
      %v1745 = vld [vmem:[#allocation3 + $0x18] sm:$0xff]
      %v1746 = vld [vmem:[#allocation3 + $0x20] sm:$0xff]
      %v1747 = vld [vmem:[#allocation3 + $0x28] sm:$0xff]
      %v1748 = vld [vmem:[#allocation3 + $0x30] sm:$0xff]
      %v1749 = vld [vmem:[#allocation3 + $0x38] sm:$0xff]
      %v1750 = vld [vmem:[#allocation3 + $0x40] sm:$0xff]
      %v1751 = vld [vmem:[#allocation3 + $0x48] sm:$0xff]
      %v1752 = vld [vmem:[#allocation3 + $0x50] sm:$0xff]
      %v1753 = vld [vmem:[#allocation3 + $0x58] sm:$0xff]
      %v1754 = vld [vmem:[#allocation3 + $0x60] sm:$0xff]
      %v1755 = vld [vmem:[#allocation3 + $0x68] sm:$0xff]
      %v1756 = vld [vmem:[#allocation3 + $0x70] sm:$0xff]
      %v1757 = vld [vmem:[#allocation3 + $0x78] sm:$0xff]
      %v1758 = vld [vmem:[#allocation3 + $0x80] sm:$0xff]
      %v1759 = vld [vmem:[#allocation3 + $0x88] sm:$0xff]
      %v1760 = vld [vmem:[#allocation3 + $0x90] sm:$0xff]
      %v1761 = vld [vmem:[#allocation3 + $0x98] sm:$0xff]
      %v1762 = vld [vmem:[#allocation3 + $0xa0] sm:$0xff]
      %v1763 = vld [vmem:[#allocation3 + $0xa8] sm:$0xff]
      %v1764 = vld [vmem:[#allocation3 + $0xb0] sm:$0xff]
      %v1765 = vld [vmem:[#allocation3 + $0xb8] sm:$0xff]
      %v1766 = vld [vmem:[#allocation3 + $0xc0] sm:$0xff]
      %v1767 = vld [vmem:[#allocation3 + $0xc8] sm:$0xff]
      %v1768 = vld [vmem:[#allocation3 + $0xd0] sm:$0xff]
      %v1769 = vld [vmem:[#allocation3 + $0xd8] sm:$0xff]
      %v1770 = vld [vmem:[#allocation3 + $0xe0] sm:$0xff]
      %v1771 = vld [vmem:[#allocation3 + $0xe8] sm:$0xff]
      %v1772 = vld [vmem:[#allocation3 + $0xf0] sm:$0xff]
      %v1773 = vld [vmem:[#allocation3 + $0xf8] sm:$0xff]
      %v1774 = vld [vmem:[%s939] sm:$0xff]
      %v1775 = vld [vmem:[%s939 + $0x8] sm:$0xff]
      %v1776 = vld [vmem:[%s939 + $0x10] sm:$0xff]
      %v1777 = vld [vmem:[%s939 + $0x18] sm:$0xff]
      %v1778 = vld [vmem:[%s939 + $0x20] sm:$0xff]
      %v1779 = vld [vmem:[%s939 + $0x28] sm:$0xff]
      %v1780 = vld [vmem:[%s939 + $0x30] sm:$0xff]
      %v1781 = vld [vmem:[%s939 + $0x38] sm:$0xff]
      %v1782 = vld [vmem:[%s939 + $0x40] sm:$0xff]
      %v1783 = vld [vmem:[%s939 + $0x48] sm:$0xff]
      %v1784 = vld [vmem:[%s939 + $0x50] sm:$0xff]
      %v1785 = vld [vmem:[%s939 + $0x58] sm:$0xff]
      %v1786 = vld [vmem:[%s939 + $0x60] sm:$0xff]
      %v1787 = vld [vmem:[%s939 + $0x68] sm:$0xff]
      %v1788 = vld [vmem:[%s939 + $0x70] sm:$0xff]
      %v1789 = vld [vmem:[%s939 + $0x78] sm:$0xff]
      %v1790 = vld [vmem:[%s939 + $0x80] sm:$0xff]
      %v1791 = vld [vmem:[%s939 + $0x88] sm:$0xff]
      %v1792 = vld [vmem:[%s939 + $0x90] sm:$0xff]
      %v1793 = vld [vmem:[%s939 + $0x98] sm:$0xff]
      %v1794 = vld [vmem:[%s939 + $0xa0] sm:$0xff]
      %v1795 = vld [vmem:[%s939 + $0xa8] sm:$0xff]
      %v1796 = vld [vmem:[%s939 + $0xb0] sm:$0xff]
      %v1797 = vld [vmem:[%s939 + $0xb8] sm:$0xff]
      %v1798 = vld [vmem:[%s939 + $0xc0] sm:$0xff]
      %v1799 = vld [vmem:[%s939 + $0xc8] sm:$0xff]
      %v1800 = vld [vmem:[%s939 + $0xd0] sm:$0xff]
      %v1801 = vld [vmem:[%s939 + $0xd8] sm:$0xff]
      %v1802 = vld [vmem:[%s939 + $0xe0] sm:$0xff]
      %v1803 = vld [vmem:[%s939 + $0xe8] sm:$0xff]
      %v1804 = vld [vmem:[%s939 + $0xf0] sm:$0xff]
      %v1805 = vld [vmem:[%s939 + $0xf8] sm:$0xff]
      %v1806 = vmax.f32 %v1742, %v1774
      %v1807 = vmax.f32 %v1743, %v1775
      %v1808 = vmax.f32 %v1744, %v1776
      %v1809 = vmax.f32 %v1745, %v1777
      %v1810 = vmax.f32 %v1746, %v1778
      %v1811 = vmax.f32 %v1747, %v1779
      %v1812 = vmax.f32 %v1748, %v1780
      %v1813 = vmax.f32 %v1749, %v1781
      %v1814 = vmax.f32 %v1750, %v1782
      %v1815 = vmax.f32 %v1751, %v1783
      %v1816 = vmax.f32 %v1752, %v1784
      %v1817 = vmax.f32 %v1753, %v1785
      %v1818 = vmax.f32 %v1754, %v1786
      %v1819 = vmax.f32 %v1755, %v1787
      %v1820 = vmax.f32 %v1756, %v1788
      %v1821 = vmax.f32 %v1757, %v1789
      %v1822 = vmax.f32 %v1758, %v1790
      %v1823 = vmax.f32 %v1759, %v1791
      %v1824 = vmax.f32 %v1760, %v1792
      %v1825 = vmax.f32 %v1761, %v1793
      %v1826 = vmax.f32 %v1762, %v1794
      %v1827 = vmax.f32 %v1763, %v1795
      %v1828 = vmax.f32 %v1764, %v1796
      %v1829 = vmax.f32 %v1765, %v1797
      %v1830 = vmax.f32 %v1766, %v1798
      %v1831 = vmax.f32 %v1767, %v1799
      %v1832 = vmax.f32 %v1768, %v1800
      %v1833 = vmax.f32 %v1769, %v1801
      %v1834 = vmax.f32 %v1770, %v1802
      %v1835 = vmax.f32 %v1771, %v1803
      %v1836 = vmax.f32 %v1772, %v1804
      %v1837 = vmax.f32 %v1773, %v1805
      %v1838 = vld [vmem:[%s874] sm:$0xff]
      %v1839 = vld [vmem:[%s874 + $0x8] sm:$0xff]
      %v1840 = vld [vmem:[%s874 + $0x10] sm:$0xff]
      %v1841 = vld [vmem:[%s874 + $0x18] sm:$0xff]
      %v1842 = vld [vmem:[%s874 + $0x20] sm:$0xff]
      %v1843 = vld [vmem:[%s874 + $0x28] sm:$0xff]
      %v1844 = vld [vmem:[%s874 + $0x30] sm:$0xff]
      %v1845 = vld [vmem:[%s874 + $0x38] sm:$0xff]
      %v1846 = vld [vmem:[%s874 + $0x40] sm:$0xff]
      %v1847 = vld [vmem:[%s874 + $0x48] sm:$0xff]
      %v1848 = vld [vmem:[%s874 + $0x50] sm:$0xff]
      %v1849 = vld [vmem:[%s874 + $0x58] sm:$0xff]
      %v1850 = vld [vmem:[%s874 + $0x60] sm:$0xff]
      %v1851 = vld [vmem:[%s874 + $0x68] sm:$0xff]
      %v1852 = vld [vmem:[%s874 + $0x70] sm:$0xff]
      %v1853 = vld [vmem:[%s874 + $0x78] sm:$0xff]
      %v1854 = vld [vmem:[%s874 + $0x80] sm:$0xff]
      %v1855 = vld [vmem:[%s874 + $0x88] sm:$0xff]
      %v1856 = vld [vmem:[%s874 + $0x90] sm:$0xff]
      %v1857 = vld [vmem:[%s874 + $0x98] sm:$0xff]
      %v1858 = vld [vmem:[%s874 + $0xa0] sm:$0xff]
      %v1859 = vld [vmem:[%s874 + $0xa8] sm:$0xff]
      %v1860 = vld [vmem:[%s874 + $0xb0] sm:$0xff]
      %v1861 = vld [vmem:[%s874 + $0xb8] sm:$0xff]
      %v1862 = vld [vmem:[%s874 + $0xc0] sm:$0xff]
      %v1863 = vld [vmem:[%s874 + $0xc8] sm:$0xff]
      %v1864 = vld [vmem:[%s874 + $0xd0] sm:$0xff]
      %v1865 = vld [vmem:[%s874 + $0xd8] sm:$0xff]
      %v1866 = vld [vmem:[%s874 + $0xe0] sm:$0xff]
      %v1867 = vld [vmem:[%s874 + $0xe8] sm:$0xff]
      %v1868 = vld [vmem:[%s874 + $0xf0] sm:$0xff]
      %v1869 = vld [vmem:[%s874 + $0xf8] sm:$0xff]
      %v1870 = vmax.f32 %v1806, %v1838
      %v1871 = vmax.f32 %v1807, %v1839
      %v1872 = vmax.f32 %v1808, %v1840
      %v1873 = vmax.f32 %v1809, %v1841
      %v1874 = vmax.f32 %v1810, %v1842
      %v1875 = vmax.f32 %v1811, %v1843
      %v1876 = vmax.f32 %v1812, %v1844
      %v1877 = vmax.f32 %v1813, %v1845
      %v1878 = vmax.f32 %v1814, %v1846
      %v1879 = vmax.f32 %v1815, %v1847
      %v1880 = vmax.f32 %v1816, %v1848
      %v1881 = vmax.f32 %v1817, %v1849
      %v1882 = vmax.f32 %v1818, %v1850
      %v1883 = vmax.f32 %v1819, %v1851
      %v1884 = vmax.f32 %v1820, %v1852
      %v1885 = vmax.f32 %v1821, %v1853
      %v1886 = vmax.f32 %v1822, %v1854
      %v1887 = vmax.f32 %v1823, %v1855
      %v1888 = vmax.f32 %v1824, %v1856
      %v1889 = vmax.f32 %v1825, %v1857
      %v1890 = vmax.f32 %v1826, %v1858
      %v1891 = vmax.f32 %v1827, %v1859
      %v1892 = vmax.f32 %v1828, %v1860
      %v1893 = vmax.f32 %v1829, %v1861
      %v1894 = vmax.f32 %v1830, %v1862
      %v1895 = vmax.f32 %v1831, %v1863
      %v1896 = vmax.f32 %v1832, %v1864
      %v1897 = vmax.f32 %v1833, %v1865
      %v1898 = vmax.f32 %v1834, %v1866
      %v1899 = vmax.f32 %v1835, %v1867
      %v1900 = vmax.f32 %v1836, %v1868
      %v1901 = vmax.f32 %v1837, %v1869
      %v1902 = vld [vmem:[%s1068] sm:$0xff]
      %v1903 = vld [vmem:[%s1068 + $0x8] sm:$0xff]
      %v1904 = vld [vmem:[%s1068 + $0x10] sm:$0xff]
      %v1905 = vld [vmem:[%s1068 + $0x18] sm:$0xff]
      %v1906 = vld [vmem:[%s1068 + $0x20] sm:$0xff]
      %v1907 = vld [vmem:[%s1068 + $0x28] sm:$0xff]
      %v1908 = vld [vmem:[%s1068 + $0x30] sm:$0xff]
      %v1909 = vld [vmem:[%s1068 + $0x38] sm:$0xff]
      %v1910 = vld [vmem:[%s1068 + $0x40] sm:$0xff]
      %v1911 = vld [vmem:[%s1068 + $0x48] sm:$0xff]
      %v1912 = vld [vmem:[%s1068 + $0x50] sm:$0xff]
      %v1913 = vld [vmem:[%s1068 + $0x58] sm:$0xff]
      %v1914 = vld [vmem:[%s1068 + $0x60] sm:$0xff]
      %v1915 = vld [vmem:[%s1068 + $0x68] sm:$0xff]
      %v1916 = vld [vmem:[%s1068 + $0x70] sm:$0xff]
      %v1917 = vld [vmem:[%s1068 + $0x78] sm:$0xff]
      %v1918 = vld [vmem:[%s1068 + $0x80] sm:$0xff]
      %v1919 = vld [vmem:[%s1068 + $0x88] sm:$0xff]
      %v1920 = vld [vmem:[%s1068 + $0x90] sm:$0xff]
      %v1921 = vld [vmem:[%s1068 + $0x98] sm:$0xff]
      %v1922 = vld [vmem:[%s1068 + $0xa0] sm:$0xff]
      %v1923 = vld [vmem:[%s1068 + $0xa8] sm:$0xff]
      %v1924 = vld [vmem:[%s1068 + $0xb0] sm:$0xff]
      %v1925 = vld [vmem:[%s1068 + $0xb8] sm:$0xff]
      %v1926 = vld [vmem:[%s1068 + $0xc0] sm:$0xff]
      %v1927 = vld [vmem:[%s1068 + $0xc8] sm:$0xff]
      %v1928 = vld [vmem:[%s1068 + $0xd0] sm:$0xff]
      %v1929 = vld [vmem:[%s1068 + $0xd8] sm:$0xff]
      %v1930 = vld [vmem:[%s1068 + $0xe0] sm:$0xff]
      %v1931 = vld [vmem:[%s1068 + $0xe8] sm:$0xff]
      %v1932 = vld [vmem:[%s1068 + $0xf0] sm:$0xff]
      %v1933 = vld [vmem:[%s1068 + $0xf8] sm:$0xff]
      %v1934 = vmax.f32 %v1870, %v1902
      %v1935 = vmax.f32 %v1871, %v1903
      %v1936 = vmax.f32 %v1872, %v1904
      %v1937 = vmax.f32 %v1873, %v1905
      %v1938 = vmax.f32 %v1874, %v1906
      %v1939 = vmax.f32 %v1875, %v1907
      %v1940 = vmax.f32 %v1876, %v1908
      %v1941 = vmax.f32 %v1877, %v1909
      %v1942 = vmax.f32 %v1878, %v1910
      %v1943 = vmax.f32 %v1879, %v1911
      %v1944 = vmax.f32 %v1880, %v1912
      %v1945 = vmax.f32 %v1881, %v1913
      %v1946 = vmax.f32 %v1882, %v1914
      %v1947 = vmax.f32 %v1883, %v1915
      %v1948 = vmax.f32 %v1884, %v1916
      %v1949 = vmax.f32 %v1885, %v1917
      %v1950 = vmax.f32 %v1886, %v1918
      %v1951 = vmax.f32 %v1887, %v1919
      %v1952 = vmax.f32 %v1888, %v1920
      %v1953 = vmax.f32 %v1889, %v1921
      %v1954 = vmax.f32 %v1890, %v1922
      %v1955 = vmax.f32 %v1891, %v1923
      %v1956 = vmax.f32 %v1892, %v1924
      %v1957 = vmax.f32 %v1893, %v1925
      %v1958 = vmax.f32 %v1894, %v1926
      %v1959 = vmax.f32 %v1895, %v1927
      %v1960 = vmax.f32 %v1896, %v1928
      %v1961 = vmax.f32 %v1897, %v1929
      %v1962 = vmax.f32 %v1898, %v1930
      %v1963 = vmax.f32 %v1899, %v1931
      %v1964 = vmax.f32 %v1900, %v1932
      %v1965 = vmax.f32 %v1901, %v1933
      %v1966 = vld [vmem:[%s1133] sm:$0xff]
      %v1967 = vld [vmem:[%s1133 + $0x8] sm:$0xff]
      %v1968 = vld [vmem:[%s1133 + $0x10] sm:$0xff]
      %v1969 = vld [vmem:[%s1133 + $0x18] sm:$0xff]
      %v1970 = vld [vmem:[%s1133 + $0x20] sm:$0xff]
      %v1971 = vld [vmem:[%s1133 + $0x28] sm:$0xff]
      %v1972 = vld [vmem:[%s1133 + $0x30] sm:$0xff]
      %v1973 = vld [vmem:[%s1133 + $0x38] sm:$0xff]
      %v1974 = vld [vmem:[%s1133 + $0x40] sm:$0xff]
      %v1975 = vld [vmem:[%s1133 + $0x48] sm:$0xff]
      %v1976 = vld [vmem:[%s1133 + $0x50] sm:$0xff]
      %v1977 = vld [vmem:[%s1133 + $0x58] sm:$0xff]
      %v1978 = vld [vmem:[%s1133 + $0x60] sm:$0xff]
      %v1979 = vld [vmem:[%s1133 + $0x68] sm:$0xff]
      %v1980 = vld [vmem:[%s1133 + $0x70] sm:$0xff]
      %v1981 = vld [vmem:[%s1133 + $0x78] sm:$0xff]
      %v1982 = vld [vmem:[%s1133 + $0x80] sm:$0xff]
      %v1983 = vld [vmem:[%s1133 + $0x88] sm:$0xff]
      %v1984 = vld [vmem:[%s1133 + $0x90] sm:$0xff]
      %v1985 = vld [vmem:[%s1133 + $0x98] sm:$0xff]
      %v1986 = vld [vmem:[%s1133 + $0xa0] sm:$0xff]
      %v1987 = vld [vmem:[%s1133 + $0xa8] sm:$0xff]
      %v1988 = vld [vmem:[%s1133 + $0xb0] sm:$0xff]
      %v1989 = vld [vmem:[%s1133 + $0xb8] sm:$0xff]
      %v1990 = vld [vmem:[%s1133 + $0xc0] sm:$0xff]
      %v1991 = vld [vmem:[%s1133 + $0xc8] sm:$0xff]
      %v1992 = vld [vmem:[%s1133 + $0xd0] sm:$0xff]
      %v1993 = vld [vmem:[%s1133 + $0xd8] sm:$0xff]
      %v1994 = vld [vmem:[%s1133 + $0xe0] sm:$0xff]
      %v1995 = vld [vmem:[%s1133 + $0xe8] sm:$0xff]
      %v1996 = vld [vmem:[%s1133 + $0xf0] sm:$0xff]
      %v1997 = vld [vmem:[%s1133 + $0xf8] sm:$0xff]
      %v1998 = vmax.f32 %v1934, %v1966
      %v1999 = vmax.f32 %v1935, %v1967
      %v2000 = vmax.f32 %v1936, %v1968
      %v2001 = vmax.f32 %v1937, %v1969
      %v2002 = vmax.f32 %v1938, %v1970
      %v2003 = vmax.f32 %v1939, %v1971
      %v2004 = vmax.f32 %v1940, %v1972
      %v2005 = vmax.f32 %v1941, %v1973
      %v2006 = vmax.f32 %v1942, %v1974
      %v2007 = vmax.f32 %v1943, %v1975
      %v2008 = vmax.f32 %v1944, %v1976
      %v2009 = vmax.f32 %v1945, %v1977
      %v2010 = vmax.f32 %v1946, %v1978
      %v2011 = vmax.f32 %v1947, %v1979
      %v2012 = vmax.f32 %v1948, %v1980
      %v2013 = vmax.f32 %v1949, %v1981
      %v2014 = vmax.f32 %v1950, %v1982
      %v2015 = vmax.f32 %v1951, %v1983
      %v2016 = vmax.f32 %v1952, %v1984
      %v2017 = vmax.f32 %v1953, %v1985
      %v2018 = vmax.f32 %v1954, %v1986
      %v2019 = vmax.f32 %v1955, %v1987
      %v2020 = vmax.f32 %v1956, %v1988
      %v2021 = vmax.f32 %v1957, %v1989
      %v2022 = vmax.f32 %v1958, %v1990
      %v2023 = vmax.f32 %v1959, %v1991
      %v2024 = vmax.f32 %v1960, %v1992
      %v2025 = vmax.f32 %v1961, %v1993
      %v2026 = vmax.f32 %v1962, %v1994
      %v2027 = vmax.f32 %v1963, %v1995
      %v2028 = vmax.f32 %v1964, %v1996
      %v2029 = vmax.f32 %v1965, %v1997
      %v2030 = vrot.slane %v1998, 7
      %v2031 = vrot.slane %v2000, 7
      %v2032 = vrot.slane %v2002, 7
      %v2033 = vrot.slane %v2004, 7
      %v2034 = vrot.slane %v2006, 7
      %v2035 = vrot.slane %v2008, 7
      %v2036 = vrot.slane %v2010, 7
      %v2037 = vrot.slane %v2012, 7
      %v2038 = vrot.slane %v2014, 7
      %v2039 = vrot.slane %v2016, 7
      %v2040 = vrot.slane %v2018, 7
      %v2041 = vrot.slane %v2020, 7
      %v2042 = vrot.slane %v2022, 7
      %v2043 = vrot.slane %v2024, 7
      %v2044 = vrot.slane %v2026, 7
      %v2045 = vrot.slane %v2028, 7
      %v2046 = vrot.slane %v1999, 7
      %v2047 = vrot.slane %v2001, 7
      %v2048 = vrot.slane %v2003, 7
      %v2049 = vrot.slane %v2005, 7
      %v2050 = vrot.slane %v2007, 7
      %v2051 = vrot.slane %v2009, 7
      %v2052 = vrot.slane %v2011, 7
      %v2053 = vrot.slane %v2013, 7
      %v2054 = vrot.slane %v2015, 7
      %v2055 = vrot.slane %v2017, 7
      %v2056 = vrot.slane %v2019, 7
      %v2057 = vrot.slane %v2021, 7
      %v2058 = vrot.slane %v2023, 7
      %v2059 = vrot.slane %v2025, 7
      %v2060 = vrot.slane %v2027, 7
      %v2061 = vrot.slane %v2029, 7
      %v2062 = vsel %vm390, %v2030, %v2046
      %v2063 = vsel %vm390, %v2031, %v2047
      %v2064 = vsel %vm390, %v2032, %v2048
      %v2065 = vsel %vm390, %v2033, %v2049
      %v2066 = vsel %vm390, %v2034, %v2050
      %v2067 = vsel %vm390, %v2035, %v2051
      %v2068 = vsel %vm390, %v2036, %v2052
      %v2069 = vsel %vm390, %v2037, %v2053
      %v2070 = vsel %vm390, %v2038, %v2054
      %v2071 = vsel %vm390, %v2039, %v2055
      %v2072 = vsel %vm390, %v2040, %v2056
      %v2073 = vsel %vm390, %v2041, %v2057
      %v2074 = vsel %vm390, %v2042, %v2058
      %v2075 = vsel %vm390, %v2043, %v2059
      %v2076 = vsel %vm390, %v2044, %v2060
      %v2077 = vsel %vm390, %v2045, %v2061
      %v2078 = vsel %vm390, %v2046, %v2030
      %v2079 = vsel %vm390, %v2047, %v2031
      %v2080 = vsel %vm390, %v2048, %v2032
      %v2081 = vsel %vm390, %v2049, %v2033
      %v2082 = vsel %vm390, %v2050, %v2034
      %v2083 = vsel %vm390, %v2051, %v2035
      %v2084 = vsel %vm390, %v2052, %v2036
      %v2085 = vsel %vm390, %v2053, %v2037
      %v2086 = vsel %vm390, %v2054, %v2038
      %v2087 = vsel %vm390, %v2055, %v2039
      %v2088 = vsel %vm390, %v2056, %v2040
      %v2089 = vsel %vm390, %v2057, %v2041
      %v2090 = vsel %vm390, %v2058, %v2042
      %v2091 = vsel %vm390, %v2059, %v2043
      %v2092 = vsel %vm390, %v2060, %v2044
      %v2093 = vsel %vm390, %v2061, %v2045
      %v2094 = vsel %vm318, %v2078, -inf
      %v2095 = vsel %vm319, %v2062, -inf
      %v2096 = vsel %vm318, %v2079, -inf
      %v2097 = vsel %vm319, %v2063, -inf
      %v2098 = vsel %vm318, %v2080, -inf
      %v2099 = vsel %vm319, %v2064, -inf
      %v2100 = vsel %vm318, %v2081, -inf
      %v2101 = vsel %vm319, %v2065, -inf
      %v2102 = vsel %vm318, %v2082, -inf
      %v2103 = vsel %vm319, %v2066, -inf
      %v2104 = vsel %vm318, %v2083, -inf
      %v2105 = vsel %vm319, %v2067, -inf
      %v2106 = vsel %vm318, %v2084, -inf
      %v2107 = vsel %vm319, %v2068, -inf
      %v2108 = vsel %vm318, %v2085, -inf
      %v2109 = vsel %vm319, %v2069, -inf
      %v2110 = vsel %vm318, %v2086, -inf
      %v2111 = vsel %vm319, %v2070, -inf
      %v2112 = vsel %vm318, %v2087, -inf
      %v2113 = vsel %vm319, %v2071, -inf
      %v2114 = vsel %vm318, %v2088, -inf
      %v2115 = vsel %vm319, %v2072, -inf
      %v2116 = vsel %vm318, %v2089, -inf
      %v2117 = vsel %vm319, %v2073, -inf
      %v2118 = vsel %vm318, %v2090, -inf
      %v2119 = vsel %vm319, %v2074, -inf
      %v2120 = vsel %vm318, %v2091, -inf
      %v2121 = vsel %vm319, %v2075, -inf
      %v2122 = vsel %vm318, %v2092, -inf
      %v2123 = vsel %vm319, %v2076, -inf
      %v2124 = vsel %vm318, %v2093, -inf
      %v2125 = vsel %vm319, %v2077, -inf
      %v2126 = vmax.f32 %v1998, %v2094
      %v2127 = vmax.f32 %v1999, %v2095
      %v2128 = vmax.f32 %v2000, %v2096
      %v2129 = vmax.f32 %v2001, %v2097
      %v2130 = vmax.f32 %v2002, %v2098
      %v2131 = vmax.f32 %v2003, %v2099
      %v2132 = vmax.f32 %v2004, %v2100
      %v2133 = vmax.f32 %v2005, %v2101
      %v2134 = vmax.f32 %v2006, %v2102
      %v2135 = vmax.f32 %v2007, %v2103
      %v2136 = vmax.f32 %v2008, %v2104
      %v2137 = vmax.f32 %v2009, %v2105
      %v2138 = vmax.f32 %v2010, %v2106
      %v2139 = vmax.f32 %v2011, %v2107
      %v2140 = vmax.f32 %v2012, %v2108
      %v2141 = vmax.f32 %v2013, %v2109
      %v2142 = vmax.f32 %v2014, %v2110
      %v2143 = vmax.f32 %v2015, %v2111
      %v2144 = vmax.f32 %v2016, %v2112
      %v2145 = vmax.f32 %v2017, %v2113
      %v2146 = vmax.f32 %v2018, %v2114
      %v2147 = vmax.f32 %v2019, %v2115
      %v2148 = vmax.f32 %v2020, %v2116
      %v2149 = vmax.f32 %v2021, %v2117
      %v2150 = vmax.f32 %v2022, %v2118
      %v2151 = vmax.f32 %v2023, %v2119
      %v2152 = vmax.f32 %v2024, %v2120
      %v2153 = vmax.f32 %v2025, %v2121
      %v2154 = vmax.f32 %v2026, %v2122
      %v2155 = vmax.f32 %v2027, %v2123
      %v2156 = vmax.f32 %v2028, %v2124
      %v2157 = vmax.f32 %v2029, %v2125
      %v2158 = vrot.slane %v1998, 6
      %v2159 = vrot.slane %v2000, 6
      %v2160 = vrot.slane %v2002, 6
      %v2161 = vrot.slane %v2004, 6
      %v2162 = vrot.slane %v2006, 6
      %v2163 = vrot.slane %v2008, 6
      %v2164 = vrot.slane %v2010, 6
      %v2165 = vrot.slane %v2012, 6
      %v2166 = vrot.slane %v2014, 6
      %v2167 = vrot.slane %v2016, 6
      %v2168 = vrot.slane %v2018, 6
      %v2169 = vrot.slane %v2020, 6
      %v2170 = vrot.slane %v2022, 6
      %v2171 = vrot.slane %v2024, 6
      %v2172 = vrot.slane %v2026, 6
      %v2173 = vrot.slane %v2028, 6
      %v2174 = vrot.slane %v1999, 6
      %v2175 = vrot.slane %v2001, 6
      %v2176 = vrot.slane %v2003, 6
      %v2177 = vrot.slane %v2005, 6
      %v2178 = vrot.slane %v2007, 6
      %v2179 = vrot.slane %v2009, 6
      %v2180 = vrot.slane %v2011, 6
      %v2181 = vrot.slane %v2013, 6
      %v2182 = vrot.slane %v2015, 6
      %v2183 = vrot.slane %v2017, 6
      %v2184 = vrot.slane %v2019, 6
      %v2185 = vrot.slane %v2021, 6
      %v2186 = vrot.slane %v2023, 6
      %v2187 = vrot.slane %v2025, 6
      %v2188 = vrot.slane %v2027, 6
      %v2189 = vrot.slane %v2029, 6
      %v2190 = vsel %vm519, %v2158, %v2174
      %v2191 = vsel %vm519, %v2159, %v2175
      %v2192 = vsel %vm519, %v2160, %v2176
      %v2193 = vsel %vm519, %v2161, %v2177
      %v2194 = vsel %vm519, %v2162, %v2178
      %v2195 = vsel %vm519, %v2163, %v2179
      %v2196 = vsel %vm519, %v2164, %v2180
      %v2197 = vsel %vm519, %v2165, %v2181
      %v2198 = vsel %vm519, %v2166, %v2182
      %v2199 = vsel %vm519, %v2167, %v2183
      %v2200 = vsel %vm519, %v2168, %v2184
      %v2201 = vsel %vm519, %v2169, %v2185
      %v2202 = vsel %vm519, %v2170, %v2186
      %v2203 = vsel %vm519, %v2171, %v2187
      %v2204 = vsel %vm519, %v2172, %v2188
      %v2205 = vsel %vm519, %v2173, %v2189
      %v2206 = vsel %vm519, %v2174, %v2158
      %v2207 = vsel %vm519, %v2175, %v2159
      %v2208 = vsel %vm519, %v2176, %v2160
      %v2209 = vsel %vm519, %v2177, %v2161
      %v2210 = vsel %vm519, %v2178, %v2162
      %v2211 = vsel %vm519, %v2179, %v2163
      %v2212 = vsel %vm519, %v2180, %v2164
      %v2213 = vsel %vm519, %v2181, %v2165
      %v2214 = vsel %vm519, %v2182, %v2166
      %v2215 = vsel %vm519, %v2183, %v2167
      %v2216 = vsel %vm519, %v2184, %v2168
      %v2217 = vsel %vm519, %v2185, %v2169
      %v2218 = vsel %vm519, %v2186, %v2170
      %v2219 = vsel %vm519, %v2187, %v2171
      %v2220 = vsel %vm519, %v2188, %v2172
      %v2221 = vsel %vm519, %v2189, %v2173
      %v2222 = vsel %vm320, %v2206, -inf
      %v2223 = vsel %vm321, %v2190, -inf
      %v2224 = vsel %vm320, %v2207, -inf
      %v2225 = vsel %vm321, %v2191, -inf
      %v2226 = vsel %vm320, %v2208, -inf
      %v2227 = vsel %vm321, %v2192, -inf
      %v2228 = vsel %vm320, %v2209, -inf
      %v2229 = vsel %vm321, %v2193, -inf
      %v2230 = vsel %vm320, %v2210, -inf
      %v2231 = vsel %vm321, %v2194, -inf
      %v2232 = vsel %vm320, %v2211, -inf
      %v2233 = vsel %vm321, %v2195, -inf
      %v2234 = vsel %vm320, %v2212, -inf
      %v2235 = vsel %vm321, %v2196, -inf
      %v2236 = vsel %vm320, %v2213, -inf
      %v2237 = vsel %vm321, %v2197, -inf
      %v2238 = vsel %vm320, %v2214, -inf
      %v2239 = vsel %vm321, %v2198, -inf
      %v2240 = vsel %vm320, %v2215, -inf
      %v2241 = vsel %vm321, %v2199, -inf
      %v2242 = vsel %vm320, %v2216, -inf
      %v2243 = vsel %vm321, %v2200, -inf
      %v2244 = vsel %vm320, %v2217, -inf
      %v2245 = vsel %vm321, %v2201, -inf
      %v2246 = vsel %vm320, %v2218, -inf
      %v2247 = vsel %vm321, %v2202, -inf
      %v2248 = vsel %vm320, %v2219, -inf
      %v2249 = vsel %vm321, %v2203, -inf
      %v2250 = vsel %vm320, %v2220, -inf
      %v2251 = vsel %vm321, %v2204, -inf
      %v2252 = vsel %vm320, %v2221, -inf
      %v2253 = vsel %vm321, %v2205, -inf
      %v2254 = vmax.f32 %v2126, %v2222
      %v2255 = vmax.f32 %v2127, %v2223
      %v2256 = vmax.f32 %v2128, %v2224
      %v2257 = vmax.f32 %v2129, %v2225
      %v2258 = vmax.f32 %v2130, %v2226
      %v2259 = vmax.f32 %v2131, %v2227
      %v2260 = vmax.f32 %v2132, %v2228
      %v2261 = vmax.f32 %v2133, %v2229
      %v2262 = vmax.f32 %v2134, %v2230
      %v2263 = vmax.f32 %v2135, %v2231
      %v2264 = vmax.f32 %v2136, %v2232
      %v2265 = vmax.f32 %v2137, %v2233
      %v2266 = vmax.f32 %v2138, %v2234
      %v2267 = vmax.f32 %v2139, %v2235
      %v2268 = vmax.f32 %v2140, %v2236
      %v2269 = vmax.f32 %v2141, %v2237
      %v2270 = vmax.f32 %v2142, %v2238
      %v2271 = vmax.f32 %v2143, %v2239
      %v2272 = vmax.f32 %v2144, %v2240
      %v2273 = vmax.f32 %v2145, %v2241
      %v2274 = vmax.f32 %v2146, %v2242
      %v2275 = vmax.f32 %v2147, %v2243
      %v2276 = vmax.f32 %v2148, %v2244
      %v2277 = vmax.f32 %v2149, %v2245
      %v2278 = vmax.f32 %v2150, %v2246
      %v2279 = vmax.f32 %v2151, %v2247
      %v2280 = vmax.f32 %v2152, %v2248
      %v2281 = vmax.f32 %v2153, %v2249
      %v2282 = vmax.f32 %v2154, %v2250
      %v2283 = vmax.f32 %v2155, %v2251
      %v2284 = vmax.f32 %v2156, %v2252
      %v2285 = vmax.f32 %v2157, %v2253
      %v2286 = vrot.slane %v1998, 2
      %v2287 = vrot.slane %v2000, 2
      %v2288 = vrot.slane %v2002, 2
      %v2289 = vrot.slane %v2004, 2
      %v2290 = vrot.slane %v2006, 2
      %v2291 = vrot.slane %v2008, 2
      %v2292 = vrot.slane %v2010, 2
      %v2293 = vrot.slane %v2012, 2
      %v2294 = vrot.slane %v2014, 2
      %v2295 = vrot.slane %v2016, 2
      %v2296 = vrot.slane %v2018, 2
      %v2297 = vrot.slane %v2020, 2
      %v2298 = vrot.slane %v2022, 2
      %v2299 = vrot.slane %v2024, 2
      %v2300 = vrot.slane %v2026, 2
      %v2301 = vrot.slane %v2028, 2
      %v2302 = vrot.slane %v1999, 2
      %v2303 = vrot.slane %v2001, 2
      %v2304 = vrot.slane %v2003, 2
      %v2305 = vrot.slane %v2005, 2
      %v2306 = vrot.slane %v2007, 2
      %v2307 = vrot.slane %v2009, 2
      %v2308 = vrot.slane %v2011, 2
      %v2309 = vrot.slane %v2013, 2
      %v2310 = vrot.slane %v2015, 2
      %v2311 = vrot.slane %v2017, 2
      %v2312 = vrot.slane %v2019, 2
      %v2313 = vrot.slane %v2021, 2
      %v2314 = vrot.slane %v2023, 2
      %v2315 = vrot.slane %v2025, 2
      %v2316 = vrot.slane %v2027, 2
      %v2317 = vrot.slane %v2029, 2
      %v2318 = vsel %vm648, %v2286, %v2302
      %v2319 = vsel %vm648, %v2287, %v2303
      %v2320 = vsel %vm648, %v2288, %v2304
      %v2321 = vsel %vm648, %v2289, %v2305
      %v2322 = vsel %vm648, %v2290, %v2306
      %v2323 = vsel %vm648, %v2291, %v2307
      %v2324 = vsel %vm648, %v2292, %v2308
      %v2325 = vsel %vm648, %v2293, %v2309
      %v2326 = vsel %vm648, %v2294, %v2310
      %v2327 = vsel %vm648, %v2295, %v2311
      %v2328 = vsel %vm648, %v2296, %v2312
      %v2329 = vsel %vm648, %v2297, %v2313
      %v2330 = vsel %vm648, %v2298, %v2314
      %v2331 = vsel %vm648, %v2299, %v2315
      %v2332 = vsel %vm648, %v2300, %v2316
      %v2333 = vsel %vm648, %v2301, %v2317
      %v2334 = vsel %vm648, %v2302, %v2286
      %v2335 = vsel %vm648, %v2303, %v2287
      %v2336 = vsel %vm648, %v2304, %v2288
      %v2337 = vsel %vm648, %v2305, %v2289
      %v2338 = vsel %vm648, %v2306, %v2290
      %v2339 = vsel %vm648, %v2307, %v2291
      %v2340 = vsel %vm648, %v2308, %v2292
      %v2341 = vsel %vm648, %v2309, %v2293
      %v2342 = vsel %vm648, %v2310, %v2294
      %v2343 = vsel %vm648, %v2311, %v2295
      %v2344 = vsel %vm648, %v2312, %v2296
      %v2345 = vsel %vm648, %v2313, %v2297
      %v2346 = vsel %vm648, %v2314, %v2298
      %v2347 = vsel %vm648, %v2315, %v2299
      %v2348 = vsel %vm648, %v2316, %v2300
      %v2349 = vsel %vm648, %v2317, %v2301
      %v2350 = vsel %vm322, %v2318, -inf
      %v2351 = vsel %vm323, %v2334, -inf
      %v2352 = vsel %vm322, %v2319, -inf
      %v2353 = vsel %vm323, %v2335, -inf
      %v2354 = vsel %vm322, %v2320, -inf
      %v2355 = vsel %vm323, %v2336, -inf
      %v2356 = vsel %vm322, %v2321, -inf
      %v2357 = vsel %vm323, %v2337, -inf
      %v2358 = vsel %vm322, %v2322, -inf
      %v2359 = vsel %vm323, %v2338, -inf
      %v2360 = vsel %vm322, %v2323, -inf
      %v2361 = vsel %vm323, %v2339, -inf
      %v2362 = vsel %vm322, %v2324, -inf
      %v2363 = vsel %vm323, %v2340, -inf
      %v2364 = vsel %vm322, %v2325, -inf
      %v2365 = vsel %vm323, %v2341, -inf
      %v2366 = vsel %vm322, %v2326, -inf
      %v2367 = vsel %vm323, %v2342, -inf
      %v2368 = vsel %vm322, %v2327, -inf
      %v2369 = vsel %vm323, %v2343, -inf
      %v2370 = vsel %vm322, %v2328, -inf
      %v2371 = vsel %vm323, %v2344, -inf
      %v2372 = vsel %vm322, %v2329, -inf
      %v2373 = vsel %vm323, %v2345, -inf
      %v2374 = vsel %vm322, %v2330, -inf
      %v2375 = vsel %vm323, %v2346, -inf
      %v2376 = vsel %vm322, %v2331, -inf
      %v2377 = vsel %vm323, %v2347, -inf
      %v2378 = vsel %vm322, %v2332, -inf
      %v2379 = vsel %vm323, %v2348, -inf
      %v2380 = vsel %vm322, %v2333, -inf
      %v2381 = vsel %vm323, %v2349, -inf
      %v2382 = vmax.f32 %v2254, %v2350
      %v2383 = vmax.f32 %v2255, %v2351
      %v2384 = vmax.f32 %v2256, %v2352
      %v2385 = vmax.f32 %v2257, %v2353
      %v2386 = vmax.f32 %v2258, %v2354
      %v2387 = vmax.f32 %v2259, %v2355
      %v2388 = vmax.f32 %v2260, %v2356
      %v2389 = vmax.f32 %v2261, %v2357
      %v2390 = vmax.f32 %v2262, %v2358
      %v2391 = vmax.f32 %v2263, %v2359
      %v2392 = vmax.f32 %v2264, %v2360
      %v2393 = vmax.f32 %v2265, %v2361
      %v2394 = vmax.f32 %v2266, %v2362
      %v2395 = vmax.f32 %v2267, %v2363
      %v2396 = vmax.f32 %v2268, %v2364
      %v2397 = vmax.f32 %v2269, %v2365
      %v2398 = vmax.f32 %v2270, %v2366
      %v2399 = vmax.f32 %v2271, %v2367
      %v2400 = vmax.f32 %v2272, %v2368
      %v2401 = vmax.f32 %v2273, %v2369
      %v2402 = vmax.f32 %v2274, %v2370
      %v2403 = vmax.f32 %v2275, %v2371
      %v2404 = vmax.f32 %v2276, %v2372
      %v2405 = vmax.f32 %v2277, %v2373
      %v2406 = vmax.f32 %v2278, %v2374
      %v2407 = vmax.f32 %v2279, %v2375
      %v2408 = vmax.f32 %v2280, %v2376
      %v2409 = vmax.f32 %v2281, %v2377
      %v2410 = vmax.f32 %v2282, %v2378
      %v2411 = vmax.f32 %v2283, %v2379
      %v2412 = vmax.f32 %v2284, %v2380
      %v2413 = vmax.f32 %v2285, %v2381
      %v2414 = vrot.slane %v1998, 1
      %v2415 = vrot.slane %v2000, 1
      %v2416 = vrot.slane %v2002, 1
      %v2417 = vrot.slane %v2004, 1
      %v2418 = vrot.slane %v2006, 1
      %v2419 = vrot.slane %v2008, 1
      %v2420 = vrot.slane %v2010, 1
      %v2421 = vrot.slane %v2012, 1
      %v2422 = vrot.slane %v2014, 1
      %v2423 = vrot.slane %v2016, 1
      %v2424 = vrot.slane %v2018, 1
      %v2425 = vrot.slane %v2020, 1
      %v2426 = vrot.slane %v2022, 1
      %v2427 = vrot.slane %v2024, 1
      %v2428 = vrot.slane %v2026, 1
      %v2429 = vrot.slane %v2028, 1
      %v2430 = vrot.slane %v1999, 1
      %v2431 = vrot.slane %v2001, 1
      %v2432 = vrot.slane %v2003, 1
      %v2433 = vrot.slane %v2005, 1
      %v2434 = vrot.slane %v2007, 1
      %v2435 = vrot.slane %v2009, 1
      %v2436 = vrot.slane %v2011, 1
      %v2437 = vrot.slane %v2013, 1
      %v2438 = vrot.slane %v2015, 1
      %v2439 = vrot.slane %v2017, 1
      %v2440 = vrot.slane %v2019, 1
      %v2441 = vrot.slane %v2021, 1
      %v2442 = vrot.slane %v2023, 1
      %v2443 = vrot.slane %v2025, 1
      %v2444 = vrot.slane %v2027, 1
      %v2445 = vrot.slane %v2029, 1
      %v2446 = vsel %vm777, %v2414, %v2430
      %v2447 = vsel %vm777, %v2415, %v2431
      %v2448 = vsel %vm777, %v2416, %v2432
      %v2449 = vsel %vm777, %v2417, %v2433
      %v2450 = vsel %vm777, %v2418, %v2434
      %v2451 = vsel %vm777, %v2419, %v2435
      %v2452 = vsel %vm777, %v2420, %v2436
      %v2453 = vsel %vm777, %v2421, %v2437
      %v2454 = vsel %vm777, %v2422, %v2438
      %v2455 = vsel %vm777, %v2423, %v2439
      %v2456 = vsel %vm777, %v2424, %v2440
      %v2457 = vsel %vm777, %v2425, %v2441
      %v2458 = vsel %vm777, %v2426, %v2442
      %v2459 = vsel %vm777, %v2427, %v2443
      %v2460 = vsel %vm777, %v2428, %v2444
      %v2461 = vsel %vm777, %v2429, %v2445
      %v2462 = vsel %vm777, %v2430, %v2414
      %v2463 = vsel %vm777, %v2431, %v2415
      %v2464 = vsel %vm777, %v2432, %v2416
      %v2465 = vsel %vm777, %v2433, %v2417
      %v2466 = vsel %vm777, %v2434, %v2418
      %v2467 = vsel %vm777, %v2435, %v2419
      %v2468 = vsel %vm777, %v2436, %v2420
      %v2469 = vsel %vm777, %v2437, %v2421
      %v2470 = vsel %vm777, %v2438, %v2422
      %v2471 = vsel %vm777, %v2439, %v2423
      %v2472 = vsel %vm777, %v2440, %v2424
      %v2473 = vsel %vm777, %v2441, %v2425
      %v2474 = vsel %vm777, %v2442, %v2426
      %v2475 = vsel %vm777, %v2443, %v2427
      %v2476 = vsel %vm777, %v2444, %v2428
      %v2477 = vsel %vm777, %v2445, %v2429
      %v2478 = vsel %vm324, %v2446, -inf
      %v2479 = vsel %vm325, %v2462, -inf
      %v2480 = vsel %vm324, %v2447, -inf
      %v2481 = vsel %vm325, %v2463, -inf
      %v2482 = vsel %vm324, %v2448, -inf
      %v2483 = vsel %vm325, %v2464, -inf
      %v2484 = vsel %vm324, %v2449, -inf
      %v2485 = vsel %vm325, %v2465, -inf
      %v2486 = vsel %vm324, %v2450, -inf
      %v2487 = vsel %vm325, %v2466, -inf
      %v2488 = vsel %vm324, %v2451, -inf
      %v2489 = vsel %vm325, %v2467, -inf
      %v2490 = vsel %vm324, %v2452, -inf
      %v2491 = vsel %vm325, %v2468, -inf
      %v2492 = vsel %vm324, %v2453, -inf
      %v2493 = vsel %vm325, %v2469, -inf
      %v2494 = vsel %vm324, %v2454, -inf
      %v2495 = vsel %vm325, %v2470, -inf
      %v2496 = vsel %vm324, %v2455, -inf
      %v2497 = vsel %vm325, %v2471, -inf
      %v2498 = vsel %vm324, %v2456, -inf
      %v2499 = vsel %vm325, %v2472, -inf
      %v2500 = vsel %vm324, %v2457, -inf
      %v2501 = vsel %vm325, %v2473, -inf
      %v2502 = vsel %vm324, %v2458, -inf
      %v2503 = vsel %vm325, %v2474, -inf
      %v2504 = vsel %vm324, %v2459, -inf
      %v2505 = vsel %vm325, %v2475, -inf
      %v2506 = vsel %vm324, %v2460, -inf
      %v2507 = vsel %vm325, %v2476, -inf
      %v2508 = vsel %vm324, %v2461, -inf
      %v2509 = vsel %vm325, %v2477, -inf
      %v2510 = vmax.f32 %v2382, %v2478
      %v2511 = vmax.f32 %v2383, %v2479
      %v2512 = vmax.f32 %v2384, %v2480
      %v2513 = vmax.f32 %v2385, %v2481
      %v2514 = vmax.f32 %v2386, %v2482
      %v2515 = vmax.f32 %v2387, %v2483
      %v2516 = vmax.f32 %v2388, %v2484
      %v2517 = vmax.f32 %v2389, %v2485
      %v2518 = vmax.f32 %v2390, %v2486
      %v2519 = vmax.f32 %v2391, %v2487
      %v2520 = vmax.f32 %v2392, %v2488
      %v2521 = vmax.f32 %v2393, %v2489
      %v2522 = vmax.f32 %v2394, %v2490
      %v2523 = vmax.f32 %v2395, %v2491
      %v2524 = vmax.f32 %v2396, %v2492
      %v2525 = vmax.f32 %v2397, %v2493
      %v2526 = vmax.f32 %v2398, %v2494
      %v2527 = vmax.f32 %v2399, %v2495
      %v2528 = vmax.f32 %v2400, %v2496
      %v2529 = vmax.f32 %v2401, %v2497
      %v2530 = vmax.f32 %v2402, %v2498
      %v2531 = vmax.f32 %v2403, %v2499
      %v2532 = vmax.f32 %v2404, %v2500
      %v2533 = vmax.f32 %v2405, %v2501
      %v2534 = vmax.f32 %v2406, %v2502
      %v2535 = vmax.f32 %v2407, %v2503
      %v2536 = vmax.f32 %v2408, %v2504
      %v2537 = vmax.f32 %v2409, %v2505
      %v2538 = vmax.f32 %v2410, %v2506
      %v2539 = vmax.f32 %v2411, %v2507
      %v2540 = vmax.f32 %v2412, %v2508
      %v2541 = vmax.f32 %v2413, %v2509
      %2542 = vst.msk [vmem:[%s874] sm:$0xff] %vm305, %v2510
      %2543 = vst.msk [vmem:[%s874 + $0x8] sm:$0xff] %vm305, %v2511
      %2544 = vst.msk [vmem:[%s874 + $0x10] sm:$0xff] %vm305, %v2512
      %2545 = vst.msk [vmem:[%s874 + $0x18] sm:$0xff] %vm305, %v2513
      %2546 = vst.msk [vmem:[%s874 + $0x20] sm:$0xff] %vm305, %v2514
      %2547 = vst.msk [vmem:[%s874 + $0x28] sm:$0xff] %vm305, %v2515
      %2548 = vst.msk [vmem:[%s874 + $0x30] sm:$0xff] %vm305, %v2516
      %2549 = vst.msk [vmem:[%s874 + $0x38] sm:$0xff] %vm305, %v2517
      %2550 = vst.msk [vmem:[%s874 + $0x40] sm:$0xff] %vm305, %v2518
      %2551 = vst.msk [vmem:[%s874 + $0x48] sm:$0xff] %vm305, %v2519
      %2552 = vst.msk [vmem:[%s874 + $0x50] sm:$0xff] %vm305, %v2520
      %2553 = vst.msk [vmem:[%s874 + $0x58] sm:$0xff] %vm305, %v2521
      %2554 = vst.msk [vmem:[%s874 + $0x60] sm:$0xff] %vm305, %v2522
      %2555 = vst.msk [vmem:[%s874 + $0x68] sm:$0xff] %vm305, %v2523
      %2556 = vst.msk [vmem:[%s874 + $0x70] sm:$0xff] %vm305, %v2524
      %2557 = vst.msk [vmem:[%s874 + $0x78] sm:$0xff] %vm305, %v2525
      %2558 = vst.msk [vmem:[%s874 + $0x80] sm:$0xff] %vm305, %v2526
      %2559 = vst.msk [vmem:[%s874 + $0x88] sm:$0xff] %vm305, %v2527
      %2560 = vst.msk [vmem:[%s874 + $0x90] sm:$0xff] %vm305, %v2528
      %2561 = vst.msk [vmem:[%s874 + $0x98] sm:$0xff] %vm305, %v2529
      %2562 = vst.msk [vmem:[%s874 + $0xa0] sm:$0xff] %vm305, %v2530
      %2563 = vst.msk [vmem:[%s874 + $0xa8] sm:$0xff] %vm305, %v2531
      %2564 = vst.msk [vmem:[%s874 + $0xb0] sm:$0xff] %vm305, %v2532
      %2565 = vst.msk [vmem:[%s874 + $0xb8] sm:$0xff] %vm305, %v2533
      %2566 = vst.msk [vmem:[%s874 + $0xc0] sm:$0xff] %vm305, %v2534
      %2567 = vst.msk [vmem:[%s874 + $0xc8] sm:$0xff] %vm305, %v2535
      %2568 = vst.msk [vmem:[%s874 + $0xd0] sm:$0xff] %vm305, %v2536
      %2569 = vst.msk [vmem:[%s874 + $0xd8] sm:$0xff] %vm305, %v2537
      %2570 = vst.msk [vmem:[%s874 + $0xe0] sm:$0xff] %vm305, %v2538
      %2571 = vst.msk [vmem:[%s874 + $0xe8] sm:$0xff] %vm305, %v2539
      %2572 = vst.msk [vmem:[%s874 + $0xf0] sm:$0xff] %vm305, %v2540
      %2573 = vst.msk [vmem:[%s874 + $0xf8] sm:$0xff] %vm305, %v2541
      %v2574 = vld [vmem:[#allocation3] sm:$0xff]
      %v2575 = vld [vmem:[#allocation3 + $0x8] sm:$0xff]
      %v2576 = vld [vmem:[#allocation3 + $0x10] sm:$0xff]
      %v2577 = vld [vmem:[#allocation3 + $0x18] sm:$0xff]
      %v2578 = vld [vmem:[#allocation3 + $0x20] sm:$0xff]
      %v2579 = vld [vmem:[#allocation3 + $0x28] sm:$0xff]
      %v2580 = vld [vmem:[#allocation3 + $0x30] sm:$0xff]
      %v2581 = vld [vmem:[#allocation3 + $0x38] sm:$0xff]
      %v2582 = vld [vmem:[#allocation3 + $0x40] sm:$0xff]
      %v2583 = vld [vmem:[#allocation3 + $0x48] sm:$0xff]
      %v2584 = vld [vmem:[#allocation3 + $0x50] sm:$0xff]
      %v2585 = vld [vmem:[#allocation3 + $0x58] sm:$0xff]
      %v2586 = vld [vmem:[#allocation3 + $0x60] sm:$0xff]
      %v2587 = vld [vmem:[#allocation3 + $0x68] sm:$0xff]
      %v2588 = vld [vmem:[#allocation3 + $0x70] sm:$0xff]
      %v2589 = vld [vmem:[#allocation3 + $0x78] sm:$0xff]
      %v2590 = vld [vmem:[#allocation3 + $0x80] sm:$0xff]
      %v2591 = vld [vmem:[#allocation3 + $0x88] sm:$0xff]
      %v2592 = vld [vmem:[#allocation3 + $0x90] sm:$0xff]
      %v2593 = vld [vmem:[#allocation3 + $0x98] sm:$0xff]
      %v2594 = vld [vmem:[#allocation3 + $0xa0] sm:$0xff]
      %v2595 = vld [vmem:[#allocation3 + $0xa8] sm:$0xff]
      %v2596 = vld [vmem:[#allocation3 + $0xb0] sm:$0xff]
      %v2597 = vld [vmem:[#allocation3 + $0xb8] sm:$0xff]
      %v2598 = vld [vmem:[#allocation3 + $0xc0] sm:$0xff]
      %v2599 = vld [vmem:[#allocation3 + $0xc8] sm:$0xff]
      %v2600 = vld [vmem:[#allocation3 + $0xd0] sm:$0xff]
      %v2601 = vld [vmem:[#allocation3 + $0xd8] sm:$0xff]
      %v2602 = vld [vmem:[#allocation3 + $0xe0] sm:$0xff]
      %v2603 = vld [vmem:[#allocation3 + $0xe8] sm:$0xff]
      %v2604 = vld [vmem:[#allocation3 + $0xf0] sm:$0xff]
      %v2605 = vld [vmem:[#allocation3 + $0xf8] sm:$0xff]
      %v2606 = vld [vmem:[%s939] sm:$0xff]
      %v2607 = vld [vmem:[%s939 + $0x8] sm:$0xff]
      %v2608 = vld [vmem:[%s939 + $0x10] sm:$0xff]
      %v2609 = vld [vmem:[%s939 + $0x18] sm:$0xff]
      %v2610 = vld [vmem:[%s939 + $0x20] sm:$0xff]
      %v2611 = vld [vmem:[%s939 + $0x28] sm:$0xff]
      %v2612 = vld [vmem:[%s939 + $0x30] sm:$0xff]
      %v2613 = vld [vmem:[%s939 + $0x38] sm:$0xff]
      %v2614 = vld [vmem:[%s939 + $0x40] sm:$0xff]
      %v2615 = vld [vmem:[%s939 + $0x48] sm:$0xff]
      %v2616 = vld [vmem:[%s939 + $0x50] sm:$0xff]
      %v2617 = vld [vmem:[%s939 + $0x58] sm:$0xff]
      %v2618 = vld [vmem:[%s939 + $0x60] sm:$0xff]
      %v2619 = vld [vmem:[%s939 + $0x68] sm:$0xff]
      %v2620 = vld [vmem:[%s939 + $0x70] sm:$0xff]
      %v2621 = vld [vmem:[%s939 + $0x78] sm:$0xff]
      %v2622 = vld [vmem:[%s939 + $0x80] sm:$0xff]
      %v2623 = vld [vmem:[%s939 + $0x88] sm:$0xff]
      %v2624 = vld [vmem:[%s939 + $0x90] sm:$0xff]
      %v2625 = vld [vmem:[%s939 + $0x98] sm:$0xff]
      %v2626 = vld [vmem:[%s939 + $0xa0] sm:$0xff]
      %v2627 = vld [vmem:[%s939 + $0xa8] sm:$0xff]
      %v2628 = vld [vmem:[%s939 + $0xb0] sm:$0xff]
      %v2629 = vld [vmem:[%s939 + $0xb8] sm:$0xff]
      %v2630 = vld [vmem:[%s939 + $0xc0] sm:$0xff]
      %v2631 = vld [vmem:[%s939 + $0xc8] sm:$0xff]
      %v2632 = vld [vmem:[%s939 + $0xd0] sm:$0xff]
      %v2633 = vld [vmem:[%s939 + $0xd8] sm:$0xff]
      %v2634 = vld [vmem:[%s939 + $0xe0] sm:$0xff]
      %v2635 = vld [vmem:[%s939 + $0xe8] sm:$0xff]
      %v2636 = vld [vmem:[%s939 + $0xf0] sm:$0xff]
      %v2637 = vld [vmem:[%s939 + $0xf8] sm:$0xff]
      %v2638 = vmax.f32 %v2574, %v2606
      %v2639 = vmax.f32 %v2575, %v2607
      %v2640 = vmax.f32 %v2576, %v2608
      %v2641 = vmax.f32 %v2577, %v2609
      %v2642 = vmax.f32 %v2578, %v2610
      %v2643 = vmax.f32 %v2579, %v2611
      %v2644 = vmax.f32 %v2580, %v2612
      %v2645 = vmax.f32 %v2581, %v2613
      %v2646 = vmax.f32 %v2582, %v2614
      %v2647 = vmax.f32 %v2583, %v2615
      %v2648 = vmax.f32 %v2584, %v2616
      %v2649 = vmax.f32 %v2585, %v2617
      %v2650 = vmax.f32 %v2586, %v2618
      %v2651 = vmax.f32 %v2587, %v2619
      %v2652 = vmax.f32 %v2588, %v2620
      %v2653 = vmax.f32 %v2589, %v2621
      %v2654 = vmax.f32 %v2590, %v2622
      %v2655 = vmax.f32 %v2591, %v2623
      %v2656 = vmax.f32 %v2592, %v2624
      %v2657 = vmax.f32 %v2593, %v2625
      %v2658 = vmax.f32 %v2594, %v2626
      %v2659 = vmax.f32 %v2595, %v2627
      %v2660 = vmax.f32 %v2596, %v2628
      %v2661 = vmax.f32 %v2597, %v2629
      %v2662 = vmax.f32 %v2598, %v2630
      %v2663 = vmax.f32 %v2599, %v2631
      %v2664 = vmax.f32 %v2600, %v2632
      %v2665 = vmax.f32 %v2601, %v2633
      %v2666 = vmax.f32 %v2602, %v2634
      %v2667 = vmax.f32 %v2603, %v2635
      %v2668 = vmax.f32 %v2604, %v2636
      %v2669 = vmax.f32 %v2605, %v2637
      %v2670 = vld [vmem:[%s874] sm:$0xff]
      %v2671 = vld [vmem:[%s874 + $0x8] sm:$0xff]
      %v2672 = vld [vmem:[%s874 + $0x10] sm:$0xff]
      %v2673 = vld [vmem:[%s874 + $0x18] sm:$0xff]
      %v2674 = vld [vmem:[%s874 + $0x20] sm:$0xff]
      %v2675 = vld [vmem:[%s874 + $0x28] sm:$0xff]
      %v2676 = vld [vmem:[%s874 + $0x30] sm:$0xff]
      %v2677 = vld [vmem:[%s874 + $0x38] sm:$0xff]
      %v2678 = vld [vmem:[%s874 + $0x40] sm:$0xff]
      %v2679 = vld [vmem:[%s874 + $0x48] sm:$0xff]
      %v2680 = vld [vmem:[%s874 + $0x50] sm:$0xff]
      %v2681 = vld [vmem:[%s874 + $0x58] sm:$0xff]
      %v2682 = vld [vmem:[%s874 + $0x60] sm:$0xff]
      %v2683 = vld [vmem:[%s874 + $0x68] sm:$0xff]
      %v2684 = vld [vmem:[%s874 + $0x70] sm:$0xff]
      %v2685 = vld [vmem:[%s874 + $0x78] sm:$0xff]
      %v2686 = vld [vmem:[%s874 + $0x80] sm:$0xff]
      %v2687 = vld [vmem:[%s874 + $0x88] sm:$0xff]
      %v2688 = vld [vmem:[%s874 + $0x90] sm:$0xff]
      %v2689 = vld [vmem:[%s874 + $0x98] sm:$0xff]
      %v2690 = vld [vmem:[%s874 + $0xa0] sm:$0xff]
      %v2691 = vld [vmem:[%s874 + $0xa8] sm:$0xff]
      %v2692 = vld [vmem:[%s874 + $0xb0] sm:$0xff]
      %v2693 = vld [vmem:[%s874 + $0xb8] sm:$0xff]
      %v2694 = vld [vmem:[%s874 + $0xc0] sm:$0xff]
      %v2695 = vld [vmem:[%s874 + $0xc8] sm:$0xff]
      %v2696 = vld [vmem:[%s874 + $0xd0] sm:$0xff]
      %v2697 = vld [vmem:[%s874 + $0xd8] sm:$0xff]
      %v2698 = vld [vmem:[%s874 + $0xe0] sm:$0xff]
      %v2699 = vld [vmem:[%s874 + $0xe8] sm:$0xff]
      %v2700 = vld [vmem:[%s874 + $0xf0] sm:$0xff]
      %v2701 = vld [vmem:[%s874 + $0xf8] sm:$0xff]
      %v2702 = vmax.f32 %v2638, %v2670
      %v2703 = vmax.f32 %v2639, %v2671
      %v2704 = vmax.f32 %v2640, %v2672
      %v2705 = vmax.f32 %v2641, %v2673
      %v2706 = vmax.f32 %v2642, %v2674
      %v2707 = vmax.f32 %v2643, %v2675
      %v2708 = vmax.f32 %v2644, %v2676
      %v2709 = vmax.f32 %v2645, %v2677
      %v2710 = vmax.f32 %v2646, %v2678
      %v2711 = vmax.f32 %v2647, %v2679
      %v2712 = vmax.f32 %v2648, %v2680
      %v2713 = vmax.f32 %v2649, %v2681
      %v2714 = vmax.f32 %v2650, %v2682
      %v2715 = vmax.f32 %v2651, %v2683
      %v2716 = vmax.f32 %v2652, %v2684
      %v2717 = vmax.f32 %v2653, %v2685
      %v2718 = vmax.f32 %v2654, %v2686
      %v2719 = vmax.f32 %v2655, %v2687
      %v2720 = vmax.f32 %v2656, %v2688
      %v2721 = vmax.f32 %v2657, %v2689
      %v2722 = vmax.f32 %v2658, %v2690
      %v2723 = vmax.f32 %v2659, %v2691
      %v2724 = vmax.f32 %v2660, %v2692
      %v2725 = vmax.f32 %v2661, %v2693
      %v2726 = vmax.f32 %v2662, %v2694
      %v2727 = vmax.f32 %v2663, %v2695
      %v2728 = vmax.f32 %v2664, %v2696
      %v2729 = vmax.f32 %v2665, %v2697
      %v2730 = vmax.f32 %v2666, %v2698
      %v2731 = vmax.f32 %v2667, %v2699
      %v2732 = vmax.f32 %v2668, %v2700
      %v2733 = vmax.f32 %v2669, %v2701
      %v2734 = vld [vmem:[%s1068] sm:$0xff]
      %v2735 = vld [vmem:[%s1068 + $0x8] sm:$0xff]
      %v2736 = vld [vmem:[%s1068 + $0x10] sm:$0xff]
      %v2737 = vld [vmem:[%s1068 + $0x18] sm:$0xff]
      %v2738 = vld [vmem:[%s1068 + $0x20] sm:$0xff]
      %v2739 = vld [vmem:[%s1068 + $0x28] sm:$0xff]
      %v2740 = vld [vmem:[%s1068 + $0x30] sm:$0xff]
      %v2741 = vld [vmem:[%s1068 + $0x38] sm:$0xff]
      %v2742 = vld [vmem:[%s1068 + $0x40] sm:$0xff]
      %v2743 = vld [vmem:[%s1068 + $0x48] sm:$0xff]
      %v2744 = vld [vmem:[%s1068 + $0x50] sm:$0xff]
      %v2745 = vld [vmem:[%s1068 + $0x58] sm:$0xff]
      %v2746 = vld [vmem:[%s1068 + $0x60] sm:$0xff]
      %v2747 = vld [vmem:[%s1068 + $0x68] sm:$0xff]
      %v2748 = vld [vmem:[%s1068 + $0x70] sm:$0xff]
      %v2749 = vld [vmem:[%s1068 + $0x78] sm:$0xff]
      %v2750 = vld [vmem:[%s1068 + $0x80] sm:$0xff]
      %v2751 = vld [vmem:[%s1068 + $0x88] sm:$0xff]
      %v2752 = vld [vmem:[%s1068 + $0x90] sm:$0xff]
      %v2753 = vld [vmem:[%s1068 + $0x98] sm:$0xff]
      %v2754 = vld [vmem:[%s1068 + $0xa0] sm:$0xff]
      %v2755 = vld [vmem:[%s1068 + $0xa8] sm:$0xff]
      %v2756 = vld [vmem:[%s1068 + $0xb0] sm:$0xff]
      %v2757 = vld [vmem:[%s1068 + $0xb8] sm:$0xff]
      %v2758 = vld [vmem:[%s1068 + $0xc0] sm:$0xff]
      %v2759 = vld [vmem:[%s1068 + $0xc8] sm:$0xff]
      %v2760 = vld [vmem:[%s1068 + $0xd0] sm:$0xff]
      %v2761 = vld [vmem:[%s1068 + $0xd8] sm:$0xff]
      %v2762 = vld [vmem:[%s1068 + $0xe0] sm:$0xff]
      %v2763 = vld [vmem:[%s1068 + $0xe8] sm:$0xff]
      %v2764 = vld [vmem:[%s1068 + $0xf0] sm:$0xff]
      %v2765 = vld [vmem:[%s1068 + $0xf8] sm:$0xff]
      %v2766 = vmax.f32 %v2702, %v2734
      %v2767 = vmax.f32 %v2703, %v2735
      %v2768 = vmax.f32 %v2704, %v2736
      %v2769 = vmax.f32 %v2705, %v2737
      %v2770 = vmax.f32 %v2706, %v2738
      %v2771 = vmax.f32 %v2707, %v2739
      %v2772 = vmax.f32 %v2708, %v2740
      %v2773 = vmax.f32 %v2709, %v2741
      %v2774 = vmax.f32 %v2710, %v2742
      %v2775 = vmax.f32 %v2711, %v2743
      %v2776 = vmax.f32 %v2712, %v2744
      %v2777 = vmax.f32 %v2713, %v2745
      %v2778 = vmax.f32 %v2714, %v2746
      %v2779 = vmax.f32 %v2715, %v2747
      %v2780 = vmax.f32 %v2716, %v2748
      %v2781 = vmax.f32 %v2717, %v2749
      %v2782 = vmax.f32 %v2718, %v2750
      %v2783 = vmax.f32 %v2719, %v2751
      %v2784 = vmax.f32 %v2720, %v2752
      %v2785 = vmax.f32 %v2721, %v2753
      %v2786 = vmax.f32 %v2722, %v2754
      %v2787 = vmax.f32 %v2723, %v2755
      %v2788 = vmax.f32 %v2724, %v2756
      %v2789 = vmax.f32 %v2725, %v2757
      %v2790 = vmax.f32 %v2726, %v2758
      %v2791 = vmax.f32 %v2727, %v2759
      %v2792 = vmax.f32 %v2728, %v2760
      %v2793 = vmax.f32 %v2729, %v2761
      %v2794 = vmax.f32 %v2730, %v2762
      %v2795 = vmax.f32 %v2731, %v2763
      %v2796 = vmax.f32 %v2732, %v2764
      %v2797 = vmax.f32 %v2733, %v2765
      %v2798 = vld [vmem:[%s1133] sm:$0xff]
      %v2799 = vld [vmem:[%s1133 + $0x8] sm:$0xff]
      %v2800 = vld [vmem:[%s1133 + $0x10] sm:$0xff]
      %v2801 = vld [vmem:[%s1133 + $0x18] sm:$0xff]
      %v2802 = vld [vmem:[%s1133 + $0x20] sm:$0xff]
      %v2803 = vld [vmem:[%s1133 + $0x28] sm:$0xff]
      %v2804 = vld [vmem:[%s1133 + $0x30] sm:$0xff]
      %v2805 = vld [vmem:[%s1133 + $0x38] sm:$0xff]
      %v2806 = vld [vmem:[%s1133 + $0x40] sm:$0xff]
      %v2807 = vld [vmem:[%s1133 + $0x48] sm:$0xff]
      %v2808 = vld [vmem:[%s1133 + $0x50] sm:$0xff]
      %v2809 = vld [vmem:[%s1133 + $0x58] sm:$0xff]
      %v2810 = vld [vmem:[%s1133 + $0x60] sm:$0xff]
      %v2811 = vld [vmem:[%s1133 + $0x68] sm:$0xff]
      %v2812 = vld [vmem:[%s1133 + $0x70] sm:$0xff]
      %v2813 = vld [vmem:[%s1133 + $0x78] sm:$0xff]
      %v2814 = vld [vmem:[%s1133 + $0x80] sm:$0xff]
      %v2815 = vld [vmem:[%s1133 + $0x88] sm:$0xff]
      %v2816 = vld [vmem:[%s1133 + $0x90] sm:$0xff]
      %v2817 = vld [vmem:[%s1133 + $0x98] sm:$0xff]
      %v2818 = vld [vmem:[%s1133 + $0xa0] sm:$0xff]
      %v2819 = vld [vmem:[%s1133 + $0xa8] sm:$0xff]
      %v2820 = vld [vmem:[%s1133 + $0xb0] sm:$0xff]
      %v2821 = vld [vmem:[%s1133 + $0xb8] sm:$0xff]
      %v2822 = vld [vmem:[%s1133 + $0xc0] sm:$0xff]
      %v2823 = vld [vmem:[%s1133 + $0xc8] sm:$0xff]
      %v2824 = vld [vmem:[%s1133 + $0xd0] sm:$0xff]
      %v2825 = vld [vmem:[%s1133 + $0xd8] sm:$0xff]
      %v2826 = vld [vmem:[%s1133 + $0xe0] sm:$0xff]
      %v2827 = vld [vmem:[%s1133 + $0xe8] sm:$0xff]
      %v2828 = vld [vmem:[%s1133 + $0xf0] sm:$0xff]
      %v2829 = vld [vmem:[%s1133 + $0xf8] sm:$0xff]
      %v2830 = vmax.f32 %v2766, %v2798
      %v2831 = vmax.f32 %v2767, %v2799
      %v2832 = vmax.f32 %v2768, %v2800
      %v2833 = vmax.f32 %v2769, %v2801
      %v2834 = vmax.f32 %v2770, %v2802
      %v2835 = vmax.f32 %v2771, %v2803
      %v2836 = vmax.f32 %v2772, %v2804
      %v2837 = vmax.f32 %v2773, %v2805
      %v2838 = vmax.f32 %v2774, %v2806
      %v2839 = vmax.f32 %v2775, %v2807
      %v2840 = vmax.f32 %v2776, %v2808
      %v2841 = vmax.f32 %v2777, %v2809
      %v2842 = vmax.f32 %v2778, %v2810
      %v2843 = vmax.f32 %v2779, %v2811
      %v2844 = vmax.f32 %v2780, %v2812
      %v2845 = vmax.f32 %v2781, %v2813
      %v2846 = vmax.f32 %v2782, %v2814
      %v2847 = vmax.f32 %v2783, %v2815
      %v2848 = vmax.f32 %v2784, %v2816
      %v2849 = vmax.f32 %v2785, %v2817
      %v2850 = vmax.f32 %v2786, %v2818
      %v2851 = vmax.f32 %v2787, %v2819
      %v2852 = vmax.f32 %v2788, %v2820
      %v2853 = vmax.f32 %v2789, %v2821
      %v2854 = vmax.f32 %v2790, %v2822
      %v2855 = vmax.f32 %v2791, %v2823
      %v2856 = vmax.f32 %v2792, %v2824
      %v2857 = vmax.f32 %v2793, %v2825
      %v2858 = vmax.f32 %v2794, %v2826
      %v2859 = vmax.f32 %v2795, %v2827
      %v2860 = vmax.f32 %v2796, %v2828
      %v2861 = vmax.f32 %v2797, %v2829
      %v2862 = vld [vmem:[#allocation2] sm:$0xff]
      %v2863 = vld [vmem:[#allocation2 + $0x8] sm:$0xff]
      %v2864 = vld [vmem:[#allocation2 + $0x10] sm:$0xff]
      %v2865 = vld [vmem:[#allocation2 + $0x18] sm:$0xff]
      %v2866 = vld [vmem:[#allocation2 + $0x20] sm:$0xff]
      %v2867 = vld [vmem:[#allocation2 + $0x28] sm:$0xff]
      %v2868 = vld [vmem:[#allocation2 + $0x30] sm:$0xff]
      %v2869 = vld [vmem:[#allocation2 + $0x38] sm:$0xff]
      %v2870 = vld [vmem:[#allocation2 + $0x40] sm:$0xff]
      %v2871 = vld [vmem:[#allocation2 + $0x48] sm:$0xff]
      %v2872 = vld [vmem:[#allocation2 + $0x50] sm:$0xff]
      %v2873 = vld [vmem:[#allocation2 + $0x58] sm:$0xff]
      %v2874 = vld [vmem:[#allocation2 + $0x60] sm:$0xff]
      %v2875 = vld [vmem:[#allocation2 + $0x68] sm:$0xff]
      %v2876 = vld [vmem:[#allocation2 + $0x70] sm:$0xff]
      %v2877 = vld [vmem:[#allocation2 + $0x78] sm:$0xff]
      %v2878 = vld [vmem:[#allocation2 + $0x80] sm:$0xff]
      %v2879 = vld [vmem:[#allocation2 + $0x88] sm:$0xff]
      %v2880 = vld [vmem:[#allocation2 + $0x90] sm:$0xff]
      %v2881 = vld [vmem:[#allocation2 + $0x98] sm:$0xff]
      %v2882 = vld [vmem:[#allocation2 + $0xa0] sm:$0xff]
      %v2883 = vld [vmem:[#allocation2 + $0xa8] sm:$0xff]
      %v2884 = vld [vmem:[#allocation2 + $0xb0] sm:$0xff]
      %v2885 = vld [vmem:[#allocation2 + $0xb8] sm:$0xff]
      %v2886 = vld [vmem:[#allocation2 + $0xc0] sm:$0xff]
      %v2887 = vld [vmem:[#allocation2 + $0xc8] sm:$0xff]
      %v2888 = vld [vmem:[#allocation2 + $0xd0] sm:$0xff]
      %v2889 = vld [vmem:[#allocation2 + $0xd8] sm:$0xff]
      %v2890 = vld [vmem:[#allocation2 + $0xe0] sm:$0xff]
      %v2891 = vld [vmem:[#allocation2 + $0xe8] sm:$0xff]
      %v2892 = vld [vmem:[#allocation2 + $0xf0] sm:$0xff]
      %v2893 = vld [vmem:[#allocation2 + $0xf8] sm:$0xff]
      %v2894 = vld [vmem:[%s229] sm:$0x1]
      %v2895 = vpack.c.bf16 %v1167, %v1166
      %v2896 = vpack.c.bf16 %v1169, %v1168
      %v2897 = vpack.c.bf16 %v1171, %v1170
      %v2898 = vpack.c.bf16 %v1173, %v1172
      %v2899 = vpack.c.bf16 %v1175, %v1174
      %v2900 = vpack.c.bf16 %v1177, %v1176
      %v2901 = vpack.c.bf16 %v1179, %v1178
      %v2902 = vpack.c.bf16 %v1181, %v1180
      %v2903 = vpack.c.bf16 %v1183, %v1182
      %v2904 = vpack.c.bf16 %v1185, %v1184
      %v2905 = vpack.c.bf16 %v1187, %v1186
      %v2906 = vpack.c.bf16 %v1189, %v1188
      %v2907 = vpack.c.bf16 %v1191, %v1190
      %v2908 = vpack.c.bf16 %v1193, %v1192
      %v2909 = vpack.c.bf16 %v1195, %v1194
      %v2910 = vpack.c.bf16 %v1197, %v1196
      %s2911 = scalar_lea.vmem %s229, 1
      %v2912 = vld [vmem:[%s2911] sm:$0x1]
      %v2914 = vsel %vm305, %v2895, 0
      %v2917 = vsel %vm305, %v2896, 0
      %v2920 = vsel %vm305, %v2897, 0
      %v2923 = vsel %vm305, %v2898, 0
      %v2926 = vsel %vm305, %v2899, 0
      %v2929 = vsel %vm305, %v2900, 0
      %v2932 = vsel %vm305, %v2901, 0
      %v2935 = vsel %vm305, %v2902, 0
      %v2938 = vsel %vm305, %v2903, 0
      %v2941 = vsel %vm305, %v2904, 0
      %v2944 = vsel %vm305, %v2905, 0
      %v2947 = vsel %vm305, %v2906, 0
      %v2950 = vsel %vm305, %v2907, 0
      %v2953 = vsel %vm305, %v2908, 0
      %v2956 = vsel %vm305, %v2909, 0
      %v2959 = vsel %vm305, %v2910, 0
      %vm2961 = vcmask 1040384
      %v2963 = vsel %vm2961, %v2912, 0
      %2965 = vmatprep.subr.bf16.mxu0 0
      %2966 = vmatpush1.bf16.msra.mxu0 %v2963
      %2967 = vmatprep.subr.bf16.mxu0 0
      %2968 = vmatpush1.bf16.msra.mxu0 0
      %2969 = vmatprep.subr.bf16.mxu0 0
      %2970 = vmatpush1.bf16.msra.mxu0 0
      %2971 = vmatprep.subr.bf16.mxu0 0
      %2972 = vmatpush1.bf16.msra.mxu0 0
      %2973 = vmatprep.subr.bf16.mxu0 0
      %2974 = vmatpush1.bf16.msra.mxu0 0
      %2975 = vmatprep.subr.bf16.mxu0 0
      %2976 = vmatpush1.bf16.msra.mxu0 0
      %2977 = vmatprep.subr.bf16.mxu0 0
      %2978 = vmatpush1.bf16.msra.mxu0 0
      %2979 = vmatprep.subr.bf16.mxu0 0
      %2980 = vmatpush1.bf16.msra.mxu0 0
      %2981 = vmatprep.subr.bf16.mxu0 0
      %2982 = vmatpush1.bf16.msra.mxu0 0
      %2983 = vmatprep.subr.bf16.mxu0 0
      %2984 = vmatpush1.bf16.msra.mxu0 0
      %2985 = vmatprep.subr.bf16.mxu0 0
      %2986 = vmatpush1.bf16.msra.mxu0 0
      %2987 = vmatprep.subr.bf16.mxu0 0
      %2988 = vmatpush1.bf16.msra.mxu0 0
      %2989 = vmatprep.subr.bf16.mxu0 0
      %2990 = vmatpush1.bf16.msra.mxu0 0
      %2991 = vmatprep.subr.bf16.mxu0 0
      %2992 = vmatpush1.bf16.msra.mxu0 0
      %2993 = vmatprep.subr.bf16.mxu0 0
      %2994 = vmatpush1.bf16.msra.mxu0 0
      %2995 = vmatprep.subr.bf16.mxu0 0
      %2996 = vmatpush1.bf16.msra.mxu0 0
      %2997 = vmatprep.mubr.bf16.mxu0 0
      %2998 = vmatmul.mubr.bf16.gmra.mrb[0].mxu0 %v2914
      %v2999 = vpop.f32.mrb[0].mxu0
      %v3000 = vadd.f32 0.0, %v2999
      %v3001 = vpop.f32.mrb[0].mxu0
      %v3002 = vpop.f32.mrb[0].mxu0
      %v3003 = vadd.f32 0.0, %v3002
      %v3004 = vpop.f32.mrb[0].mxu0
      %3005 = vmatprep.mubr.bf16.mxu0 0
      %3006 = vmatmul.mubr.bf16.gmra.mrb[0].mxu0 %v2917
      %v3007 = vpop.f32.mrb[0].mxu0
      %v3008 = vadd.f32 0.0, %v3007
      %v3009 = vpop.f32.mrb[0].mxu0
      %v3010 = vpop.f32.mrb[0].mxu0
      %v3011 = vadd.f32 0.0, %v3010
      %v3012 = vpop.f32.mrb[0].mxu0
      %3013 = vmatprep.mubr.bf16.mxu0 0
      %3014 = vmatmul.mubr.bf16.gmra.mrb[0].mxu0 %v2920
      %v3015 = vpop.f32.mrb[0].mxu0
      %v3016 = vadd.f32 0.0, %v3015
      %v3017 = vpop.f32.mrb[0].mxu0
      %v3018 = vpop.f32.mrb[0].mxu0
      %v3019 = vadd.f32 0.0, %v3018
      %v3020 = vpop.f32.mrb[0].mxu0
      %3021 = vmatprep.mubr.bf16.mxu0 0
      %3022 = vmatmul.mubr.bf16.gmra.mrb[0].mxu0 %v2923
      %v3023 = vpop.f32.mrb[0].mxu0
      %v3024 = vadd.f32 0.0, %v3023
      %v3025 = vpop.f32.mrb[0].mxu0
      %v3026 = vpop.f32.mrb[0].mxu0
      %v3027 = vadd.f32 0.0, %v3026
      %v3028 = vpop.f32.mrb[0].mxu0
      %3029 = vmatprep.mubr.bf16.mxu0 0
      %3030 = vmatmul.mubr.bf16.gmra.mrb[0].mxu0 %v2926
      %v3031 = vpop.f32.mrb[0].mxu0
      %v3032 = vadd.f32 0.0, %v3031
      %v3033 = vpop.f32.mrb[0].mxu0
      %v3034 = vpop.f32.mrb[0].mxu0
      %v3035 = vadd.f32 0.0, %v3034
      %v3036 = vpop.f32.mrb[0].mxu0
      %3037 = vmatprep.mubr.bf16.mxu0 0
      %3038 = vmatmul.mubr.bf16.gmra.mrb[0].mxu0 %v2929
      %v3039 = vpop.f32.mrb[0].mxu0
      %v3040 = vadd.f32 0.0, %v3039
      %v3041 = vpop.f32.mrb[0].mxu0
      %v3042 = vpop.f32.mrb[0].mxu0
      %v3043 = vadd.f32 0.0, %v3042
      %v3044 = vpop.f32.mrb[0].mxu0
      %3045 = vmatprep.mubr.bf16.mxu0 0
      %3046 = vmatmul.mubr.bf16.gmra.mrb[0].mxu0 %v2932
      %v3047 = vpop.f32.mrb[0].mxu0
      %v3048 = vadd.f32 0.0, %v3047
      %v3049 = vpop.f32.mrb[0].mxu0
      %v3050 = vpop.f32.mrb[0].mxu0
      %v3051 = vadd.f32 0.0, %v3050
      %v3052 = vpop.f32.mrb[0].mxu0
      %3053 = vmatprep.mubr.bf16.mxu0 0
      %3054 = vmatmul.mubr.bf16.gmra.mrb[0].mxu0 %v2935
      %v3055 = vpop.f32.mrb[0].mxu0
      %v3056 = vadd.f32 0.0, %v3055
      %v3057 = vpop.f32.mrb[0].mxu0
      %v3058 = vpop.f32.mrb[0].mxu0
      %v3059 = vadd.f32 0.0, %v3058
      %v3060 = vpop.f32.mrb[0].mxu0
      %3061 = vmatprep.mubr.bf16.mxu0 0
      %3062 = vmatmul.mubr.bf16.gmra.mrb[0].mxu0 %v2938
      %v3063 = vpop.f32.mrb[0].mxu0
      %v3064 = vadd.f32 0.0, %v3063
      %v3065 = vpop.f32.mrb[0].mxu0
      %v3066 = vpop.f32.mrb[0].mxu0
      %v3067 = vadd.f32 0.0, %v3066
      %v3068 = vpop.f32.mrb[0].mxu0
      %3069 = vmatprep.mubr.bf16.mxu0 0
      %3070 = vmatmul.mubr.bf16.gmra.mrb[0].mxu0 %v2941
      %v3071 = vpop.f32.mrb[0].mxu0
      %v3072 = vadd.f32 0.0, %v3071
      %v3073 = vpop.f32.mrb[0].mxu0
      %v3074 = vpop.f32.mrb[0].mxu0
      %v3075 = vadd.f32 0.0, %v3074
      %v3076 = vpop.f32.mrb[0].mxu0
      %3077 = vmatprep.mubr.bf16.mxu0 0
      %3078 = vmatmul.mubr.bf16.gmra.mrb[0].mxu0 %v2944
      %v3079 = vpop.f32.mrb[0].mxu0
      %v3080 = vadd.f32 0.0, %v3079
      %v3081 = vpop.f32.mrb[0].mxu0
      %v3082 = vpop.f32.mrb[0].mxu0
      %v3083 = vadd.f32 0.0, %v3082
      %v3084 = vpop.f32.mrb[0].mxu0
      %3085 = vmatprep.mubr.bf16.mxu0 0
      %3086 = vmatmul.mubr.bf16.gmra.mrb[0].mxu0 %v2947
      %v3087 = vpop.f32.mrb[0].mxu0
      %v3088 = vadd.f32 0.0, %v3087
      %v3089 = vpop.f32.mrb[0].mxu0
      %v3090 = vpop.f32.mrb[0].mxu0
      %v3091 = vadd.f32 0.0, %v3090
      %v3092 = vpop.f32.mrb[0].mxu0
      %3093 = vmatprep.mubr.bf16.mxu0 0
      %3094 = vmatmul.mubr.bf16.gmra.mrb[0].mxu0 %v2950
      %v3095 = vpop.f32.mrb[0].mxu0
      %v3096 = vadd.f32 0.0, %v3095
      %v3097 = vpop.f32.mrb[0].mxu0
      %v3098 = vpop.f32.mrb[0].mxu0
      %v3099 = vadd.f32 0.0, %v3098
      %v3100 = vpop.f32.mrb[0].mxu0
      %3101 = vmatprep.mubr.bf16.mxu0 0
      %3102 = vmatmul.mubr.bf16.gmra.mrb[0].mxu0 %v2953
      %v3103 = vpop.f32.mrb[0].mxu0
      %v3104 = vadd.f32 0.0, %v3103
      %v3105 = vpop.f32.mrb[0].mxu0
      %v3106 = vpop.f32.mrb[0].mxu0
      %v3107 = vadd.f32 0.0, %v3106
      %v3108 = vpop.f32.mrb[0].mxu0
      %3109 = vmatprep.mubr.bf16.mxu0 0
      %3110 = vmatmul.mubr.bf16.gmra.mrb[0].mxu0 %v2956
      %v3111 = vpop.f32.mrb[0].mxu0
      %v3112 = vadd.f32 0.0, %v3111
      %v3113 = vpop.f32.mrb[0].mxu0
      %v3114 = vpop.f32.mrb[0].mxu0
      %v3115 = vadd.f32 0.0, %v3114
      %v3116 = vpop.f32.mrb[0].mxu0
      %3117 = vmatprep.mubr.bf16.mxu0 0
      %3118 = vmatmul.mubr.bf16.gmra.mrb[0].mxu0 %v2959
      %v3119 = vpop.f32.mrb[0].mxu0
      %v3120 = vadd.f32 0.0, %v3119
      %v3121 = vpop.f32.mrb[0].mxu0
      %v3122 = vpop.f32.mrb[0].mxu0
      %v3123 = vadd.f32 0.0, %v3122
      %v3124 = vpop.f32.mrb[0].mxu0
      %3125 = vdwg.mxu0
      %v3158 = vunpack.c.l.b16 %v236
      %v3159 = vunpack.c.l.b16 %v237
      %v3160 = vunpack.c.l.b16 %v238
      %v3161 = vunpack.c.l.b16 %v239
      %v3162 = vunpack.c.l.b16 %v240
      %v3163 = vunpack.c.l.b16 %v241
      %v3164 = vunpack.c.l.b16 %v242
      %v3165 = vunpack.c.l.b16 %v243
      %v3166 = vunpack.c.l.b16 %v244
      %v3167 = vunpack.c.l.b16 %v245
      %v3168 = vunpack.c.l.b16 %v246
      %v3169 = vunpack.c.l.b16 %v247
      %v3170 = vunpack.c.l.b16 %v248
      %v3171 = vunpack.c.l.b16 %v249
      %v3172 = vunpack.c.l.b16 %v250
      %v3173 = vunpack.c.l.b16 %v251
      %v3174 = vunpack.c.l.b16 %v252
      %v3175 = vunpack.c.l.b16 %v253
      %v3176 = vunpack.c.l.b16 %v254
      %v3177 = vunpack.c.l.b16 %v255
      %v3178 = vunpack.c.l.b16 %v256
      %v3179 = vunpack.c.l.b16 %v257
      %v3180 = vunpack.c.l.b16 %v258
      %v3181 = vunpack.c.l.b16 %v259
      %v3182 = vunpack.c.l.b16 %v260
      %v3183 = vunpack.c.l.b16 %v261
      %v3184 = vunpack.c.l.b16 %v262
      %v3185 = vunpack.c.l.b16 %v263
      %v3186 = vunpack.c.l.b16 %v264
      %v3187 = vunpack.c.l.b16 %v265
      %v3188 = vunpack.c.l.b16 %v266
      %v3189 = vunpack.c.l.b16 %v267
      %v3190 = vpack.c.b16 %v3159, %v3158
      %v3191 = vpack.c.b16 %v3161, %v3160
      %v3192 = vpack.c.b16 %v3163, %v3162
      %v3193 = vpack.c.b16 %v3165, %v3164
      %v3194 = vpack.c.b16 %v3167, %v3166
      %v3195 = vpack.c.b16 %v3169, %v3168
      %v3196 = vpack.c.b16 %v3171, %v3170
      %v3197 = vpack.c.b16 %v3173, %v3172
      %v3198 = vpack.c.b16 %v3175, %v3174
      %v3199 = vpack.c.b16 %v3177, %v3176
      %v3200 = vpack.c.b16 %v3179, %v3178
      %v3201 = vpack.c.b16 %v3181, %v3180
      %v3202 = vpack.c.b16 %v3183, %v3182
      %v3203 = vpack.c.b16 %v3185, %v3184
      %v3204 = vpack.c.b16 %v3187, %v3186
      %v3205 = vpack.c.b16 %v3189, %v3188
      %v3207 = vsel %vm305, %v3190, 0
      %v3210 = vsel %vm305, %v3191, 0
      %v3213 = vsel %vm305, %v3192, 0
      %v3216 = vsel %vm305, %v3193, 0
      %v3219 = vsel %vm305, %v3194, 0
      %v3222 = vsel %vm305, %v3195, 0
      %v3225 = vsel %vm305, %v3196, 0
      %v3228 = vsel %vm305, %v3197, 0
      %v3231 = vsel %vm305, %v3198, 0
      %v3234 = vsel %vm305, %v3199, 0
      %v3237 = vsel %vm305, %v3200, 0
      %v3240 = vsel %vm305, %v3201, 0
      %v3243 = vsel %vm305, %v3202, 0
      %v3246 = vsel %vm305, %v3203, 0
      %v3249 = vsel %vm305, %v3204, 0
      %v3252 = vsel %vm305, %v3205, 0
      %v3255 = vsel %vm2961, %v2894, 0
      %3257 = vmatprep.subr.bf16.mxu0 0
      %3258 = vmatpush1.bf16.msra.mxu0 %v3255
      %3259 = vmatprep.subr.bf16.mxu0 0
      %3260 = vmatpush1.bf16.msra.mxu0 0
      %3261 = vmatprep.subr.bf16.mxu0 0
      %3262 = vmatpush1.bf16.msra.mxu0 0
      %3263 = vmatprep.subr.bf16.mxu0 0
      %3264 = vmatpush1.bf16.msra.mxu0 0
      %3265 = vmatprep.subr.bf16.mxu0 0
      %3266 = vmatpush1.bf16.msra.mxu0 0
      %3267 = vmatprep.subr.bf16.mxu0 0
      %3268 = vmatpush1.bf16.msra.mxu0 0
      %3269 = vmatprep.subr.bf16.mxu0 0
      %3270 = vmatpush1.bf16.msra.mxu0 0
      %3271 = vmatprep.subr.bf16.mxu0 0
      %3272 = vmatpush1.bf16.msra.mxu0 0
      %3273 = vmatprep.subr.bf16.mxu0 0
      %3274 = vmatpush1.bf16.msra.mxu0 0
      %3275 = vmatprep.subr.bf16.mxu0 0
      %3276 = vmatpush1.bf16.msra.mxu0 0
      %3277 = vmatprep.subr.bf16.mxu0 0
      %3278 = vmatpush1.bf16.msra.mxu0 0
      %3279 = vmatprep.subr.bf16.mxu0 0
      %3280 = vmatpush1.bf16.msra.mxu0 0
      %3281 = vmatprep.subr.bf16.mxu0 0
      %3282 = vmatpush1.bf16.msra.mxu0 0
      %3283 = vmatprep.subr.bf16.mxu0 0
      %3284 = vmatpush1.bf16.msra.mxu0 0
      %3285 = vmatprep.subr.bf16.mxu0 0
      %3286 = vmatpush1.bf16.msra.mxu0 0
      %3287 = vmatprep.subr.bf16.mxu0 0
      %3288 = vmatpush1.bf16.msra.mxu0 0
      %3289 = vmatprep.mubr.bf16.mxu0 0
      %3290 = vmatmul.mubr.bf16.gmra.mrb[0].mxu0 %v3207
      %v3291 = vpop.f32.mrb[0].mxu0
      %v3292 = vadd.f32 %v3000, %v3291
      %v3293 = vpop.f32.mrb[0].mxu0
      %v3294 = vpop.f32.mrb[0].mxu0
      %v3295 = vadd.f32 %v3003, %v3294
      %v3296 = vpop.f32.mrb[0].mxu0
      %3297 = vmatprep.mubr.bf16.mxu0 0
      %3298 = vmatmul.mubr.bf16.gmra.mrb[0].mxu0 %v3210
      %v3299 = vpop.f32.mrb[0].mxu0
      %v3300 = vadd.f32 %v3008, %v3299
      %v3301 = vpop.f32.mrb[0].mxu0
      %v3302 = vpop.f32.mrb[0].mxu0
      %v3303 = vadd.f32 %v3011, %v3302
      %v3304 = vpop.f32.mrb[0].mxu0
      %3305 = vmatprep.mubr.bf16.mxu0 0
      %3306 = vmatmul.mubr.bf16.gmra.mrb[0].mxu0 %v3213
      %v3307 = vpop.f32.mrb[0].mxu0
      %v3308 = vadd.f32 %v3016, %v3307
      %v3309 = vpop.f32.mrb[0].mxu0
      %v3310 = vpop.f32.mrb[0].mxu0
      %v3311 = vadd.f32 %v3019, %v3310
      %v3312 = vpop.f32.mrb[0].mxu0
      %3313 = vmatprep.mubr.bf16.mxu0 0
      %3314 = vmatmul.mubr.bf16.gmra.mrb[0].mxu0 %v3216
      %v3315 = vpop.f32.mrb[0].mxu0
      %v3316 = vadd.f32 %v3024, %v3315
      %v3317 = vpop.f32.mrb[0].mxu0
      %v3318 = vpop.f32.mrb[0].mxu0
      %v3319 = vadd.f32 %v3027, %v3318
      %v3320 = vpop.f32.mrb[0].mxu0
      %3321 = vmatprep.mubr.bf16.mxu0 0
      %3322 = vmatmul.mubr.bf16.gmra.mrb[0].mxu0 %v3219
      %v3323 = vpop.f32.mrb[0].mxu0
      %v3324 = vadd.f32 %v3032, %v3323
      %v3325 = vpop.f32.mrb[0].mxu0
      %v3326 = vpop.f32.mrb[0].mxu0
      %v3327 = vadd.f32 %v3035, %v3326
      %v3328 = vpop.f32.mrb[0].mxu0
      %3329 = vmatprep.mubr.bf16.mxu0 0
      %3330 = vmatmul.mubr.bf16.gmra.mrb[0].mxu0 %v3222
      %v3331 = vpop.f32.mrb[0].mxu0
      %v3332 = vadd.f32 %v3040, %v3331
      %v3333 = vpop.f32.mrb[0].mxu0
      %v3334 = vpop.f32.mrb[0].mxu0
      %v3335 = vadd.f32 %v3043, %v3334
      %v3336 = vpop.f32.mrb[0].mxu0
      %3337 = vmatprep.mubr.bf16.mxu0 0
      %3338 = vmatmul.mubr.bf16.gmra.mrb[0].mxu0 %v3225
      %v3339 = vpop.f32.mrb[0].mxu0
      %v3340 = vadd.f32 %v3048, %v3339
      %v3341 = vpop.f32.mrb[0].mxu0
      %v3342 = vpop.f32.mrb[0].mxu0
      %v3343 = vadd.f32 %v3051, %v3342
      %v3344 = vpop.f32.mrb[0].mxu0
      %3345 = vmatprep.mubr.bf16.mxu0 0
      %3346 = vmatmul.mubr.bf16.gmra.mrb[0].mxu0 %v3228
      %v3347 = vpop.f32.mrb[0].mxu0
      %v3348 = vadd.f32 %v3056, %v3347
      %v3349 = vpop.f32.mrb[0].mxu0
      %v3350 = vpop.f32.mrb[0].mxu0
      %v3351 = vadd.f32 %v3059, %v3350
      %v3352 = vpop.f32.mrb[0].mxu0
      %3353 = vmatprep.mubr.bf16.mxu0 0
      %3354 = vmatmul.mubr.bf16.gmra.mrb[0].mxu0 %v3231
      %v3355 = vpop.f32.mrb[0].mxu0
      %v3356 = vadd.f32 %v3064, %v3355
      %v3357 = vpop.f32.mrb[0].mxu0
      %v3358 = vpop.f32.mrb[0].mxu0
      %v3359 = vadd.f32 %v3067, %v3358
      %v3360 = vpop.f32.mrb[0].mxu0
      %3361 = vmatprep.mubr.bf16.mxu0 0
      %3362 = vmatmul.mubr.bf16.gmra.mrb[0].mxu0 %v3234
      %v3363 = vpop.f32.mrb[0].mxu0
      %v3364 = vadd.f32 %v3072, %v3363
      %v3365 = vpop.f32.mrb[0].mxu0
      %v3366 = vpop.f32.mrb[0].mxu0
      %v3367 = vadd.f32 %v3075, %v3366
      %v3368 = vpop.f32.mrb[0].mxu0
      %3369 = vmatprep.mubr.bf16.mxu0 0
      %3370 = vmatmul.mubr.bf16.gmra.mrb[0].mxu0 %v3237
      %v3371 = vpop.f32.mrb[0].mxu0
      %v3372 = vadd.f32 %v3080, %v3371
      %v3373 = vpop.f32.mrb[0].mxu0
      %v3374 = vpop.f32.mrb[0].mxu0
      %v3375 = vadd.f32 %v3083, %v3374
      %v3376 = vpop.f32.mrb[0].mxu0
      %3377 = vmatprep.mubr.bf16.mxu0 0
      %3378 = vmatmul.mubr.bf16.gmra.mrb[0].mxu0 %v3240
      %v3379 = vpop.f32.mrb[0].mxu0
      %v3380 = vadd.f32 %v3088, %v3379
      %v3381 = vpop.f32.mrb[0].mxu0
      %v3382 = vpop.f32.mrb[0].mxu0
      %v3383 = vadd.f32 %v3091, %v3382
      %v3384 = vpop.f32.mrb[0].mxu0
      %3385 = vmatprep.mubr.bf16.mxu0 0
      %3386 = vmatmul.mubr.bf16.gmra.mrb[0].mxu0 %v3243
      %v3387 = vpop.f32.mrb[0].mxu0
      %v3388 = vadd.f32 %v3096, %v3387
      %v3389 = vpop.f32.mrb[0].mxu0
      %v3390 = vpop.f32.mrb[0].mxu0
      %v3391 = vadd.f32 %v3099, %v3390
      %v3392 = vpop.f32.mrb[0].mxu0
      %3393 = vmatprep.mubr.bf16.mxu0 0
      %3394 = vmatmul.mubr.bf16.gmra.mrb[0].mxu0 %v3246
      %v3395 = vpop.f32.mrb[0].mxu0
      %v3396 = vadd.f32 %v3104, %v3395
      %v3397 = vpop.f32.mrb[0].mxu0
      %v3398 = vpop.f32.mrb[0].mxu0
      %v3399 = vadd.f32 %v3107, %v3398
      %v3400 = vpop.f32.mrb[0].mxu0
      %3401 = vmatprep.mubr.bf16.mxu0 0
      %3402 = vmatmul.mubr.bf16.gmra.mrb[0].mxu0 %v3249
      %v3403 = vpop.f32.mrb[0].mxu0
      %v3404 = vadd.f32 %v3112, %v3403
      %v3405 = vpop.f32.mrb[0].mxu0
      %v3406 = vpop.f32.mrb[0].mxu0
      %v3407 = vadd.f32 %v3115, %v3406
      %v3408 = vpop.f32.mrb[0].mxu0
      %3409 = vmatprep.mubr.bf16.mxu0 0
      %3410 = vmatmul.mubr.bf16.gmra.mrb[0].mxu0 %v3252
      %v3411 = vpop.f32.mrb[0].mxu0
      %v3412 = vadd.f32 %v3120, %v3411
      %v3413 = vpop.f32.mrb[0].mxu0
      %v3414 = vpop.f32.mrb[0].mxu0
      %v3415 = vadd.f32 %v3123, %v3414
      %v3416 = vpop.f32.mrb[0].mxu0
      %3417 = vdwg.mxu0
      %v3418 = vpack.c.bf16 %v1999, %v1998
      %v3419 = vpack.c.bf16 %v2001, %v2000
      %v3420 = vpack.c.bf16 %v2003, %v2002
      %v3421 = vpack.c.bf16 %v2005, %v2004
      %v3422 = vpack.c.bf16 %v2007, %v2006
      %v3423 = vpack.c.bf16 %v2009, %v2008
      %v3424 = vpack.c.bf16 %v2011, %v2010
      %v3425 = vpack.c.bf16 %v2013, %v2012
      %v3426 = vpack.c.bf16 %v2015, %v2014
      %v3427 = vpack.c.bf16 %v2017, %v2016
      %v3428 = vpack.c.bf16 %v2019, %v2018
      %v3429 = vpack.c.bf16 %v2021, %v2020
      %v3430 = vpack.c.bf16 %v2023, %v2022
      %v3431 = vpack.c.bf16 %v2025, %v2024
      %v3432 = vpack.c.bf16 %v2027, %v2026
      %v3433 = vpack.c.bf16 %v2029, %v2028
      %s3434 = scalar_lea.vmem %s229, 2
      %v3435 = vld [vmem:[%s3434] sm:$0x1]
      %v3437 = vsel %vm305, %v3418, 0
      %v3440 = vsel %vm305, %v3419, 0
      %v3443 = vsel %vm305, %v3420, 0
      %v3446 = vsel %vm305, %v3421, 0
      %v3449 = vsel %vm305, %v3422, 0
      %v3452 = vsel %vm305, %v3423, 0
      %v3455 = vsel %vm305, %v3424, 0
      %v3458 = vsel %vm305, %v3425, 0
      %v3461 = vsel %vm305, %v3426, 0
      %v3464 = vsel %vm305, %v3427, 0
      %v3467 = vsel %vm305, %v3428, 0
      %v3470 = vsel %vm305, %v3429, 0
      %v3473 = vsel %vm305, %v3430, 0
      %v3476 = vsel %vm305, %v3431, 0
      %v3479 = vsel %vm305, %v3432, 0
      %v3482 = vsel %vm305, %v3433, 0
      %v3485 = vsel %vm2961, %v3435, 0
      %3487 = vmatprep.subr.bf16.mxu0 0
      %3488 = vmatpush1.bf16.msra.mxu0 %v3485
      %3489 = vmatprep.subr.bf16.mxu0 0
      %3490 = vmatpush1.bf16.msra.mxu0 0
      %3491 = vmatprep.subr.bf16.mxu0 0
      %3492 = vmatpush1.bf16.msra.mxu0 0
      %3493 = vmatprep.subr.bf16.mxu0 0
      %3494 = vmatpush1.bf16.msra.mxu0 0
      %3495 = vmatprep.subr.bf16.mxu0 0
      %3496 = vmatpush1.bf16.msra.mxu0 0
      %3497 = vmatprep.subr.bf16.mxu0 0
      %3498 = vmatpush1.bf16.msra.mxu0 0
      %3499 = vmatprep.subr.bf16.mxu0 0
      %3500 = vmatpush1.bf16.msra.mxu0 0
      %3501 = vmatprep.subr.bf16.mxu0 0
      %3502 = vmatpush1.bf16.msra.mxu0 0
      %3503 = vmatprep.subr.bf16.mxu0 0
      %3504 = vmatpush1.bf16.msra.mxu0 0
      %3505 = vmatprep.subr.bf16.mxu0 0
      %3506 = vmatpush1.bf16.msra.mxu0 0
      %3507 = vmatprep.subr.bf16.mxu0 0
      %3508 = vmatpush1.bf16.msra.mxu0 0
      %3509 = vmatprep.subr.bf16.mxu0 0
      %3510 = vmatpush1.bf16.msra.mxu0 0
      %3511 = vmatprep.subr.bf16.mxu0 0
      %3512 = vmatpush1.bf16.msra.mxu0 0
      %3513 = vmatprep.subr.bf16.mxu0 0
      %3514 = vmatpush1.bf16.msra.mxu0 0
      %3515 = vmatprep.subr.bf16.mxu0 0
      %3516 = vmatpush1.bf16.msra.mxu0 0
      %3517 = vmatprep.subr.bf16.mxu0 0
      %3518 = vmatpush1.bf16.msra.mxu0 0
      %3519 = vmatprep.mubr.bf16.mxu0 0
      %3520 = vmatmul.mubr.bf16.gmra.mrb[0].mxu0 %v3437
      %v3521 = vpop.f32.mrb[0].mxu0
      %v3522 = vadd.f32 0.0, %v3521
      %v3523 = vpop.f32.mrb[0].mxu0
      %v3524 = vpop.f32.mrb[0].mxu0
      %v3525 = vadd.f32 0.0, %v3524
      %v3526 = vpop.f32.mrb[0].mxu0
      %3527 = vmatprep.mubr.bf16.mxu0 0
      %3528 = vmatmul.mubr.bf16.gmra.mrb[0].mxu0 %v3440
      %v3529 = vpop.f32.mrb[0].mxu0
      %v3530 = vadd.f32 0.0, %v3529
      %v3531 = vpop.f32.mrb[0].mxu0
      %v3532 = vpop.f32.mrb[0].mxu0
      %v3533 = vadd.f32 0.0, %v3532
      %v3534 = vpop.f32.mrb[0].mxu0
      %3535 = vmatprep.mubr.bf16.mxu0 0
      %3536 = vmatmul.mubr.bf16.gmra.mrb[0].mxu0 %v3443
      %v3537 = vpop.f32.mrb[0].mxu0
      %v3538 = vadd.f32 0.0, %v3537
      %v3539 = vpop.f32.mrb[0].mxu0
      %v3540 = vpop.f32.mrb[0].mxu0
      %v3541 = vadd.f32 0.0, %v3540
      %v3542 = vpop.f32.mrb[0].mxu0
      %3543 = vmatprep.mubr.bf16.mxu0 0
      %3544 = vmatmul.mubr.bf16.gmra.mrb[0].mxu0 %v3446
      %v3545 = vpop.f32.mrb[0].mxu0
      %v3546 = vadd.f32 0.0, %v3545
      %v3547 = vpop.f32.mrb[0].mxu0
      %v3548 = vpop.f32.mrb[0].mxu0
      %v3549 = vadd.f32 0.0, %v3548
      %v3550 = vpop.f32.mrb[0].mxu0
      %3551 = vmatprep.mubr.bf16.mxu0 0
      %3552 = vmatmul.mubr.bf16.gmra.mrb[0].mxu0 %v3449
      %v3553 = vpop.f32.mrb[0].mxu0
      %v3554 = vadd.f32 0.0, %v3553
      %v3555 = vpop.f32.mrb[0].mxu0
      %v3556 = vpop.f32.mrb[0].mxu0
      %v3557 = vadd.f32 0.0, %v3556
      %v3558 = vpop.f32.mrb[0].mxu0
      %3559 = vmatprep.mubr.bf16.mxu0 0
      %3560 = vmatmul.mubr.bf16.gmra.mrb[0].mxu0 %v3452
      %v3561 = vpop.f32.mrb[0].mxu0
      %v3562 = vadd.f32 0.0, %v3561
      %v3563 = vpop.f32.mrb[0].mxu0
      %v3564 = vpop.f32.mrb[0].mxu0
      %v3565 = vadd.f32 0.0, %v3564
      %v3566 = vpop.f32.mrb[0].mxu0
      %3567 = vmatprep.mubr.bf16.mxu0 0
      %3568 = vmatmul.mubr.bf16.gmra.mrb[0].mxu0 %v3455
      %v3569 = vpop.f32.mrb[0].mxu0
      %v3570 = vadd.f32 0.0, %v3569
      %v3571 = vpop.f32.mrb[0].mxu0
      %v3572 = vpop.f32.mrb[0].mxu0
      %v3573 = vadd.f32 0.0, %v3572
      %v3574 = vpop.f32.mrb[0].mxu0
      %3575 = vmatprep.mubr.bf16.mxu0 0
      %3576 = vmatmul.mubr.bf16.gmra.mrb[0].mxu0 %v3458
      %v3577 = vpop.f32.mrb[0].mxu0
      %v3578 = vadd.f32 0.0, %v3577
      %v3579 = vpop.f32.mrb[0].mxu0
      %v3580 = vpop.f32.mrb[0].mxu0
      %v3581 = vadd.f32 0.0, %v3580
      %v3582 = vpop.f32.mrb[0].mxu0
      %3583 = vmatprep.mubr.bf16.mxu0 0
      %3584 = vmatmul.mubr.bf16.gmra.mrb[0].mxu0 %v3461
      %v3585 = vpop.f32.mrb[0].mxu0
      %v3586 = vadd.f32 0.0, %v3585
      %v3587 = vpop.f32.mrb[0].mxu0
      %v3588 = vpop.f32.mrb[0].mxu0
      %v3589 = vadd.f32 0.0, %v3588
      %v3590 = vpop.f32.mrb[0].mxu0
      %3591 = vmatprep.mubr.bf16.mxu0 0
      %3592 = vmatmul.mubr.bf16.gmra.mrb[0].mxu0 %v3464
      %v3593 = vpop.f32.mrb[0].mxu0
      %v3594 = vadd.f32 0.0, %v3593
      %v3595 = vpop.f32.mrb[0].mxu0
      %v3596 = vpop.f32.mrb[0].mxu0
      %v3597 = vadd.f32 0.0, %v3596
      %v3598 = vpop.f32.mrb[0].mxu0
      %3599 = vmatprep.mubr.bf16.mxu0 0
      %3600 = vmatmul.mubr.bf16.gmra.mrb[0].mxu0 %v3467
      %v3601 = vpop.f32.mrb[0].mxu0
      %v3602 = vadd.f32 0.0, %v3601
      %v3603 = vpop.f32.mrb[0].mxu0
      %v3604 = vpop.f32.mrb[0].mxu0
      %v3605 = vadd.f32 0.0, %v3604
      %v3606 = vpop.f32.mrb[0].mxu0
      %3607 = vmatprep.mubr.bf16.mxu0 0
      %3608 = vmatmul.mubr.bf16.gmra.mrb[0].mxu0 %v3470
      %v3609 = vpop.f32.mrb[0].mxu0
      %v3610 = vadd.f32 0.0, %v3609
      %v3611 = vpop.f32.mrb[0].mxu0
      %v3612 = vpop.f32.mrb[0].mxu0
      %v3613 = vadd.f32 0.0, %v3612
      %v3614 = vpop.f32.mrb[0].mxu0
      %3615 = vmatprep.mubr.bf16.mxu0 0
      %3616 = vmatmul.mubr.bf16.gmra.mrb[0].mxu0 %v3473
      %v3617 = vpop.f32.mrb[0].mxu0
      %v3618 = vadd.f32 0.0, %v3617
      %v3619 = vpop.f32.mrb[0].mxu0
      %v3620 = vpop.f32.mrb[0].mxu0
      %v3621 = vadd.f32 0.0, %v3620
      %v3622 = vpop.f32.mrb[0].mxu0
      %3623 = vmatprep.mubr.bf16.mxu0 0
      %3624 = vmatmul.mubr.bf16.gmra.mrb[0].mxu0 %v3476
      %v3625 = vpop.f32.mrb[0].mxu0
      %v3626 = vadd.f32 0.0, %v3625
      %v3627 = vpop.f32.mrb[0].mxu0
      %v3628 = vpop.f32.mrb[0].mxu0
      %v3629 = vadd.f32 0.0, %v3628
      %v3630 = vpop.f32.mrb[0].mxu0
      %3631 = vmatprep.mubr.bf16.mxu0 0
      %3632 = vmatmul.mubr.bf16.gmra.mrb[0].mxu0 %v3479
      %v3633 = vpop.f32.mrb[0].mxu0
      %v3634 = vadd.f32 0.0, %v3633
      %v3635 = vpop.f32.mrb[0].mxu0
      %v3636 = vpop.f32.mrb[0].mxu0
      %v3637 = vadd.f32 0.0, %v3636
      %v3638 = vpop.f32.mrb[0].mxu0
      %3639 = vmatprep.mubr.bf16.mxu0 0
      %3640 = vmatmul.mubr.bf16.gmra.mrb[0].mxu0 %v3482
      %v3641 = vpop.f32.mrb[0].mxu0
      %v3642 = vadd.f32 0.0, %v3641
      %v3643 = vpop.f32.mrb[0].mxu0
      %v3644 = vpop.f32.mrb[0].mxu0
      %v3645 = vadd.f32 0.0, %v3644
      %v3646 = vpop.f32.mrb[0].mxu0
      %3647 = vdwg.mxu0
      %v3648 = vadd.f32 %v3292, %v3522
      %v3649 = vadd.f32 %v3295, %v3525
      %v3650 = vadd.f32 %v3300, %v3530
      %v3651 = vadd.f32 %v3303, %v3533
      %v3652 = vadd.f32 %v3308, %v3538
      %v3653 = vadd.f32 %v3311, %v3541
      %v3654 = vadd.f32 %v3316, %v3546
      %v3655 = vadd.f32 %v3319, %v3549
      %v3656 = vadd.f32 %v3324, %v3554
      %v3657 = vadd.f32 %v3327, %v3557
      %v3658 = vadd.f32 %v3332, %v3562
      %v3659 = vadd.f32 %v3335, %v3565
      %v3660 = vadd.f32 %v3340, %v3570
      %v3661 = vadd.f32 %v3343, %v3573
      %v3662 = vadd.f32 %v3348, %v3578
      %v3663 = vadd.f32 %v3351, %v3581
      %v3664 = vadd.f32 %v3356, %v3586
      %v3665 = vadd.f32 %v3359, %v3589
      %v3666 = vadd.f32 %v3364, %v3594
      %v3667 = vadd.f32 %v3367, %v3597
      %v3668 = vadd.f32 %v3372, %v3602
      %v3669 = vadd.f32 %v3375, %v3605
      %v3670 = vadd.f32 %v3380, %v3610
      %v3671 = vadd.f32 %v3383, %v3613
      %v3672 = vadd.f32 %v3388, %v3618
      %v3673 = vadd.f32 %v3391, %v3621
      %v3674 = vadd.f32 %v3396, %v3626
      %v3675 = vadd.f32 %v3399, %v3629
      %v3676 = vadd.f32 %v3404, %v3634
      %v3677 = vadd.f32 %v3407, %v3637
      %v3678 = vadd.f32 %v3412, %v3642
      %v3679 = vadd.f32 %v3415, %v3645
      %v3680 = vpack.c.bf16 %v2831, %v2830
      %v3681 = vpack.c.bf16 %v2833, %v2832
      %v3682 = vpack.c.bf16 %v2835, %v2834
      %v3683 = vpack.c.bf16 %v2837, %v2836
      %v3684 = vpack.c.bf16 %v2839, %v2838
      %v3685 = vpack.c.bf16 %v2841, %v2840
      %v3686 = vpack.c.bf16 %v2843, %v2842
      %v3687 = vpack.c.bf16 %v2845, %v2844
      %v3688 = vpack.c.bf16 %v2847, %v2846
      %v3689 = vpack.c.bf16 %v2849, %v2848
      %v3690 = vpack.c.bf16 %v2851, %v2850
      %v3691 = vpack.c.bf16 %v2853, %v2852
      %v3692 = vpack.c.bf16 %v2855, %v2854
      %v3693 = vpack.c.bf16 %v2857, %v2856
      %v3694 = vpack.c.bf16 %v2859, %v2858
      %v3695 = vpack.c.bf16 %v2861, %v2860
      %s3696 = scalar_lea.vmem %s229, 3
      %v3697 = vld [vmem:[%s3696] sm:$0x1]
      %v3699 = vsel %vm305, %v3680, 0
      %v3702 = vsel %vm305, %v3681, 0
      %v3705 = vsel %vm305, %v3682, 0
      %v3708 = vsel %vm305, %v3683, 0
      %v3711 = vsel %vm305, %v3684, 0
      %v3714 = vsel %vm305, %v3685, 0
      %v3717 = vsel %vm305, %v3686, 0
      %v3720 = vsel %vm305, %v3687, 0
      %v3723 = vsel %vm305, %v3688, 0
      %v3726 = vsel %vm305, %v3689, 0
      %v3729 = vsel %vm305, %v3690, 0
      %v3732 = vsel %vm305, %v3691, 0
      %v3735 = vsel %vm305, %v3692, 0
      %v3738 = vsel %vm305, %v3693, 0
      %v3741 = vsel %vm305, %v3694, 0
      %v3744 = vsel %vm305, %v3695, 0
      %v3747 = vsel %vm2961, %v3697, 0
      %3749 = vmatprep.subr.bf16.mxu0 0
      %3750 = vmatpush1.bf16.msra.mxu0 %v3747
      %3751 = vmatprep.subr.bf16.mxu0 0
      %3752 = vmatpush1.bf16.msra.mxu0 0
      %3753 = vmatprep.subr.bf16.mxu0 0
      %3754 = vmatpush1.bf16.msra.mxu0 0
      %3755 = vmatprep.subr.bf16.mxu0 0
      %3756 = vmatpush1.bf16.msra.mxu0 0
      %3757 = vmatprep.subr.bf16.mxu0 0
      %3758 = vmatpush1.bf16.msra.mxu0 0
      %3759 = vmatprep.subr.bf16.mxu0 0
      %3760 = vmatpush1.bf16.msra.mxu0 0
      %3761 = vmatprep.subr.bf16.mxu0 0
      %3762 = vmatpush1.bf16.msra.mxu0 0
      %3763 = vmatprep.subr.bf16.mxu0 0
      %3764 = vmatpush1.bf16.msra.mxu0 0
      %3765 = vmatprep.subr.bf16.mxu0 0
      %3766 = vmatpush1.bf16.msra.mxu0 0
      %3767 = vmatprep.subr.bf16.mxu0 0
      %3768 = vmatpush1.bf16.msra.mxu0 0
      %3769 = vmatprep.subr.bf16.mxu0 0
      %3770 = vmatpush1.bf16.msra.mxu0 0
      %3771 = vmatprep.subr.bf16.mxu0 0
      %3772 = vmatpush1.bf16.msra.mxu0 0
      %3773 = vmatprep.subr.bf16.mxu0 0
      %3774 = vmatpush1.bf16.msra.mxu0 0
      %3775 = vmatprep.subr.bf16.mxu0 0
      %3776 = vmatpush1.bf16.msra.mxu0 0
      %3777 = vmatprep.subr.bf16.mxu0 0
      %3778 = vmatpush1.bf16.msra.mxu0 0
      %3779 = vmatprep.subr.bf16.mxu0 0
      %3780 = vmatpush1.bf16.msra.mxu0 0
      %3781 = vmatprep.mubr.bf16.mxu0 0
      %3782 = vmatmul.mubr.bf16.gmra.mrb[0].mxu0 %v3699
      %v3783 = vpop.f32.mrb[0].mxu0
      %v3784 = vadd.f32 0.0, %v3783
      %v3785 = vpop.f32.mrb[0].mxu0
      %v3786 = vpop.f32.mrb[0].mxu0
      %v3787 = vadd.f32 0.0, %v3786
      %v3788 = vpop.f32.mrb[0].mxu0
      %3789 = vmatprep.mubr.bf16.mxu0 0
      %3790 = vmatmul.mubr.bf16.gmra.mrb[0].mxu0 %v3702
      %v3791 = vpop.f32.mrb[0].mxu0
      %v3792 = vadd.f32 0.0, %v3791
      %v3793 = vpop.f32.mrb[0].mxu0
      %v3794 = vpop.f32.mrb[0].mxu0
      %v3795 = vadd.f32 0.0, %v3794
      %v3796 = vpop.f32.mrb[0].mxu0
      %3797 = vmatprep.mubr.bf16.mxu0 0
      %3798 = vmatmul.mubr.bf16.gmra.mrb[0].mxu0 %v3705
      %v3799 = vpop.f32.mrb[0].mxu0
      %v3800 = vadd.f32 0.0, %v3799
      %v3801 = vpop.f32.mrb[0].mxu0
      %v3802 = vpop.f32.mrb[0].mxu0
      %v3803 = vadd.f32 0.0, %v3802
      %v3804 = vpop.f32.mrb[0].mxu0
      %3805 = vmatprep.mubr.bf16.mxu0 0
      %3806 = vmatmul.mubr.bf16.gmra.mrb[0].mxu0 %v3708
      %v3807 = vpop.f32.mrb[0].mxu0
      %v3808 = vadd.f32 0.0, %v3807
      %v3809 = vpop.f32.mrb[0].mxu0
      %v3810 = vpop.f32.mrb[0].mxu0
      %v3811 = vadd.f32 0.0, %v3810
      %v3812 = vpop.f32.mrb[0].mxu0
      %3813 = vmatprep.mubr.bf16.mxu0 0
      %3814 = vmatmul.mubr.bf16.gmra.mrb[0].mxu0 %v3711
      %v3815 = vpop.f32.mrb[0].mxu0
      %v3816 = vadd.f32 0.0, %v3815
      %v3817 = vpop.f32.mrb[0].mxu0
      %v3818 = vpop.f32.mrb[0].mxu0
      %v3819 = vadd.f32 0.0, %v3818
      %v3820 = vpop.f32.mrb[0].mxu0
      %3821 = vmatprep.mubr.bf16.mxu0 0
      %3822 = vmatmul.mubr.bf16.gmra.mrb[0].mxu0 %v3714
      %v3823 = vpop.f32.mrb[0].mxu0
      %v3824 = vadd.f32 0.0, %v3823
      %v3825 = vpop.f32.mrb[0].mxu0
      %v3826 = vpop.f32.mrb[0].mxu0
      %v3827 = vadd.f32 0.0, %v3826
      %v3828 = vpop.f32.mrb[0].mxu0
      %3829 = vmatprep.mubr.bf16.mxu0 0
      %3830 = vmatmul.mubr.bf16.gmra.mrb[0].mxu0 %v3717
      %v3831 = vpop.f32.mrb[0].mxu0
      %v3832 = vadd.f32 0.0, %v3831
      %v3833 = vpop.f32.mrb[0].mxu0
      %v3834 = vpop.f32.mrb[0].mxu0
      %v3835 = vadd.f32 0.0, %v3834
      %v3836 = vpop.f32.mrb[0].mxu0
      %3837 = vmatprep.mubr.bf16.mxu0 0
      %3838 = vmatmul.mubr.bf16.gmra.mrb[0].mxu0 %v3720
      %v3839 = vpop.f32.mrb[0].mxu0
      %v3840 = vadd.f32 0.0, %v3839
      %v3841 = vpop.f32.mrb[0].mxu0
      %v3842 = vpop.f32.mrb[0].mxu0
      %v3843 = vadd.f32 0.0, %v3842
      %v3844 = vpop.f32.mrb[0].mxu0
      %3845 = vmatprep.mubr.bf16.mxu0 0
      %3846 = vmatmul.mubr.bf16.gmra.mrb[0].mxu0 %v3723
      %v3847 = vpop.f32.mrb[0].mxu0
      %v3848 = vadd.f32 0.0, %v3847
      %v3849 = vpop.f32.mrb[0].mxu0
      %v3850 = vpop.f32.mrb[0].mxu0
      %v3851 = vadd.f32 0.0, %v3850
      %v3852 = vpop.f32.mrb[0].mxu0
      %3853 = vmatprep.mubr.bf16.mxu0 0
      %3854 = vmatmul.mubr.bf16.gmra.mrb[0].mxu0 %v3726
      %v3855 = vpop.f32.mrb[0].mxu0
      %v3856 = vadd.f32 0.0, %v3855
      %v3857 = vpop.f32.mrb[0].mxu0
      %v3858 = vpop.f32.mrb[0].mxu0
      %v3859 = vadd.f32 0.0, %v3858
      %v3860 = vpop.f32.mrb[0].mxu0
      %3861 = vmatprep.mubr.bf16.mxu0 0
      %3862 = vmatmul.mubr.bf16.gmra.mrb[0].mxu0 %v3729
      %v3863 = vpop.f32.mrb[0].mxu0
      %v3864 = vadd.f32 0.0, %v3863
      %v3865 = vpop.f32.mrb[0].mxu0
      %v3866 = vpop.f32.mrb[0].mxu0
      %v3867 = vadd.f32 0.0, %v3866
      %v3868 = vpop.f32.mrb[0].mxu0
      %3869 = vmatprep.mubr.bf16.mxu0 0
      %3870 = vmatmul.mubr.bf16.gmra.mrb[0].mxu0 %v3732
      %v3871 = vpop.f32.mrb[0].mxu0
      %v3872 = vadd.f32 0.0, %v3871
      %v3873 = vpop.f32.mrb[0].mxu0
      %v3874 = vpop.f32.mrb[0].mxu0
      %v3875 = vadd.f32 0.0, %v3874
      %v3876 = vpop.f32.mrb[0].mxu0
      %3877 = vmatprep.mubr.bf16.mxu0 0
      %3878 = vmatmul.mubr.bf16.gmra.mrb[0].mxu0 %v3735
      %v3879 = vpop.f32.mrb[0].mxu0
      %v3880 = vadd.f32 0.0, %v3879
      %v3881 = vpop.f32.mrb[0].mxu0
      %v3882 = vpop.f32.mrb[0].mxu0
      %v3883 = vadd.f32 0.0, %v3882
      %v3884 = vpop.f32.mrb[0].mxu0
      %3885 = vmatprep.mubr.bf16.mxu0 0
      %3886 = vmatmul.mubr.bf16.gmra.mrb[0].mxu0 %v3738
      %v3887 = vpop.f32.mrb[0].mxu0
      %v3888 = vadd.f32 0.0, %v3887
      %v3889 = vpop.f32.mrb[0].mxu0
      %v3890 = vpop.f32.mrb[0].mxu0
      %v3891 = vadd.f32 0.0, %v3890
      %v3892 = vpop.f32.mrb[0].mxu0
      %3893 = vmatprep.mubr.bf16.mxu0 0
      %3894 = vmatmul.mubr.bf16.gmra.mrb[0].mxu0 %v3741
      %v3895 = vpop.f32.mrb[0].mxu0
      %v3896 = vadd.f32 0.0, %v3895
      %v3897 = vpop.f32.mrb[0].mxu0
      %v3898 = vpop.f32.mrb[0].mxu0
      %v3899 = vadd.f32 0.0, %v3898
      %v3900 = vpop.f32.mrb[0].mxu0
      %3901 = vmatprep.mubr.bf16.mxu0 0
      %3902 = vmatmul.mubr.bf16.gmra.mrb[0].mxu0 %v3744
      %v3903 = vpop.f32.mrb[0].mxu0
      %v3904 = vadd.f32 0.0, %v3903
      %v3905 = vpop.f32.mrb[0].mxu0
      %v3906 = vpop.f32.mrb[0].mxu0
      %v3907 = vadd.f32 0.0, %v3906
      %v3908 = vpop.f32.mrb[0].mxu0
      %3909 = vdwg.mxu0
      %v3910 = vadd.f32 %v3648, %v3784
      %v3911 = vadd.f32 %v3649, %v3787
      %v3912 = vadd.f32 %v3650, %v3792
      %v3913 = vadd.f32 %v3651, %v3795
      %v3914 = vadd.f32 %v3652, %v3800
      %v3915 = vadd.f32 %v3653, %v3803
      %v3916 = vadd.f32 %v3654, %v3808
      %v3917 = vadd.f32 %v3655, %v3811
      %v3918 = vadd.f32 %v3656, %v3816
      %v3919 = vadd.f32 %v3657, %v3819
      %v3920 = vadd.f32 %v3658, %v3824
      %v3921 = vadd.f32 %v3659, %v3827
      %v3922 = vadd.f32 %v3660, %v3832
      %v3923 = vadd.f32 %v3661, %v3835
      %v3924 = vadd.f32 %v3662, %v3840
      %v3925 = vadd.f32 %v3663, %v3843
      %v3926 = vadd.f32 %v3664, %v3848
      %v3927 = vadd.f32 %v3665, %v3851
      %v3928 = vadd.f32 %v3666, %v3856
      %v3929 = vadd.f32 %v3667, %v3859
      %v3930 = vadd.f32 %v3668, %v3864
      %v3931 = vadd.f32 %v3669, %v3867
      %v3932 = vadd.f32 %v3670, %v3872
      %v3933 = vadd.f32 %v3671, %v3875
      %v3934 = vadd.f32 %v3672, %v3880
      %v3935 = vadd.f32 %v3673, %v3883
      %v3936 = vadd.f32 %v3674, %v3888
      %v3937 = vadd.f32 %v3675, %v3891
      %v3938 = vadd.f32 %v3676, %v3896
      %v3939 = vadd.f32 %v3677, %v3899
      %v3940 = vadd.f32 %v3678, %v3904
      %v3941 = vadd.f32 %v3679, %v3907
      %v3942 = vadd.f32 %v2862, %v3910
      %v3943 = vadd.f32 %v2863, %v3911
      %v3944 = vadd.f32 %v2864, %v3912
      %v3945 = vadd.f32 %v2865, %v3913
      %v3946 = vadd.f32 %v2866, %v3914
      %v3947 = vadd.f32 %v2867, %v3915
      %v3948 = vadd.f32 %v2868, %v3916
      %v3949 = vadd.f32 %v2869, %v3917
      %v3950 = vadd.f32 %v2870, %v3918
      %v3951 = vadd.f32 %v2871, %v3919
      %v3952 = vadd.f32 %v2872, %v3920
      %v3953 = vadd.f32 %v2873, %v3921
      %v3954 = vadd.f32 %v2874, %v3922
      %v3955 = vadd.f32 %v2875, %v3923
      %v3956 = vadd.f32 %v2876, %v3924
      %v3957 = vadd.f32 %v2877, %v3925
      %v3958 = vadd.f32 %v2878, %v3926
      %v3959 = vadd.f32 %v2879, %v3927
      %v3960 = vadd.f32 %v2880, %v3928
      %v3961 = vadd.f32 %v2881, %v3929
      %v3962 = vadd.f32 %v2882, %v3930
      %v3963 = vadd.f32 %v2883, %v3931
      %v3964 = vadd.f32 %v2884, %v3932
      %v3965 = vadd.f32 %v2885, %v3933
      %v3966 = vadd.f32 %v2886, %v3934
      %v3967 = vadd.f32 %v2887, %v3935
      %v3968 = vadd.f32 %v2888, %v3936
      %v3969 = vadd.f32 %v2889, %v3937
      %v3970 = vadd.f32 %v2890, %v3938
      %v3971 = vadd.f32 %v2891, %v3939
      %v3972 = vadd.f32 %v2892, %v3940
      %v3973 = vadd.f32 %v2893, %v3941
      %vm3974 = vcmask 64512
      %3975 = vst.msk [vmem:[#allocation2] sm:$0xff] %vm3974, %v3942
      %3976 = vst.msk [vmem:[#allocation2 + $0x8] sm:$0xff] %vm3974, %v3943
      %3977 = vst.msk [vmem:[#allocation2 + $0x10] sm:$0xff] %vm3974, %v3944
      %3978 = vst.msk [vmem:[#allocation2 + $0x18] sm:$0xff] %vm3974, %v3945
      %3979 = vst.msk [vmem:[#allocation2 + $0x20] sm:$0xff] %vm3974, %v3946
      %3980 = vst.msk [vmem:[#allocation2 + $0x28] sm:$0xff] %vm3974, %v3947
      %3981 = vst.msk [vmem:[#allocation2 + $0x30] sm:$0xff] %vm3974, %v3948
      %3982 = vst.msk [vmem:[#allocation2 + $0x38] sm:$0xff] %vm3974, %v3949
      %3983 = vst.msk [vmem:[#allocation2 + $0x40] sm:$0xff] %vm3974, %v3950
      %3984 = vst.msk [vmem:[#allocation2 + $0x48] sm:$0xff] %vm3974, %v3951
      %3985 = vst.msk [vmem:[#allocation2 + $0x50] sm:$0xff] %vm3974, %v3952
      %3986 = vst.msk [vmem:[#allocation2 + $0x58] sm:$0xff] %vm3974, %v3953
      %3987 = vst.msk [vmem:[#allocation2 + $0x60] sm:$0xff] %vm3974, %v3954
      %3988 = vst.msk [vmem:[#allocation2 + $0x68] sm:$0xff] %vm3974, %v3955
      %3989 = vst.msk [vmem:[#allocation2 + $0x70] sm:$0xff] %vm3974, %v3956
      %3990 = vst.msk [vmem:[#allocation2 + $0x78] sm:$0xff] %vm3974, %v3957
      %3991 = vst.msk [vmem:[#allocation2 + $0x80] sm:$0xff] %vm3974, %v3958
      %3992 = vst.msk [vmem:[#allocation2 + $0x88] sm:$0xff] %vm3974, %v3959
      %3993 = vst.msk [vmem:[#allocation2 + $0x90] sm:$0xff] %vm3974, %v3960
      %3994 = vst.msk [vmem:[#allocation2 + $0x98] sm:$0xff] %vm3974, %v3961
      %3995 = vst.msk [vmem:[#allocation2 + $0xa0] sm:$0xff] %vm3974, %v3962
      %3996 = vst.msk [vmem:[#allocation2 + $0xa8] sm:$0xff] %vm3974, %v3963
      %3997 = vst.msk [vmem:[#allocation2 + $0xb0] sm:$0xff] %vm3974, %v3964
      %3998 = vst.msk [vmem:[#allocation2 + $0xb8] sm:$0xff] %vm3974, %v3965
      %3999 = vst.msk [vmem:[#allocation2 + $0xc0] sm:$0xff] %vm3974, %v3966
      %4000 = vst.msk [vmem:[#allocation2 + $0xc8] sm:$0xff] %vm3974, %v3967
      %4001 = vst.msk [vmem:[#allocation2 + $0xd0] sm:$0xff] %vm3974, %v3968
      %4002 = vst.msk [vmem:[#allocation2 + $0xd8] sm:$0xff] %vm3974, %v3969
      %4003 = vst.msk [vmem:[#allocation2 + $0xe0] sm:$0xff] %vm3974, %v3970
      %4004 = vst.msk [vmem:[#allocation2 + $0xe8] sm:$0xff] %vm3974, %v3971
      %4005 = vst.msk [vmem:[#allocation2 + $0xf0] sm:$0xff] %vm3974, %v3972
      %4006 = vst.msk [vmem:[#allocation2 + $0xf8] sm:$0xff] %vm3974, %v3973
      // Predicated region
      $region41: #{sppf_forward.3} parent=35 // pred_check
        %p4007 = pneg %p268
      $region42: #{sppf_forward.3} parent=35 // pred_check_branch
        %4009 = sbr.rel (%p4007) target = $region44
      $region43: #{sppf_forward.3} parent=35 // pred_region
        %v4010 = vld [vmem:[#allocation2] sm:$0xff]
        %v4011 = vld [vmem:[#allocation2 + $0x8] sm:$0xff]
        %v4012 = vld [vmem:[#allocation2 + $0x10] sm:$0xff]
        %v4013 = vld [vmem:[#allocation2 + $0x18] sm:$0xff]
        %v4014 = vld [vmem:[#allocation2 + $0x20] sm:$0xff]
        %v4015 = vld [vmem:[#allocation2 + $0x28] sm:$0xff]
        %v4016 = vld [vmem:[#allocation2 + $0x30] sm:$0xff]
        %v4017 = vld [vmem:[#allocation2 + $0x38] sm:$0xff]
        %v4018 = vld [vmem:[#allocation2 + $0x40] sm:$0xff]
        %v4019 = vld [vmem:[#allocation2 + $0x48] sm:$0xff]
        %v4020 = vld [vmem:[#allocation2 + $0x50] sm:$0xff]
        %v4021 = vld [vmem:[#allocation2 + $0x58] sm:$0xff]
        %v4022 = vld [vmem:[#allocation2 + $0x60] sm:$0xff]
        %v4023 = vld [vmem:[#allocation2 + $0x68] sm:$0xff]
        %v4024 = vld [vmem:[#allocation2 + $0x70] sm:$0xff]
        %v4025 = vld [vmem:[#allocation2 + $0x78] sm:$0xff]
        %v4026 = vld [vmem:[#allocation2 + $0x80] sm:$0xff]
        %v4027 = vld [vmem:[#allocation2 + $0x88] sm:$0xff]
        %v4028 = vld [vmem:[#allocation2 + $0x90] sm:$0xff]
        %v4029 = vld [vmem:[#allocation2 + $0x98] sm:$0xff]
        %v4030 = vld [vmem:[#allocation2 + $0xa0] sm:$0xff]
        %v4031 = vld [vmem:[#allocation2 + $0xa8] sm:$0xff]
        %v4032 = vld [vmem:[#allocation2 + $0xb0] sm:$0xff]
        %v4033 = vld [vmem:[#allocation2 + $0xb8] sm:$0xff]
        %v4034 = vld [vmem:[#allocation2 + $0xc0] sm:$0xff]
        %v4035 = vld [vmem:[#allocation2 + $0xc8] sm:$0xff]
        %v4036 = vld [vmem:[#allocation2 + $0xd0] sm:$0xff]
        %v4037 = vld [vmem:[#allocation2 + $0xd8] sm:$0xff]
        %v4038 = vld [vmem:[#allocation2 + $0xe0] sm:$0xff]
        %v4039 = vld [vmem:[#allocation2 + $0xe8] sm:$0xff]
        %v4040 = vld [vmem:[#allocation2 + $0xf0] sm:$0xff]
        %v4041 = vld [vmem:[#allocation2 + $0xf8] sm:$0xff]
        %v4042 = vld [vmem:[%s2] sm:$0x1]
        %v4044 = vlaneseq
        %v4045 = vshrl.u32 %v4044, 7
        %v4046 = vsub.s32 0, %v4045
        %v4047 = vrot.slane %v4042, %v4046
        %v4049 = vmul.f32 %v4010, %v4047
        %v4050 = vmul.f32 %v4011, %v4047
        %v4051 = vmul.f32 %v4012, %v4047
        %v4052 = vmul.f32 %v4013, %v4047
        %v4053 = vmul.f32 %v4014, %v4047
        %v4054 = vmul.f32 %v4015, %v4047
        %v4055 = vmul.f32 %v4016, %v4047
        %v4056 = vmul.f32 %v4017, %v4047
        %v4057 = vmul.f32 %v4018, %v4047
        %v4058 = vmul.f32 %v4019, %v4047
        %v4059 = vmul.f32 %v4020, %v4047
        %v4060 = vmul.f32 %v4021, %v4047
        %v4061 = vmul.f32 %v4022, %v4047
        %v4062 = vmul.f32 %v4023, %v4047
        %v4063 = vmul.f32 %v4024, %v4047
        %v4064 = vmul.f32 %v4025, %v4047
        %v4065 = vmul.f32 %v4026, %v4047
        %v4066 = vmul.f32 %v4027, %v4047
        %v4067 = vmul.f32 %v4028, %v4047
        %v4068 = vmul.f32 %v4029, %v4047
        %v4069 = vmul.f32 %v4030, %v4047
        %v4070 = vmul.f32 %v4031, %v4047
        %v4071 = vmul.f32 %v4032, %v4047
        %v4072 = vmul.f32 %v4033, %v4047
        %v4073 = vmul.f32 %v4034, %v4047
        %v4074 = vmul.f32 %v4035, %v4047
        %v4075 = vmul.f32 %v4036, %v4047
        %v4076 = vmul.f32 %v4037, %v4047
        %v4077 = vmul.f32 %v4038, %v4047
        %v4078 = vmul.f32 %v4039, %v4047
        %v4079 = vmul.f32 %v4040, %v4047
        %v4080 = vmul.f32 %v4041, %v4047
        %v4081 = vld [vmem:[%s3] sm:$0x1]
        %v4083 = vlaneseq
        %v4084 = vshrl.u32 %v4083, 7
        %v4085 = vsub.s32 0, %v4084
        %v4086 = vrot.slane %v4081, %v4085
        %v4088 = vadd.f32 %v4049, %v4086
        %v4089 = vadd.f32 %v4050, %v4086
        %v4090 = vadd.f32 %v4051, %v4086
        %v4091 = vadd.f32 %v4052, %v4086
        %v4092 = vadd.f32 %v4053, %v4086
        %v4093 = vadd.f32 %v4054, %v4086
        %v4094 = vadd.f32 %v4055, %v4086
        %v4095 = vadd.f32 %v4056, %v4086
        %v4096 = vadd.f32 %v4057, %v4086
        %v4097 = vadd.f32 %v4058, %v4086
        %v4098 = vadd.f32 %v4059, %v4086
        %v4099 = vadd.f32 %v4060, %v4086
        %v4100 = vadd.f32 %v4061, %v4086
        %v4101 = vadd.f32 %v4062, %v4086
        %v4102 = vadd.f32 %v4063, %v4086
        %v4103 = vadd.f32 %v4064, %v4086
        %v4104 = vadd.f32 %v4065, %v4086
        %v4105 = vadd.f32 %v4066, %v4086
        %v4106 = vadd.f32 %v4067, %v4086
        %v4107 = vadd.f32 %v4068, %v4086
        %v4108 = vadd.f32 %v4069, %v4086
        %v4109 = vadd.f32 %v4070, %v4086
        %v4110 = vadd.f32 %v4071, %v4086
        %v4111 = vadd.f32 %v4072, %v4086
        %v4112 = vadd.f32 %v4073, %v4086
        %v4113 = vadd.f32 %v4074, %v4086
        %v4114 = vadd.f32 %v4075, %v4086
        %v4115 = vadd.f32 %v4076, %v4086
        %v4116 = vadd.f32 %v4077, %v4086
        %v4117 = vadd.f32 %v4078, %v4086
        %v4118 = vadd.f32 %v4079, %v4086
        %v4119 = vadd.f32 %v4080, %v4086
        %v4120 = vxor.u32 %v4088, 2147483648
        %v4121 = vxor.u32 %v4089, 2147483648
        %v4122 = vxor.u32 %v4090, 2147483648
        %v4123 = vxor.u32 %v4091, 2147483648
        %v4124 = vxor.u32 %v4092, 2147483648
        %v4125 = vxor.u32 %v4093, 2147483648
        %v4126 = vxor.u32 %v4094, 2147483648
        %v4127 = vxor.u32 %v4095, 2147483648
        %v4128 = vxor.u32 %v4096, 2147483648
        %v4129 = vxor.u32 %v4097, 2147483648
        %v4130 = vxor.u32 %v4098, 2147483648
        %v4131 = vxor.u32 %v4099, 2147483648
        %v4132 = vxor.u32 %v4100, 2147483648
        %v4133 = vxor.u32 %v4101, 2147483648
        %v4134 = vxor.u32 %v4102, 2147483648
        %v4135 = vxor.u32 %v4103, 2147483648
        %v4136 = vxor.u32 %v4104, 2147483648
        %v4137 = vxor.u32 %v4105, 2147483648
        %v4138 = vxor.u32 %v4106, 2147483648
        %v4139 = vxor.u32 %v4107, 2147483648
        %v4140 = vxor.u32 %v4108, 2147483648
        %v4141 = vxor.u32 %v4109, 2147483648
        %v4142 = vxor.u32 %v4110, 2147483648
        %v4143 = vxor.u32 %v4111, 2147483648
        %v4144 = vxor.u32 %v4112, 2147483648
        %v4145 = vxor.u32 %v4113, 2147483648
        %v4146 = vxor.u32 %v4114, 2147483648
        %v4147 = vxor.u32 %v4115, 2147483648
        %v4148 = vxor.u32 %v4116, 2147483648
        %v4149 = vxor.u32 %v4117, 2147483648
        %v4150 = vxor.u32 %v4118, 2147483648
        %v4151 = vxor.u32 %v4119, 2147483648
        %v4152 = vmul.f32 %v4120, 1.442695
        %v4153 = vpow.pop %v4152
        %v4154 = vmul.f32 %v4121, 1.442695
        %v4155 = vpow.pop %v4154
        %v4156 = vmul.f32 %v4122, 1.442695
        %v4157 = vpow.pop %v4156
        %v4158 = vmul.f32 %v4123, 1.442695
        %v4159 = vpow.pop %v4158
        %v4160 = vmul.f32 %v4124, 1.442695
        %v4161 = vpow.pop %v4160
        %v4162 = vmul.f32 %v4125, 1.442695
        %v4163 = vpow.pop %v4162
        %v4164 = vmul.f32 %v4126, 1.442695
        %v4165 = vpow.pop %v4164
        %v4166 = vmul.f32 %v4127, 1.442695
        %v4167 = vpow.pop %v4166
        %v4168 = vmul.f32 %v4128, 1.442695
        %v4169 = vpow.pop %v4168
        %v4170 = vmul.f32 %v4129, 1.442695
        %v4171 = vpow.pop %v4170
        %v4172 = vmul.f32 %v4130, 1.442695
        %v4173 = vpow.pop %v4172
        %v4174 = vmul.f32 %v4131, 1.442695
        %v4175 = vpow.pop %v4174
        %v4176 = vmul.f32 %v4132, 1.442695
        %v4177 = vpow.pop %v4176
        %v4178 = vmul.f32 %v4133, 1.442695
        %v4179 = vpow.pop %v4178
        %v4180 = vmul.f32 %v4134, 1.442695
        %v4181 = vpow.pop %v4180
        %v4182 = vmul.f32 %v4135, 1.442695
        %v4183 = vpow.pop %v4182
        %v4184 = vmul.f32 %v4136, 1.442695
        %v4185 = vpow.pop %v4184
        %v4186 = vmul.f32 %v4137, 1.442695
        %v4187 = vpow.pop %v4186
        %v4188 = vmul.f32 %v4138, 1.442695
        %v4189 = vpow.pop %v4188
        %v4190 = vmul.f32 %v4139, 1.442695
        %v4191 = vpow.pop %v4190
        %v4192 = vmul.f32 %v4140, 1.442695
        %v4193 = vpow.pop %v4192
        %v4194 = vmul.f32 %v4141, 1.442695
        %v4195 = vpow.pop %v4194
        %v4196 = vmul.f32 %v4142, 1.442695
        %v4197 = vpow.pop %v4196
        %v4198 = vmul.f32 %v4143, 1.442695
        %v4199 = vpow.pop %v4198
        %v4200 = vmul.f32 %v4144, 1.442695
        %v4201 = vpow.pop %v4200
        %v4202 = vmul.f32 %v4145, 1.442695
        %v4203 = vpow.pop %v4202
        %v4204 = vmul.f32 %v4146, 1.442695
        %v4205 = vpow.pop %v4204
        %v4206 = vmul.f32 %v4147, 1.442695
        %v4207 = vpow.pop %v4206
        %v4208 = vmul.f32 %v4148, 1.442695
        %v4209 = vpow.pop %v4208
        %v4210 = vmul.f32 %v4149, 1.442695
        %v4211 = vpow.pop %v4210
        %v4212 = vmul.f32 %v4150, 1.442695
        %v4213 = vpow.pop %v4212
        %v4214 = vmul.f32 %v4151, 1.442695
        %v4215 = vpow.pop %v4214
        %v4216 = vadd.f32 %v4153, 1.0
        %v4217 = vadd.f32 %v4155, 1.0
        %v4218 = vadd.f32 %v4157, 1.0
        %v4219 = vadd.f32 %v4159, 1.0
        %v4220 = vadd.f32 %v4161, 1.0
        %v4221 = vadd.f32 %v4163, 1.0
        %v4222 = vadd.f32 %v4165, 1.0
        %v4223 = vadd.f32 %v4167, 1.0
        %v4224 = vadd.f32 %v4169, 1.0
        %v4225 = vadd.f32 %v4171, 1.0
        %v4226 = vadd.f32 %v4173, 1.0
        %v4227 = vadd.f32 %v4175, 1.0
        %v4228 = vadd.f32 %v4177, 1.0
        %v4229 = vadd.f32 %v4179, 1.0
        %v4230 = vadd.f32 %v4181, 1.0
        %v4231 = vadd.f32 %v4183, 1.0
        %v4232 = vadd.f32 %v4185, 1.0
        %v4233 = vadd.f32 %v4187, 1.0
        %v4234 = vadd.f32 %v4189, 1.0
        %v4235 = vadd.f32 %v4191, 1.0
        %v4236 = vadd.f32 %v4193, 1.0
        %v4237 = vadd.f32 %v4195, 1.0
        %v4238 = vadd.f32 %v4197, 1.0
        %v4239 = vadd.f32 %v4199, 1.0
        %v4240 = vadd.f32 %v4201, 1.0
        %v4241 = vadd.f32 %v4203, 1.0
        %v4242 = vadd.f32 %v4205, 1.0
        %v4243 = vadd.f32 %v4207, 1.0
        %v4244 = vadd.f32 %v4209, 1.0
        %v4245 = vadd.f32 %v4211, 1.0
        %v4246 = vadd.f32 %v4213, 1.0
        %v4247 = vadd.f32 %v4215, 1.0
        %v4248 = vrcp.pop %v4216
        %v4249 = vmul.f32 1.0, %v4248
        %v4250 = vrcp.pop %v4217
        %v4251 = vmul.f32 1.0, %v4250
        %v4252 = vrcp.pop %v4218
        %v4253 = vmul.f32 1.0, %v4252
        %v4254 = vrcp.pop %v4219
        %v4255 = vmul.f32 1.0, %v4254
        %v4256 = vrcp.pop %v4220
        %v4257 = vmul.f32 1.0, %v4256
        %v4258 = vrcp.pop %v4221
        %v4259 = vmul.f32 1.0, %v4258
        %v4260 = vrcp.pop %v4222
        %v4261 = vmul.f32 1.0, %v4260
        %v4262 = vrcp.pop %v4223
        %v4263 = vmul.f32 1.0, %v4262
        %v4264 = vrcp.pop %v4224
        %v4265 = vmul.f32 1.0, %v4264
        %v4266 = vrcp.pop %v4225
        %v4267 = vmul.f32 1.0, %v4266
        %v4268 = vrcp.pop %v4226
        %v4269 = vmul.f32 1.0, %v4268
        %v4270 = vrcp.pop %v4227
        %v4271 = vmul.f32 1.0, %v4270
        %v4272 = vrcp.pop %v4228
        %v4273 = vmul.f32 1.0, %v4272
        %v4274 = vrcp.pop %v4229
        %v4275 = vmul.f32 1.0, %v4274
        %v4276 = vrcp.pop %v4230
        %v4277 = vmul.f32 1.0, %v4276
        %v4278 = vrcp.pop %v4231
        %v4279 = vmul.f32 1.0, %v4278
        %v4280 = vrcp.pop %v4232
        %v4281 = vmul.f32 1.0, %v4280
        %v4282 = vrcp.pop %v4233
        %v4283 = vmul.f32 1.0, %v4282
        %v4284 = vrcp.pop %v4234
        %v4285 = vmul.f32 1.0, %v4284
        %v4286 = vrcp.pop %v4235
        %v4287 = vmul.f32 1.0, %v4286
        %v4288 = vrcp.pop %v4236
        %v4289 = vmul.f32 1.0, %v4288
        %v4290 = vrcp.pop %v4237
        %v4291 = vmul.f32 1.0, %v4290
        %v4292 = vrcp.pop %v4238
        %v4293 = vmul.f32 1.0, %v4292
        %v4294 = vrcp.pop %v4239
        %v4295 = vmul.f32 1.0, %v4294
        %v4296 = vrcp.pop %v4240
        %v4297 = vmul.f32 1.0, %v4296
        %v4298 = vrcp.pop %v4241
        %v4299 = vmul.f32 1.0, %v4298
        %v4300 = vrcp.pop %v4242
        %v4301 = vmul.f32 1.0, %v4300
        %v4302 = vrcp.pop %v4243
        %v4303 = vmul.f32 1.0, %v4302
        %v4304 = vrcp.pop %v4244
        %v4305 = vmul.f32 1.0, %v4304
        %v4306 = vrcp.pop %v4245
        %v4307 = vmul.f32 1.0, %v4306
        %v4308 = vrcp.pop %v4246
        %v4309 = vmul.f32 1.0, %v4308
        %v4310 = vrcp.pop %v4247
        %v4311 = vmul.f32 1.0, %v4310
        %v4312 = vmul.f32 %v4088, %v4249
        %v4313 = vmul.f32 %v4089, %v4251
        %v4314 = vmul.f32 %v4090, %v4253
        %v4315 = vmul.f32 %v4091, %v4255
        %v4316 = vmul.f32 %v4092, %v4257
        %v4317 = vmul.f32 %v4093, %v4259
        %v4318 = vmul.f32 %v4094, %v4261
        %v4319 = vmul.f32 %v4095, %v4263
        %v4320 = vmul.f32 %v4096, %v4265
        %v4321 = vmul.f32 %v4097, %v4267
        %v4322 = vmul.f32 %v4098, %v4269
        %v4323 = vmul.f32 %v4099, %v4271
        %v4324 = vmul.f32 %v4100, %v4273
        %v4325 = vmul.f32 %v4101, %v4275
        %v4326 = vmul.f32 %v4102, %v4277
        %v4327 = vmul.f32 %v4103, %v4279
        %v4328 = vmul.f32 %v4104, %v4281
        %v4329 = vmul.f32 %v4105, %v4283
        %v4330 = vmul.f32 %v4106, %v4285
        %v4331 = vmul.f32 %v4107, %v4287
        %v4332 = vmul.f32 %v4108, %v4289
        %v4333 = vmul.f32 %v4109, %v4291
        %v4334 = vmul.f32 %v4110, %v4293
        %v4335 = vmul.f32 %v4111, %v4295
        %v4336 = vmul.f32 %v4112, %v4297
        %v4337 = vmul.f32 %v4113, %v4299
        %v4338 = vmul.f32 %v4114, %v4301
        %v4339 = vmul.f32 %v4115, %v4303
        %v4340 = vmul.f32 %v4116, %v4305
        %v4341 = vmul.f32 %v4117, %v4307
        %v4342 = vmul.f32 %v4118, %v4309
        %v4343 = vmul.f32 %v4119, %v4311
        %4344 = vst.msk [vmem:[%s234] sm:$0xff] %vm3974, %v4312
        %4345 = vst.msk [vmem:[%s234 + $0x8] sm:$0xff] %vm3974, %v4313
        %4346 = vst.msk [vmem:[%s234 + $0x10] sm:$0xff] %vm3974, %v4314
        %4347 = vst.msk [vmem:[%s234 + $0x18] sm:$0xff] %vm3974, %v4315
        %4348 = vst.msk [vmem:[%s234 + $0x20] sm:$0xff] %vm3974, %v4316
        %4349 = vst.msk [vmem:[%s234 + $0x28] sm:$0xff] %vm3974, %v4317
        %4350 = vst.msk [vmem:[%s234 + $0x30] sm:$0xff] %vm3974, %v4318
        %4351 = vst.msk [vmem:[%s234 + $0x38] sm:$0xff] %vm3974, %v4319
        %4352 = vst.msk [vmem:[%s234 + $0x40] sm:$0xff] %vm3974, %v4320
        %4353 = vst.msk [vmem:[%s234 + $0x48] sm:$0xff] %vm3974, %v4321
        %4354 = vst.msk [vmem:[%s234 + $0x50] sm:$0xff] %vm3974, %v4322
        %4355 = vst.msk [vmem:[%s234 + $0x58] sm:$0xff] %vm3974, %v4323
        %4356 = vst.msk [vmem:[%s234 + $0x60] sm:$0xff] %vm3974, %v4324
        %4357 = vst.msk [vmem:[%s234 + $0x68] sm:$0xff] %vm3974, %v4325
        %4358 = vst.msk [vmem:[%s234 + $0x70] sm:$0xff] %vm3974, %v4326
        %4359 = vst.msk [vmem:[%s234 + $0x78] sm:$0xff] %vm3974, %v4327
        %4360 = vst.msk [vmem:[%s234 + $0x80] sm:$0xff] %vm3974, %v4328
        %4361 = vst.msk [vmem:[%s234 + $0x88] sm:$0xff] %vm3974, %v4329
        %4362 = vst.msk [vmem:[%s234 + $0x90] sm:$0xff] %vm3974, %v4330
        %4363 = vst.msk [vmem:[%s234 + $0x98] sm:$0xff] %vm3974, %v4331
        %4364 = vst.msk [vmem:[%s234 + $0xa0] sm:$0xff] %vm3974, %v4332
        %4365 = vst.msk [vmem:[%s234 + $0xa8] sm:$0xff] %vm3974, %v4333
        %4366 = vst.msk [vmem:[%s234 + $0xb0] sm:$0xff] %vm3974, %v4334
        %4367 = vst.msk [vmem:[%s234 + $0xb8] sm:$0xff] %vm3974, %v4335
        %4368 = vst.msk [vmem:[%s234 + $0xc0] sm:$0xff] %vm3974, %v4336
        %4369 = vst.msk [vmem:[%s234 + $0xc8] sm:$0xff] %vm3974, %v4337
        %4370 = vst.msk [vmem:[%s234 + $0xd0] sm:$0xff] %vm3974, %v4338
        %4371 = vst.msk [vmem:[%s234 + $0xd8] sm:$0xff] %vm3974, %v4339
        %4372 = vst.msk [vmem:[%s234 + $0xe0] sm:$0xff] %vm3974, %v4340
        %4373 = vst.msk [vmem:[%s234 + $0xe8] sm:$0xff] %vm3974, %v4341
        %4374 = vst.msk [vmem:[%s234 + $0xf0] sm:$0xff] %vm3974, %v4342
        %4375 = vst.msk [vmem:[%s234 + $0xf8] sm:$0xff] %vm3974, %v4343
      $region44: #{sppf_forward.3} parent=35 // pred_fallthru
        _
      %p4376 = scmp.lt.s32.totalorder %s19, 1
      %s4377 = scalar_select %p4376, %s19, 1
      %s4378 = smul.addr %s4377, 32
      %s4379 = smul.addr %s4378, 8
      %s4380 = scalar_lea.vmem %s4, %s4379
      // Predicated region
      $region45: #{sppf_forward.3} parent=35 // pred_check
        %p4381 = pneg %p141
      $region46: #{sppf_forward.3} parent=35 // pred_check_branch
        %4383 = sbr.rel (%p4381) target = $region48
      $region47: #{sppf_forward.3} parent=35 // pred_region
        _
      $region48: #{sppf_forward.3} parent=35 // pred_fallthru
        _
    $region36: #{sppf_forward.3} parent=5 // pred_fallthru
      _
    %p4384 = scmp.le.s32.totalorder 2, %s10
    // Predicated region
    $region49: #{sppf_forward.3} parent=5 // pred_check
      %p4385 = pneg %p4384
    $region50: #{sppf_forward.3} parent=5 // pred_check_branch
      %4387 = sbr.rel (%p4385) target = $region52
    $region51: #{sppf_forward.3} parent=5 // pred_region
      %s4388 = ssub.s32 %s10, 2
      // Predicated region
      $region53: #{sppf_forward.3} parent=51 // pred_check
        %p4389 = pneg %p147
      $region54: #{sppf_forward.3} parent=51 // pred_check_branch
        %4391 = sbr.rel (%p4389) target = $region56
      $region55: #{sppf_forward.3} parent=51 // pred_region
        %p4392 = scmp.lt.s32.totalorder %s21, 1
        %s4393 = scalar_select %p4392, %s21, 1
        %s4394 = smul.addr %s4393, 32
        %s4395 = smul.addr %s4394, 8
        %s4396 = scalar_lea.vmem %s4, %s4395
      $region56: #{sppf_forward.3} parent=51 // pred_fallthru
        _
    $region52: #{sppf_forward.3} parent=5 // pred_fallthru
      _
  $region6: #{sppf_forward.3} parent=0 // loop_footer
    %s14 = sadd.s32 1, %s10
  $region7: #{sppf_forward.3} parent=0 // loop_footer_branch
    %9 = sbr.rel target = $region3
  $region8: #{sppf_forward.3} parent=0 // loop_exit
    _

</llo_original>
